<compile_context>
chip_gen: v7x
topology: tpu7x:2x2x1
jax: 0.10.0
libtpu: 0.0.40
codegen_flags: <defaults>
</compile_context>

<pallas_src>
import functools

import jax
import jax.numpy as jnp
from jax.experimental import pallas as pl
from jax.experimental.pallas import tpu as pltpu


def _round_up(x, m):
    return (x + m - 1) // m * m


def lstm_head_kernel(text_ref, xtab_ref, emo_ref, slab_ref, out_ref, xs_ref,
                     *, T, TB, H, V, LANES, R_WHH, R_W2A, R_WFC, R_VEC):
    bidx = pl.program_id(0)

    # ---- in-kernel gather of the folded (W_ih @ emb[tok] + b) rows ---------
    # xs is t-major so each step's (TB, 4H) slice is one aligned sublane block.
    for t in range(T):
        for b in range(TB):
            tok = text_ref[bidx * TB + b, t]          # scalar from SMEM
            tok = jnp.clip(tok, 0, V - 1)             # no VMEM OOB check: clamp
            xs_ref[pl.ds(t * TB + b, 1), :] = xtab_ref[pl.ds(tok, 1), :]

    w_hh = slab_ref[R_WHH:R_WHH + H, :]               # (H, 4H), loaded once
    vec = slab_ref[R_VEC:R_VEC + 8, :]                # packed 1-row vectors

    h = jnp.zeros((TB, H), jnp.float32)
    c = jnp.zeros((TB, H), jnp.float32)

    # ---- LSTM recurrence (PyTorch gate order i, f, g, o); T small -> unroll -
    for t in range(T):
        gates = xs_ref[t * TB:(t + 1) * TB, :] + jnp.dot(
            h, w_hh, preferred_element_type=jnp.float32)      # (TB, 4H)
        sig = jax.nn.sigmoid(gates)                           # 1 EUP push
        i_g = sig[:, 0:H]
        f_g = sig[:, H:2 * H]
        o_g = sig[:, 3 * H:4 * H]
        g_g = jnp.tanh(gates[:, 2 * H:3 * H])                 # EUP push #2
        c = f_g * c + i_g * g_g
        h = o_g * jnp.tanh(c)                                 # EUP push #3

    # ---- fc1(emo) + ReLU: emo padded to LANES with 1.0 at lane 8 folds the
    # bias into a single lane reduction. --------------------------------------
    fc1 = jnp.maximum(
        jnp.sum(emo_ref[...] * vec[3:4, :], axis=1, keepdims=True), 0.0)

    # ---- fc2(concat(h, fc1)) + ReLU: concat folded into split weights -------
    #   concat @ W2^T == h @ W2[:, :H]^T + fc1 * W2[:, H]^T
    fc2 = (jnp.dot(h, slab_ref[R_W2A:R_W2A + H, :],
                   preferred_element_type=jnp.float32)
           + fc1 * vec[0:1, :] + vec[1:2, :])                 # (TB, LANES)
    fc2 = jnp.maximum(fc2, 0.0)                               # padded lanes stay 0

    # ---- fc(fc2) + sigmoid, lane-dense (TB, LANES) store --------------------
    logits = (jnp.dot(fc2, slab_ref[R_WFC:R_WFC + LANES, :],
                      preferred_element_type=jnp.float32)
              + vec[2:3, :])
    out_ref[...] = jax.nn.sigmoid(logits)


def prepare_params(raw):
    """One-time weight prep: fold / transpose / pack into lane-dense slabs."""
    f32 = jnp.float32
    w_ih = jnp.asarray(raw["w_ih"], f32)                      # (4H, E)
    w_hh = jnp.asarray(raw["w_hh"], f32)                      # (4H, H)
    H = w_hh.shape[1]
    E = w_ih.shape[1]
    OUT = raw["w_fc"].shape[0]
    V = raw["embedding"].shape[0]
    LANES = 4 * H
    assert LANES == 128, "this kernel assumes hidden_dim == 32 (4H == 128 lanes)"
    assert (H + 1) <= LANES and OUT <= LANES and 9 <= LANES

    def pad_lanes(x):
        x = jnp.asarray(x, f32)
        return jnp.pad(x, ((0, 0), (0, LANES - x.shape[1])))

    # Embedding + input projection + both biases folded into one lane-dense
    # lookup table: xtab[v] = W_ih @ emb[v] + b_ih + b_hh  -> (V, 4H).
    emb = jnp.asarray(raw["embedding"], f32)
    xtab = (jnp.dot(emb, w_ih.T, precision=jax.lax.Precision.HIGHEST)
            + jnp.asarray(raw["b_ih"], f32) + jnp.asarray(raw["b_hh"], f32))

    w_fc2 = jnp.asarray(raw["w_fc2"], f32)                    # (H+1, H+1)

    R_WHH = 0
    R_W2A = R_WHH + H
    R_WFC = R_W2A + H
    R_VEC = R_WFC + LANES

    w_fc_t = jnp.zeros((LANES, LANES), f32).at[:H + 1, :OUT].set(
        jnp.asarray(raw["w_fc"], f32).T)

    vec = jnp.zeros((8, LANES), f32)
    vec = vec.at[0, :H + 1].set(w_fc2[:, H])                  # concat-fold B
    vec = vec.at[1, :H + 1].set(jnp.asarray(raw["b_fc2"], f32))
    vec = vec.at[2, :OUT].set(jnp.asarray(raw["b_fc"], f32))
    vec = vec.at[3, :8].set(jnp.asarray(raw["w_fc1"], f32).reshape(-1))
    vec = vec.at[3, 8].set(jnp.asarray(raw["b_fc1"], f32)[0])

    slab = jnp.concatenate([
        pad_lanes(w_hh.T),                                    # (H, 4H)
        pad_lanes(w_fc2[:, :H].T),                            # (H, H+1) pad
        w_fc_t,                                               # (LANES, LANES)
        vec,                                                  # (8, LANES)
    ], axis=0)
    assert slab.shape[0] % 8 == 0

    return dict(
        xtab=xtab, slab=slab,
        dims=dict(E=E, H=H, OUT=OUT, LANES=LANES, V=V),
        offsets=dict(w_hh=R_WHH, w2a=R_W2A, w_fc=R_WFC, vec=R_VEC),
    )


def lstm_forward_batched(prepped, text, emo, *, tb=8):
    """text: (B, T) int, emo: (B, 8) float -> (B, OUT)."""
    dims, offs = prepped["dims"], prepped["offsets"]
    H, OUT, LANES, V = dims["H"], dims["OUT"], dims["LANES"], dims["V"]
    B, T = text.shape
    assert emo.shape == (B, 8)
    assert tb % 8 == 0
    B_pad = _round_up(max(B, 1), tb)

    text_pad = jnp.zeros((B_pad, T), jnp.int32).at[:B, :].set(
        text.astype(jnp.int32))
    emo_pad = jnp.zeros((B_pad, LANES), jnp.float32)
    emo_pad = emo_pad.at[:B, :8].set(emo.astype(jnp.float32))
    emo_pad = emo_pad.at[:, 8].set(1.0)            # folds the fc1 bias

    slab = prepped["slab"]
    kernel = functools.partial(
        lstm_head_kernel, T=T, TB=tb, H=H, V=V, LANES=LANES,
        R_WHH=offs["w_hh"], R_W2A=offs["w2a"], R_WFC=offs["w_fc"],
        R_VEC=offs["vec"])

    out = pl.pallas_call(
        kernel,
        out_shape=jax.ShapeDtypeStruct((B_pad, LANES), jnp.float32),
        grid_spec=pltpu.PrefetchScalarGridSpec(
            num_scalar_prefetch=1,                 # token ids -> SMEM
            grid=(B_pad // tb,),
            in_specs=[
                pl.BlockSpec((V, LANES), lambda b, txt: (0, 0)),      # xtab
                pl.BlockSpec((tb, LANES), lambda b, txt: (b, 0)),     # emo
                pl.BlockSpec((slab.shape[0], LANES),
                             lambda b, txt: (0, 0)),                  # slab
            ],
            out_specs=pl.BlockSpec((tb, LANES), lambda b, txt: (b, 0)),
            scratch_shapes=[pltpu.VMEM((T * tb, LANES), jnp.float32)],
        ),
        compiler_params=pltpu.CompilerParams(
            dimension_semantics=("parallel",)),
    )(text_pad, prepped["xtab"], emo_pad, slab)
    return out[:B, :OUT]


def lstm_forward(prepped, text, emo):
    """Single-sequence path, exact PyTorch-forward semantics: returns (OUT,)."""
    return lstm_forward_batched(prepped, text[None, :], emo[None, :], tb=8)[0]


def init_params(key, input_dim, embedding_dim, hidden_dim, output_dim):
    ks = jax.random.split(key, 11)

    def u(k, shape, scale):
        return jax.random.uniform(k, shape, jnp.float32, -scale, scale)

    s_h = 1.0 / float(hidden_dim) ** 0.5
    s_8 = 1.0 / 8.0 ** 0.5
    s_h1 = 1.0 / float(hidden_dim + 1) ** 0.5
    return dict(
        embedding=jax.random.normal(ks[0], (input_dim, embedding_dim), jnp.float32),
        w_ih=u(ks[1], (4 * hidden_dim, embedding_dim), s_h),
        w_hh=u(ks[2], (4 * hidden_dim, hidden_dim), s_h),
        b_ih=u(ks[3], (4 * hidden_dim,), s_h),
        b_hh=u(ks[4], (4 * hidden_dim,), s_h),
        w_fc1=u(ks[5], (1, 8), s_8),
        b_fc1=u(ks[6], (1,), s_8),
        w_fc2=u(ks[7], (hidden_dim + 1, hidden_dim + 1), s_h1),
        b_fc2=u(ks[8], (hidden_dim + 1,), s_h1),
        w_fc=u(ks[9], (output_dim, hidden_dim + 1), s_h1),
        b_fc=u(ks[10], (output_dim,), s_h1),
    )


def reference_forward(params, text, emo):
    """Pure-JAX mirror of the PyTorch forward (one sequence), for verification."""
    emb = params["embedding"][text]
    H = params["w_hh"].shape[1]
    h = jnp.zeros((H,), jnp.float32)
    c = jnp.zeros((H,), jnp.float32)
    for t in range(emb.shape[0]):
        gates = (params["w_ih"] @ emb[t] + params["b_ih"]
                 + params["w_hh"] @ h + params["b_hh"])
        i = jax.nn.sigmoid(gates[0:H])
        f = jax.nn.sigmoid(gates[H:2 * H])
        g = jnp.tanh(gates[2 * H:3 * H])
        o = jax.nn.sigmoid(gates[3 * H:4 * H])
        c = f * c + i * g
        h = o * jnp.tanh(c)
    fc1 = jnp.maximum(params["w_fc1"] @ emo + params["b_fc1"], 0.0)   # (1,)
    concat = jnp.concatenate([h, fc1])                                # (H+1,)
    fc2 = jnp.maximum(params["w_fc2"] @ concat + params["b_fc2"], 0.0)
    return jax.nn.sigmoid(params["w_fc"] @ fc2 + params["b_fc"])


if __name__ == "__main__":
    INPUT_DIM, EMB_DIM, HID_DIM, OUT_DIM = 32, 16, 32, 4
    SEQ_LEN, BATCH = 8, 16

    key = jax.random.PRNGKey(0)
    pkey, tkey, ekey = jax.random.split(key, 3)
    raw_params = init_params(pkey, INPUT_DIM, EMB_DIM, HID_DIM, OUT_DIM)
    prepped = prepare_params(raw_params)          # one-time weight prep

    text = jax.random.randint(tkey, (BATCH, SEQ_LEN), 0, INPUT_DIM,
                              dtype=jnp.int32)
    emo = jax.random.normal(ekey, (BATCH, 8), jnp.float32)

    out = jax.block_until_ready(lstm_forward_batched(prepped, text, emo, tb=8))
    ref = jnp.stack([reference_forward(raw_params, text[i], emo[i])
                     for i in range(BATCH)])

    assert out.shape == (BATCH, OUT_DIM), out.shape
    assert bool(jnp.all(jnp.isfinite(out)))
    max_err = float(jnp.max(jnp.abs(out - ref)))
    assert max_err < 2e-5, (max_err, out[0], ref[0])

    # Single-sequence path (the literal semantics of the PyTorch forward).
    single = jax.block_until_ready(lstm_forward(prepped, text[0], emo[0]))
    assert single.shape == (OUT_DIM,)
    assert bool(jnp.allclose(single, ref[0], atol=2e-5, rtol=2e-5))

    print("KERNEL_OK")
</pallas_src>

<mosaic_0001>
module attributes {stable_mosaic.version = 11 : i64} {
  func.func @lstm_head_kernel(%arg0: i32, %arg1: memref<16x8xi32, #tpu.memory_space<smem>>, %arg2: memref<32x128xf32, #tpu.memory_space<vmem>>, %arg3: memref<8x128xf32, #tpu.memory_space<vmem>>, %arg4: memref<200x128xf32, #tpu.memory_space<vmem>>, %arg5: memref<8x128xf32, #tpu.memory_space<vmem>>, %arg6: memref<64x128xf32, #tpu.memory_space<vmem>>) attributes {dimension_semantics = [#tpu.dimension_semantics<parallel>], iteration_bounds = array<i64: 2>, scalar_prefetch = 1 : i64, scratch_operands = 1 : i64, tpu.core_type = #tpu.core_type<tc>, window_params = [{pipeline_mode = #tpu.pipeline_mode<synchronous>, transform_indices = @transform_0, window_bounds = array<i64: 32, 128>}, {transform_indices = @transform_1, window_bounds = array<i64: 8, 128>}, {pipeline_mode = #tpu.pipeline_mode<synchronous>, transform_indices = @transform_2, window_bounds = array<i64: 200, 128>}, {transform_indices = @transform_3, window_bounds = array<i64: 8, 128>}]} {
    %c8_i32 = arith.constant 8 : i32
    %0 = arith.muli %arg0, %c8_i32 : i32
    %c0_i32 = arith.constant 0 : i32
    %1 = arith.addi %0, %c0_i32 : i32
    %2 = arith.index_cast %1 : i32 to index
    %c0 = arith.constant 0 : index
    %3 = memref.load %arg1[%2, %c0] : memref<16x8xi32, #tpu.memory_space<smem>>
    %c0_i32_0 = arith.constant 0 : i32
    %c31_i32 = arith.constant 31 : i32
    %4 = arith.maxsi %c0_i32_0, %3 : i32
    %5 = arith.minsi %c31_i32, %4 : i32
    %6 = arith.index_cast %5 : i32 to index
    %c0_1 = arith.constant 0 : index
    %7 = vector.load %arg2[%6, %c0_1] : memref<32x128xf32, #tpu.memory_space<vmem>>, vector<1x128xf32>
    %c0_2 = arith.constant 0 : index
    %c0_3 = arith.constant 0 : index
    %8 = vector.load %arg6[%c0_2, %c0_3] : memref<64x128xf32, #tpu.memory_space<vmem>>, vector<1x128xf32>
    tpu.vector_store %arg6[%c0_2, %c0_3], %7 {strides = array<i32>} : memref<64x128xf32, #tpu.memory_space<vmem>>, vector<1x128xf32>,
    %c8_i32_4 = arith.constant 8 : i32
    %9 = arith.muli %arg0, %c8_i32_4 : i32
    %c1_i32 = arith.constant 1 : i32
    %10 = arith.addi %9, %c1_i32 : i32
    %11 = arith.index_cast %10 : i32 to index
    %c0_5 = arith.constant 0 : index
    %12 = memref.load %arg1[%11, %c0_5] : memref<16x8xi32, #tpu.memory_space<smem>>
    %c0_i32_6 = arith.constant 0 : i32
    %c31_i32_7 = arith.constant 31 : i32
    %13 = arith.maxsi %c0_i32_6, %12 : i32
    %14 = arith.minsi %c31_i32_7, %13 : i32
    %15 = arith.index_cast %14 : i32 to index
    %c0_8 = arith.constant 0 : index
    %16 = vector.load %arg2[%15, %c0_8] : memref<32x128xf32, #tpu.memory_space<vmem>>, vector<1x128xf32>
    %c1 = arith.constant 1 : index
    %c0_9 = arith.constant 0 : index
    %17 = vector.load %arg6[%c1, %c0_9] : memref<64x128xf32, #tpu.memory_space<vmem>>, vector<1x128xf32>
    tpu.vector_store %arg6[%c1, %c0_9], %16 {strides = array<i32>} : memref<64x128xf32, #tpu.memory_space<vmem>>, vector<1x128xf32>,
    %c8_i32_10 = arith.constant 8 : i32
    %18 = arith.muli %arg0, %c8_i32_10 : i32
    %c2_i32 = arith.constant 2 : i32
    %19 = arith.addi %18, %c2_i32 : i32
    %20 = arith.index_cast %19 : i32 to index
    %c0_11 = arith.constant 0 : index
    %21 = memref.load %arg1[%20, %c0_11] : memref<16x8xi32, #tpu.memory_space<smem>>
    %c0_i32_12 = arith.constant 0 : i32
    %c31_i32_13 = arith.constant 31 : i32
    %22 = arith.maxsi %c0_i32_12, %21 : i32
    %23 = arith.minsi %c31_i32_13, %22 : i32
    %24 = arith.index_cast %23 : i32 to index
    %c0_14 = arith.constant 0 : index
    %25 = vector.load %arg2[%24, %c0_14] : memref<32x128xf32, #tpu.memory_space<vmem>>, vector<1x128xf32>
    %c2 = arith.constant 2 : index
    %c0_15 = arith.constant 0 : index
    %26 = vector.load %arg6[%c2, %c0_15] : memref<64x128xf32, #tpu.memory_space<vmem>>, vector<1x128xf32>
    tpu.vector_store %arg6[%c2, %c0_15], %25 {strides = array<i32>} : memref<64x128xf32, #tpu.memory_space<vmem>>, vector<1x128xf32>,
    %c8_i32_16 = arith.constant 8 : i32
    %27 = arith.muli %arg0, %c8_i32_16 : i32
    %c3_i32 = arith.constant 3 : i32
    %28 = arith.addi %27, %c3_i32 : i32
    %29 = arith.index_cast %28 : i32 to index
    %c0_17 = arith.constant 0 : index
    %30 = memref.load %arg1[%29, %c0_17] : memref<16x8xi32, #tpu.memory_space<smem>>
    %c0_i32_18 = arith.constant 0 : i32
    %c31_i32_19 = arith.constant 31 : i32
    %31 = arith.maxsi %c0_i32_18, %30 : i32
    %32 = arith.minsi %c31_i32_19, %31 : i32
    %33 = arith.index_cast %32 : i32 to index
    %c0_20 = arith.constant 0 : index
    %34 = vector.load %arg2[%33, %c0_20] : memref<32x128xf32, #tpu.memory_space<vmem>>, vector<1x128xf32>
    %c3 = arith.constant 3 : index
    %c0_21 = arith.constant 0 : index
    %35 = vector.load %arg6[%c3, %c0_21] : memref<64x128xf32, #tpu.memory_space<vmem>>, vector<1x128xf32>
    tpu.vector_store %arg6[%c3, %c0_21], %34 {strides = array<i32>} : memref<64x128xf32, #tpu.memory_space<vmem>>, vector<1x128xf32>,
    %c8_i32_22 = arith.constant 8 : i32
    %36 = arith.muli %arg0, %c8_i32_22 : i32
    %c4_i32 = arith.constant 4 : i32
    %37 = arith.addi %36, %c4_i32 : i32
    %38 = arith.index_cast %37 : i32 to index
    %c0_23 = arith.constant 0 : index
    %39 = memref.load %arg1[%38, %c0_23] : memref<16x8xi32, #tpu.memory_space<smem>>
    %c0_i32_24 = arith.constant 0 : i32
    %c31_i32_25 = arith.constant 31 : i32
    %40 = arith.maxsi %c0_i32_24, %39 : i32
    %41 = arith.minsi %c31_i32_25, %40 : i32
    %42 = arith.index_cast %41 : i32 to index
    %c0_26 = arith.constant 0 : index
    %43 = vector.load %arg2[%42, %c0_26] : memref<32x128xf32, #tpu.memory_space<vmem>>, vector<1x128xf32>
    %c4 = arith.constant 4 : index
    %c0_27 = arith.constant 0 : index
    %44 = vector.load %arg6[%c4, %c0_27] : memref<64x128xf32, #tpu.memory_space<vmem>>, vector<1x128xf32>
    tpu.vector_store %arg6[%c4, %c0_27], %43 {strides = array<i32>} : memref<64x128xf32, #tpu.memory_space<vmem>>, vector<1x128xf32>,
    %c8_i32_28 = arith.constant 8 : i32
    %45 = arith.muli %arg0, %c8_i32_28 : i32
    %c5_i32 = arith.constant 5 : i32
    %46 = arith.addi %45, %c5_i32 : i32
    %47 = arith.index_cast %46 : i32 to index
    %c0_29 = arith.constant 0 : index
    %48 = memref.load %arg1[%47, %c0_29] : memref<16x8xi32, #tpu.memory_space<smem>>
    %c0_i32_30 = arith.constant 0 : i32
    %c31_i32_31 = arith.constant 31 : i32
    %49 = arith.maxsi %c0_i32_30, %48 : i32
    %50 = arith.minsi %c31_i32_31, %49 : i32
    %51 = arith.index_cast %50 : i32 to index
    %c0_32 = arith.constant 0 : index
    %52 = vector.load %arg2[%51, %c0_32] : memref<32x128xf32, #tpu.memory_space<vmem>>, vector<1x128xf32>
    %c5 = arith.constant 5 : index
    %c0_33 = arith.constant 0 : index
    %53 = vector.load %arg6[%c5, %c0_33] : memref<64x128xf32, #tpu.memory_space<vmem>>, vector<1x128xf32>
    tpu.vector_store %arg6[%c5, %c0_33], %52 {strides = array<i32>} : memref<64x128xf32, #tpu.memory_space<vmem>>, vector<1x128xf32>,
    %c8_i32_34 = arith.constant 8 : i32
    %54 = arith.muli %arg0, %c8_i32_34 : i32
    %c6_i32 = arith.constant 6 : i32
    %55 = arith.addi %54, %c6_i32 : i32
    %56 = arith.index_cast %55 : i32 to index
    %c0_35 = arith.constant 0 : index
    %57 = memref.load %arg1[%56, %c0_35] : memref<16x8xi32, #tpu.memory_space<smem>>
    %c0_i32_36 = arith.constant 0 : i32
    %c31_i32_37 = arith.constant 31 : i32
    %58 = arith.maxsi %c0_i32_36, %57 : i32
    %59 = arith.minsi %c31_i32_37, %58 : i32
    %60 = arith.index_cast %59 : i32 to index
    %c0_38 = arith.constant 0 : index
    %61 = vector.load %arg2[%60, %c0_38] : memref<32x128xf32, #tpu.memory_space<vmem>>, vector<1x128xf32>
    %c6 = arith.constant 6 : index
    %c0_39 = arith.constant 0 : index
    %62 = vector.load %arg6[%c6, %c0_39] : memref<64x128xf32, #tpu.memory_space<vmem>>, vector<1x128xf32>
    tpu.vector_store %arg6[%c6, %c0_39], %61 {strides = array<i32>} : memref<64x128xf32, #tpu.memory_space<vmem>>, vector<1x128xf32>,
    %c8_i32_40 = arith.constant 8 : i32
    %63 = arith.muli %arg0, %c8_i32_40 : i32
    %c7_i32 = arith.constant 7 : i32
    %64 = arith.addi %63, %c7_i32 : i32
    %65 = arith.index_cast %64 : i32 to index
    %c0_41 = arith.constant 0 : index
    %66 = memref.load %arg1[%65, %c0_41] : memref<16x8xi32, #tpu.memory_space<smem>>
    %c0_i32_42 = arith.constant 0 : i32
    %c31_i32_43 = arith.constant 31 : i32
    %67 = arith.maxsi %c0_i32_42, %66 : i32
    %68 = arith.minsi %c31_i32_43, %67 : i32
    %69 = arith.index_cast %68 : i32 to index
    %c0_44 = arith.constant 0 : index
    %70 = vector.load %arg2[%69, %c0_44] : memref<32x128xf32, #tpu.memory_space<vmem>>, vector<1x128xf32>
    %c7 = arith.constant 7 : index
    %c0_45 = arith.constant 0 : index
    %71 = vector.load %arg6[%c7, %c0_45] : memref<64x128xf32, #tpu.memory_space<vmem>>, vector<1x128xf32>
    tpu.vector_store %arg6[%c7, %c0_45], %70 {strides = array<i32>} : memref<64x128xf32, #tpu.memory_space<vmem>>, vector<1x128xf32>,
    %c8_i32_46 = arith.constant 8 : i32
    %72 = arith.muli %arg0, %c8_i32_46 : i32
    %c0_i32_47 = arith.constant 0 : i32
    %73 = arith.addi %72, %c0_i32_47 : i32
    %74 = arith.index_cast %73 : i32 to index
    %c1_48 = arith.constant 1 : index
    %75 = memref.load %arg1[%74, %c1_48] : memref<16x8xi32, #tpu.memory_space<smem>>
    %c0_i32_49 = arith.constant 0 : i32
    %c31_i32_50 = arith.constant 31 : i32
    %76 = arith.maxsi %c0_i32_49, %75 : i32
    %77 = arith.minsi %c31_i32_50, %76 : i32
    %78 = arith.index_cast %77 : i32 to index
    %c0_51 = arith.constant 0 : index
    %79 = vector.load %arg2[%78, %c0_51] : memref<32x128xf32, #tpu.memory_space<vmem>>, vector<1x128xf32>
    %c8 = arith.constant 8 : index
    %c0_52 = arith.constant 0 : index
    %80 = vector.load %arg6[%c8, %c0_52] : memref<64x128xf32, #tpu.memory_space<vmem>>, vector<1x128xf32>
    tpu.vector_store %arg6[%c8, %c0_52], %79 {strides = array<i32>} : memref<64x128xf32, #tpu.memory_space<vmem>>, vector<1x128xf32>,
    %c8_i32_53 = arith.constant 8 : i32
    %81 = arith.muli %arg0, %c8_i32_53 : i32
    %c1_i32_54 = arith.constant 1 : i32
    %82 = arith.addi %81, %c1_i32_54 : i32
    %83 = arith.index_cast %82 : i32 to index
    %c1_55 = arith.constant 1 : index
    %84 = memref.load %arg1[%83, %c1_55] : memref<16x8xi32, #tpu.memory_space<smem>>
    %c0_i32_56 = arith.constant 0 : i32
    %c31_i32_57 = arith.constant 31 : i32
    %85 = arith.maxsi %c0_i32_56, %84 : i32
    %86 = arith.minsi %c31_i32_57, %85 : i32
    %87 = arith.index_cast %86 : i32 to index
    %c0_58 = arith.constant 0 : index
    %88 = vector.load %arg2[%87, %c0_58] : memref<32x128xf32, #tpu.memory_space<vmem>>, vector<1x128xf32>
    %c9 = arith.constant 9 : index
    %c0_59 = arith.constant 0 : index
    %89 = vector.load %arg6[%c9, %c0_59] : memref<64x128xf32, #tpu.memory_space<vmem>>, vector<1x128xf32>
    tpu.vector_store %arg6[%c9, %c0_59], %88 {strides = array<i32>} : memref<64x128xf32, #tpu.memory_space<vmem>>, vector<1x128xf32>,
    %c8_i32_60 = arith.constant 8 : i32
    %90 = arith.muli %arg0, %c8_i32_60 : i32
    %c2_i32_61 = arith.constant 2 : i32
    %91 = arith.addi %90, %c2_i32_61 : i32
    %92 = arith.index_cast %91 : i32 to index
    %c1_62 = arith.constant 1 : index
    %93 = memref.load %arg1[%92, %c1_62] : memref<16x8xi32, #tpu.memory_space<smem>>
    %c0_i32_63 = arith.constant 0 : i32
    %c31_i32_64 = arith.constant 31 : i32
    %94 = arith.maxsi %c0_i32_63, %93 : i32
    %95 = arith.minsi %c31_i32_64, %94 : i32
    %96 = arith.index_cast %95 : i32 to index
    %c0_65 = arith.constant 0 : index
    %97 = vector.load %arg2[%96, %c0_65] : memref<32x128xf32, #tpu.memory_space<vmem>>, vector<1x128xf32>
    %c10 = arith.constant 10 : index
    %c0_66 = arith.constant 0 : index
    %98 = vector.load %arg6[%c10, %c0_66] : memref<64x128xf32, #tpu.memory_space<vmem>>, vector<1x128xf32>
    tpu.vector_store %arg6[%c10, %c0_66], %97 {strides = array<i32>} : memref<64x128xf32, #tpu.memory_space<vmem>>, vector<1x128xf32>,
    %c8_i32_67 = arith.constant 8 : i32
    %99 = arith.muli %arg0, %c8_i32_67 : i32
    %c3_i32_68 = arith.constant 3 : i32
    %100 = arith.addi %99, %c3_i32_68 : i32
    %101 = arith.index_cast %100 : i32 to index
    %c1_69 = arith.constant 1 : index
    %102 = memref.load %arg1[%101, %c1_69] : memref<16x8xi32, #tpu.memory_space<smem>>
    %c0_i32_70 = arith.constant 0 : i32
    %c31_i32_71 = arith.constant 31 : i32
    %103 = arith.maxsi %c0_i32_70, %102 : i32
    %104 = arith.minsi %c31_i32_71, %103 : i32
    %105 = arith.index_cast %104 : i32 to index
    %c0_72 = arith.constant 0 : index
    %106 = vector.load %arg2[%105, %c0_72] : memref<32x128xf32, #tpu.memory_space<vmem>>, vector<1x128xf32>
    %c11 = arith.constant 11 : index
    %c0_73 = arith.constant 0 : index
    %107 = vector.load %arg6[%c11, %c0_73] : memref<64x128xf32, #tpu.memory_space<vmem>>, vector<1x128xf32>
    tpu.vector_store %arg6[%c11, %c0_73], %106 {strides = array<i32>} : memref<64x128xf32, #tpu.memory_space<vmem>>, vector<1x128xf32>,
    %c8_i32_74 = arith.constant 8 : i32
    %108 = arith.muli %arg0, %c8_i32_74 : i32
    %c4_i32_75 = arith.constant 4 : i32
    %109 = arith.addi %108, %c4_i32_75 : i32
    %110 = arith.index_cast %109 : i32 to index
    %c1_76 = arith.constant 1 : index
    %111 = memref.load %arg1[%110, %c1_76] : memref<16x8xi32, #tpu.memory_space<smem>>
    %c0_i32_77 = arith.constant 0 : i32
    %c31_i32_78 = arith.constant 31 : i32
    %112 = arith.maxsi %c0_i32_77, %111 : i32
    %113 = arith.minsi %c31_i32_78, %112 : i32
    %114 = arith.index_cast %113 : i32 to index
    %c0_79 = arith.constant 0 : index
    %115 = vector.load %arg2[%114, %c0_79] : memref<32x128xf32, #tpu.memory_space<vmem>>, vector<1x128xf32>
    %c12 = arith.constant 12 : index
    %c0_80 = arith.constant 0 : index
    %116 = vector.load %arg6[%c12, %c0_80] : memref<64x128xf32, #tpu.memory_space<vmem>>, vector<1x128xf32>
    tpu.vector_store %arg6[%c12, %c0_80], %115 {strides = array<i32>} : memref<64x128xf32, #tpu.memory_space<vmem>>, vector<1x128xf32>,
    %c8_i32_81 = arith.constant 8 : i32
    %117 = arith.muli %arg0, %c8_i32_81 : i32
    %c5_i32_82 = arith.constant 5 : i32
    %118 = arith.addi %117, %c5_i32_82 : i32
    %119 = arith.index_cast %118 : i32 to index
    %c1_83 = arith.constant 1 : index
    %120 = memref.load %arg1[%119, %c1_83] : memref<16x8xi32, #tpu.memory_space<smem>>
    %c0_i32_84 = arith.constant 0 : i32
    %c31_i32_85 = arith.constant 31 : i32
    %121 = arith.maxsi %c0_i32_84, %120 : i32
    %122 = arith.minsi %c31_i32_85, %121 : i32
    %123 = arith.index_cast %122 : i32 to index
    %c0_86 = arith.constant 0 : index
    %124 = vector.load %arg2[%123, %c0_86] : memref<32x128xf32, #tpu.memory_space<vmem>>, vector<1x128xf32>
    %c13 = arith.constant 13 : index
    %c0_87 = arith.constant 0 : index
    %125 = vector.load %arg6[%c13, %c0_87] : memref<64x128xf32, #tpu.memory_space<vmem>>, vector<1x128xf32>
    tpu.vector_store %arg6[%c13, %c0_87], %124 {strides = array<i32>} : memref<64x128xf32, #tpu.memory_space<vmem>>, vector<1x128xf32>,
    %c8_i32_88 = arith.constant 8 : i32
    %126 = arith.muli %arg0, %c8_i32_88 : i32
    %c6_i32_89 = arith.constant 6 : i32
    %127 = arith.addi %126, %c6_i32_89 : i32
    %128 = arith.index_cast %127 : i32 to index
    %c1_90 = arith.constant 1 : index
    %129 = memref.load %arg1[%128, %c1_90] : memref<16x8xi32, #tpu.memory_space<smem>>
    %c0_i32_91 = arith.constant 0 : i32
    %c31_i32_92 = arith.constant 31 : i32
    %130 = arith.maxsi %c0_i32_91, %129 : i32
    %131 = arith.minsi %c31_i32_92, %130 : i32
    %132 = arith.index_cast %131 : i32 to index
    %c0_93 = arith.constant 0 : index
    %133 = vector.load %arg2[%132, %c0_93] : memref<32x128xf32, #tpu.memory_space<vmem>>, vector<1x128xf32>
    %c14 = arith.constant 14 : index
    %c0_94 = arith.constant 0 : index
    %134 = vector.load %arg6[%c14, %c0_94] : memref<64x128xf32, #tpu.memory_space<vmem>>, vector<1x128xf32>
    tpu.vector_store %arg6[%c14, %c0_94], %133 {strides = array<i32>} : memref<64x128xf32, #tpu.memory_space<vmem>>, vector<1x128xf32>,
    %c8_i32_95 = arith.constant 8 : i32
    %135 = arith.muli %arg0, %c8_i32_95 : i32
    %c7_i32_96 = arith.constant 7 : i32
    %136 = arith.addi %135, %c7_i32_96 : i32
    %137 = arith.index_cast %136 : i32 to index
    %c1_97 = arith.constant 1 : index
    %138 = memref.load %arg1[%137, %c1_97] : memref<16x8xi32, #tpu.memory_space<smem>>
    %c0_i32_98 = arith.constant 0 : i32
    %c31_i32_99 = arith.constant 31 : i32
    %139 = arith.maxsi %c0_i32_98, %138 : i32
    %140 = arith.minsi %c31_i32_99, %139 : i32
    %141 = arith.index_cast %140 : i32 to index
    %c0_100 = arith.constant 0 : index
    %142 = vector.load %arg2[%141, %c0_100] : memref<32x128xf32, #tpu.memory_space<vmem>>, vector<1x128xf32>
    %c15 = arith.constant 15 : index
    %c0_101 = arith.constant 0 : index
    %143 = vector.load %arg6[%c15, %c0_101] : memref<64x128xf32, #tpu.memory_space<vmem>>, vector<1x128xf32>
    tpu.vector_store %arg6[%c15, %c0_101], %142 {strides = array<i32>} : memref<64x128xf32, #tpu.memory_space<vmem>>, vector<1x128xf32>,
    %c8_i32_102 = arith.constant 8 : i32
    %144 = arith.muli %arg0, %c8_i32_102 : i32
    %c0_i32_103 = arith.constant 0 : i32
    %145 = arith.addi %144, %c0_i32_103 : i32
    %146 = arith.index_cast %145 : i32 to index
    %c2_104 = arith.constant 2 : index
    %147 = memref.load %arg1[%146, %c2_104] : memref<16x8xi32, #tpu.memory_space<smem>>
    %c0_i32_105 = arith.constant 0 : i32
    %c31_i32_106 = arith.constant 31 : i32
    %148 = arith.maxsi %c0_i32_105, %147 : i32
    %149 = arith.minsi %c31_i32_106, %148 : i32
    %150 = arith.index_cast %149 : i32 to index
    %c0_107 = arith.constant 0 : index
    %151 = vector.load %arg2[%150, %c0_107] : memref<32x128xf32, #tpu.memory_space<vmem>>, vector<1x128xf32>
    %c16 = arith.constant 16 : index
    %c0_108 = arith.constant 0 : index
    %152 = vector.load %arg6[%c16, %c0_108] : memref<64x128xf32, #tpu.memory_space<vmem>>, vector<1x128xf32>
    tpu.vector_store %arg6[%c16, %c0_108], %151 {strides = array<i32>} : memref<64x128xf32, #tpu.memory_space<vmem>>, vector<1x128xf32>,
    %c8_i32_109 = arith.constant 8 : i32
    %153 = arith.muli %arg0, %c8_i32_109 : i32
    %c1_i32_110 = arith.constant 1 : i32
    %154 = arith.addi %153, %c1_i32_110 : i32
    %155 = arith.index_cast %154 : i32 to index
    %c2_111 = arith.constant 2 : index
    %156 = memref.load %arg1[%155, %c2_111] : memref<16x8xi32, #tpu.memory_space<smem>>
    %c0_i32_112 = arith.constant 0 : i32
    %c31_i32_113 = arith.constant 31 : i32
    %157 = arith.maxsi %c0_i32_112, %156 : i32
    %158 = arith.minsi %c31_i32_113, %157 : i32
    %159 = arith.index_cast %158 : i32 to index
    %c0_114 = arith.constant 0 : index
    %160 = vector.load %arg2[%159, %c0_114] : memref<32x128xf32, #tpu.memory_space<vmem>>, vector<1x128xf32>
    %c17 = arith.constant 17 : index
    %c0_115 = arith.constant 0 : index
    %161 = vector.load %arg6[%c17, %c0_115] : memref<64x128xf32, #tpu.memory_space<vmem>>, vector<1x128xf32>
    tpu.vector_store %arg6[%c17, %c0_115], %160 {strides = array<i32>} : memref<64x128xf32, #tpu.memory_space<vmem>>, vector<1x128xf32>,
    %c8_i32_116 = arith.constant 8 : i32
    %162 = arith.muli %arg0, %c8_i32_116 : i32
    %c2_i32_117 = arith.constant 2 : i32
    %163 = arith.addi %162, %c2_i32_117 : i32
    %164 = arith.index_cast %163 : i32 to index
    %c2_118 = arith.constant 2 : index
    %165 = memref.load %arg1[%164, %c2_118] : memref<16x8xi32, #tpu.memory_space<smem>>
    %c0_i32_119 = arith.constant 0 : i32
    %c31_i32_120 = arith.constant 31 : i32
    %166 = arith.maxsi %c0_i32_119, %165 : i32
    %167 = arith.minsi %c31_i32_120, %166 : i32
    %168 = arith.index_cast %167 : i32 to index
    %c0_121 = arith.constant 0 : index
    %169 = vector.load %arg2[%168, %c0_121] : memref<32x128xf32, #tpu.memory_space<vmem>>, vector<1x128xf32>
    %c18 = arith.constant 18 : index
    %c0_122 = arith.constant 0 : index
    %170 = vector.load %arg6[%c18, %c0_122] : memref<64x128xf32, #tpu.memory_space<vmem>>, vector<1x128xf32>
    tpu.vector_store %arg6[%c18, %c0_122], %169 {strides = array<i32>} : memref<64x128xf32, #tpu.memory_space<vmem>>, vector<1x128xf32>,
    %c8_i32_123 = arith.constant 8 : i32
    %171 = arith.muli %arg0, %c8_i32_123 : i32
    %c3_i32_124 = arith.constant 3 : i32
    %172 = arith.addi %171, %c3_i32_124 : i32
    %173 = arith.index_cast %172 : i32 to index
    %c2_125 = arith.constant 2 : index
    %174 = memref.load %arg1[%173, %c2_125] : memref<16x8xi32, #tpu.memory_space<smem>>
    %c0_i32_126 = arith.constant 0 : i32
    %c31_i32_127 = arith.constant 31 : i32
    %175 = arith.maxsi %c0_i32_126, %174 : i32
    %176 = arith.minsi %c31_i32_127, %175 : i32
    %177 = arith.index_cast %176 : i32 to index
    %c0_128 = arith.constant 0 : index
    %178 = vector.load %arg2[%177, %c0_128] : memref<32x128xf32, #tpu.memory_space<vmem>>, vector<1x128xf32>
    %c19 = arith.constant 19 : index
    %c0_129 = arith.constant 0 : index
    %179 = vector.load %arg6[%c19, %c0_129] : memref<64x128xf32, #tpu.memory_space<vmem>>, vector<1x128xf32>
    tpu.vector_store %arg6[%c19, %c0_129], %178 {strides = array<i32>} : memref<64x128xf32, #tpu.memory_space<vmem>>, vector<1x128xf32>,
    %c8_i32_130 = arith.constant 8 : i32
    %180 = arith.muli %arg0, %c8_i32_130 : i32
    %c4_i32_131 = arith.constant 4 : i32
    %181 = arith.addi %180, %c4_i32_131 : i32
    %182 = arith.index_cast %181 : i32 to index
    %c2_132 = arith.constant 2 : index
    %183 = memref.load %arg1[%182, %c2_132] : memref<16x8xi32, #tpu.memory_space<smem>>
    %c0_i32_133 = arith.constant 0 : i32
    %c31_i32_134 = arith.constant 31 : i32
    %184 = arith.maxsi %c0_i32_133, %183 : i32
    %185 = arith.minsi %c31_i32_134, %184 : i32
    %186 = arith.index_cast %185 : i32 to index
    %c0_135 = arith.constant 0 : index
    %187 = vector.load %arg2[%186, %c0_135] : memref<32x128xf32, #tpu.memory_space<vmem>>, vector<1x128xf32>
    %c20 = arith.constant 20 : index
    %c0_136 = arith.constant 0 : index
    %188 = vector.load %arg6[%c20, %c0_136] : memref<64x128xf32, #tpu.memory_space<vmem>>, vector<1x128xf32>
    tpu.vector_store %arg6[%c20, %c0_136], %187 {strides = array<i32>} : memref<64x128xf32, #tpu.memory_space<vmem>>, vector<1x128xf32>,
    %c8_i32_137 = arith.constant 8 : i32
    %189 = arith.muli %arg0, %c8_i32_137 : i32
    %c5_i32_138 = arith.constant 5 : i32
    %190 = arith.addi %189, %c5_i32_138 : i32
    %191 = arith.index_cast %190 : i32 to index
    %c2_139 = arith.constant 2 : index
    %192 = memref.load %arg1[%191, %c2_139] : memref<16x8xi32, #tpu.memory_space<smem>>
    %c0_i32_140 = arith.constant 0 : i32
    %c31_i32_141 = arith.constant 31 : i32
    %193 = arith.maxsi %c0_i32_140, %192 : i32
    %194 = arith.minsi %c31_i32_141, %193 : i32
    %195 = arith.index_cast %194 : i32 to index
    %c0_142 = arith.constant 0 : index
    %196 = vector.load %arg2[%195, %c0_142] : memref<32x128xf32, #tpu.memory_space<vmem>>, vector<1x128xf32>
    %c21 = arith.constant 21 : index
    %c0_143 = arith.constant 0 : index
    %197 = vector.load %arg6[%c21, %c0_143] : memref<64x128xf32, #tpu.memory_space<vmem>>, vector<1x128xf32>
    tpu.vector_store %arg6[%c21, %c0_143], %196 {strides = array<i32>} : memref<64x128xf32, #tpu.memory_space<vmem>>, vector<1x128xf32>,
    %c8_i32_144 = arith.constant 8 : i32
    %198 = arith.muli %arg0, %c8_i32_144 : i32
    %c6_i32_145 = arith.constant 6 : i32
    %199 = arith.addi %198, %c6_i32_145 : i32
    %200 = arith.index_cast %199 : i32 to index
    %c2_146 = arith.constant 2 : index
    %201 = memref.load %arg1[%200, %c2_146] : memref<16x8xi32, #tpu.memory_space<smem>>
    %c0_i32_147 = arith.constant 0 : i32
    %c31_i32_148 = arith.constant 31 : i32
    %202 = arith.maxsi %c0_i32_147, %201 : i32
    %203 = arith.minsi %c31_i32_148, %202 : i32
    %204 = arith.index_cast %203 : i32 to index
    %c0_149 = arith.constant 0 : index
    %205 = vector.load %arg2[%204, %c0_149] : memref<32x128xf32, #tpu.memory_space<vmem>>, vector<1x128xf32>
    %c22 = arith.constant 22 : index
    %c0_150 = arith.constant 0 : index
    %206 = vector.load %arg6[%c22, %c0_150] : memref<64x128xf32, #tpu.memory_space<vmem>>, vector<1x128xf32>
    tpu.vector_store %arg6[%c22, %c0_150], %205 {strides = array<i32>} : memref<64x128xf32, #tpu.memory_space<vmem>>, vector<1x128xf32>,
    %c8_i32_151 = arith.constant 8 : i32
    %207 = arith.muli %arg0, %c8_i32_151 : i32
    %c7_i32_152 = arith.constant 7 : i32
    %208 = arith.addi %207, %c7_i32_152 : i32
    %209 = arith.index_cast %208 : i32 to index
    %c2_153 = arith.constant 2 : index
    %210 = memref.load %arg1[%209, %c2_153] : memref<16x8xi32, #tpu.memory_space<smem>>
    %c0_i32_154 = arith.constant 0 : i32
    %c31_i32_155 = arith.constant 31 : i32
    %211 = arith.maxsi %c0_i32_154, %210 : i32
    %212 = arith.minsi %c31_i32_155, %211 : i32
    %213 = arith.index_cast %212 : i32 to index
    %c0_156 = arith.constant 0 : index
    %214 = vector.load %arg2[%213, %c0_156] : memref<32x128xf32, #tpu.memory_space<vmem>>, vector<1x128xf32>
    %c23 = arith.constant 23 : index
    %c0_157 = arith.constant 0 : index
    %215 = vector.load %arg6[%c23, %c0_157] : memref<64x128xf32, #tpu.memory_space<vmem>>, vector<1x128xf32>
    tpu.vector_store %arg6[%c23, %c0_157], %214 {strides = array<i32>} : memref<64x128xf32, #tpu.memory_space<vmem>>, vector<1x128xf32>,
    %c8_i32_158 = arith.constant 8 : i32
    %216 = arith.muli %arg0, %c8_i32_158 : i32
    %c0_i32_159 = arith.constant 0 : i32
    %217 = arith.addi %216, %c0_i32_159 : i32
    %218 = arith.index_cast %217 : i32 to index
    %c3_160 = arith.constant 3 : index
    %219 = memref.load %arg1[%218, %c3_160] : memref<16x8xi32, #tpu.memory_space<smem>>
    %c0_i32_161 = arith.constant 0 : i32
    %c31_i32_162 = arith.constant 31 : i32
    %220 = arith.maxsi %c0_i32_161, %219 : i32
    %221 = arith.minsi %c31_i32_162, %220 : i32
    %222 = arith.index_cast %221 : i32 to index
    %c0_163 = arith.constant 0 : index
    %223 = vector.load %arg2[%222, %c0_163] : memref<32x128xf32, #tpu.memory_space<vmem>>, vector<1x128xf32>
    %c24 = arith.constant 24 : index
    %c0_164 = arith.constant 0 : index
    %224 = vector.load %arg6[%c24, %c0_164] : memref<64x128xf32, #tpu.memory_space<vmem>>, vector<1x128xf32>
    tpu.vector_store %arg6[%c24, %c0_164], %223 {strides = array<i32>} : memref<64x128xf32, #tpu.memory_space<vmem>>, vector<1x128xf32>,
    %c8_i32_165 = arith.constant 8 : i32
    %225 = arith.muli %arg0, %c8_i32_165 : i32
    %c1_i32_166 = arith.constant 1 : i32
    %226 = arith.addi %225, %c1_i32_166 : i32
    %227 = arith.index_cast %226 : i32 to index
    %c3_167 = arith.constant 3 : index
    %228 = memref.load %arg1[%227, %c3_167] : memref<16x8xi32, #tpu.memory_space<smem>>
    %c0_i32_168 = arith.constant 0 : i32
    %c31_i32_169 = arith.constant 31 : i32
    %229 = arith.maxsi %c0_i32_168, %228 : i32
    %230 = arith.minsi %c31_i32_169, %229 : i32
    %231 = arith.index_cast %230 : i32 to index
    %c0_170 = arith.constant 0 : index
    %232 = vector.load %arg2[%231, %c0_170] : memref<32x128xf32, #tpu.memory_space<vmem>>, vector<1x128xf32>
    %c25 = arith.constant 25 : index
    %c0_171 = arith.constant 0 : index
    %233 = vector.load %arg6[%c25, %c0_171] : memref<64x128xf32, #tpu.memory_space<vmem>>, vector<1x128xf32>
    tpu.vector_store %arg6[%c25, %c0_171], %232 {strides = array<i32>} : memref<64x128xf32, #tpu.memory_space<vmem>>, vector<1x128xf32>,
    %c8_i32_172 = arith.constant 8 : i32
    %234 = arith.muli %arg0, %c8_i32_172 : i32
    %c2_i32_173 = arith.constant 2 : i32
    %235 = arith.addi %234, %c2_i32_173 : i32
    %236 = arith.index_cast %235 : i32 to index
    %c3_174 = arith.constant 3 : index
    %237 = memref.load %arg1[%236, %c3_174] : memref<16x8xi32, #tpu.memory_space<smem>>
    %c0_i32_175 = arith.constant 0 : i32
    %c31_i32_176 = arith.constant 31 : i32
    %238 = arith.maxsi %c0_i32_175, %237 : i32
    %239 = arith.minsi %c31_i32_176, %238 : i32
    %240 = arith.index_cast %239 : i32 to index
    %c0_177 = arith.constant 0 : index
    %241 = vector.load %arg2[%240, %c0_177] : memref<32x128xf32, #tpu.memory_space<vmem>>, vector<1x128xf32>
    %c26 = arith.constant 26 : index
    %c0_178 = arith.constant 0 : index
    %242 = vector.load %arg6[%c26, %c0_178] : memref<64x128xf32, #tpu.memory_space<vmem>>, vector<1x128xf32>
    tpu.vector_store %arg6[%c26, %c0_178], %241 {strides = array<i32>} : memref<64x128xf32, #tpu.memory_space<vmem>>, vector<1x128xf32>,
    %c8_i32_179 = arith.constant 8 : i32
    %243 = arith.muli %arg0, %c8_i32_179 : i32
    %c3_i32_180 = arith.constant 3 : i32
    %244 = arith.addi %243, %c3_i32_180 : i32
    %245 = arith.index_cast %244 : i32 to index
    %c3_181 = arith.constant 3 : index
    %246 = memref.load %arg1[%245, %c3_181] : memref<16x8xi32, #tpu.memory_space<smem>>
    %c0_i32_182 = arith.constant 0 : i32
    %c31_i32_183 = arith.constant 31 : i32
    %247 = arith.maxsi %c0_i32_182, %246 : i32
    %248 = arith.minsi %c31_i32_183, %247 : i32
    %249 = arith.index_cast %248 : i32 to index
    %c0_184 = arith.constant 0 : index
    %250 = vector.load %arg2[%249, %c0_184] : memref<32x128xf32, #tpu.memory_space<vmem>>, vector<1x128xf32>
    %c27 = arith.constant 27 : index
    %c0_185 = arith.constant 0 : index
    %251 = vector.load %arg6[%c27, %c0_185] : memref<64x128xf32, #tpu.memory_space<vmem>>, vector<1x128xf32>
    tpu.vector_store %arg6[%c27, %c0_185], %250 {strides = array<i32>} : memref<64x128xf32, #tpu.memory_space<vmem>>, vector<1x128xf32>,
    %c8_i32_186 = arith.constant 8 : i32
    %252 = arith.muli %arg0, %c8_i32_186 : i32
    %c4_i32_187 = arith.constant 4 : i32
    %253 = arith.addi %252, %c4_i32_187 : i32
    %254 = arith.index_cast %253 : i32 to index
    %c3_188 = arith.constant 3 : index
    %255 = memref.load %arg1[%254, %c3_188] : memref<16x8xi32, #tpu.memory_space<smem>>
    %c0_i32_189 = arith.constant 0 : i32
    %c31_i32_190 = arith.constant 31 : i32
    %256 = arith.maxsi %c0_i32_189, %255 : i32
    %257 = arith.minsi %c31_i32_190, %256 : i32
    %258 = arith.index_cast %257 : i32 to index
    %c0_191 = arith.constant 0 : index
    %259 = vector.load %arg2[%258, %c0_191] : memref<32x128xf32, #tpu.memory_space<vmem>>, vector<1x128xf32>
    %c28 = arith.constant 28 : index
    %c0_192 = arith.constant 0 : index
    %260 = vector.load %arg6[%c28, %c0_192] : memref<64x128xf32, #tpu.memory_space<vmem>>, vector<1x128xf32>
    tpu.vector_store %arg6[%c28, %c0_192], %259 {strides = array<i32>} : memref<64x128xf32, #tpu.memory_space<vmem>>, vector<1x128xf32>,
    %c8_i32_193 = arith.constant 8 : i32
    %261 = arith.muli %arg0, %c8_i32_193 : i32
    %c5_i32_194 = arith.constant 5 : i32
    %262 = arith.addi %261, %c5_i32_194 : i32
    %263 = arith.index_cast %262 : i32 to index
    %c3_195 = arith.constant 3 : index
    %264 = memref.load %arg1[%263, %c3_195] : memref<16x8xi32, #tpu.memory_space<smem>>
    %c0_i32_196 = arith.constant 0 : i32
    %c31_i32_197 = arith.constant 31 : i32
    %265 = arith.maxsi %c0_i32_196, %264 : i32
    %266 = arith.minsi %c31_i32_197, %265 : i32
    %267 = arith.index_cast %266 : i32 to index
    %c0_198 = arith.constant 0 : index
    %268 = vector.load %arg2[%267, %c0_198] : memref<32x128xf32, #tpu.memory_space<vmem>>, vector<1x128xf32>
    %c29 = arith.constant 29 : index
    %c0_199 = arith.constant 0 : index
    %269 = vector.load %arg6[%c29, %c0_199] : memref<64x128xf32, #tpu.memory_space<vmem>>, vector<1x128xf32>
    tpu.vector_store %arg6[%c29, %c0_199], %268 {strides = array<i32>} : memref<64x128xf32, #tpu.memory_space<vmem>>, vector<1x128xf32>,
    %c8_i32_200 = arith.constant 8 : i32
    %270 = arith.muli %arg0, %c8_i32_200 : i32
    %c6_i32_201 = arith.constant 6 : i32
    %271 = arith.addi %270, %c6_i32_201 : i32
    %272 = arith.index_cast %271 : i32 to index
    %c3_202 = arith.constant 3 : index
    %273 = memref.load %arg1[%272, %c3_202] : memref<16x8xi32, #tpu.memory_space<smem>>
    %c0_i32_203 = arith.constant 0 : i32
    %c31_i32_204 = arith.constant 31 : i32
    %274 = arith.maxsi %c0_i32_203, %273 : i32
    %275 = arith.minsi %c31_i32_204, %274 : i32
    %276 = arith.index_cast %275 : i32 to index
    %c0_205 = arith.constant 0 : index
    %277 = vector.load %arg2[%276, %c0_205] : memref<32x128xf32, #tpu.memory_space<vmem>>, vector<1x128xf32>
    %c30 = arith.constant 30 : index
    %c0_206 = arith.constant 0 : index
    %278 = vector.load %arg6[%c30, %c0_206] : memref<64x128xf32, #tpu.memory_space<vmem>>, vector<1x128xf32>
    tpu.vector_store %arg6[%c30, %c0_206], %277 {strides = array<i32>} : memref<64x128xf32, #tpu.memory_space<vmem>>, vector<1x128xf32>,
    %c8_i32_207 = arith.constant 8 : i32
    %279 = arith.muli %arg0, %c8_i32_207 : i32
    %c7_i32_208 = arith.constant 7 : i32
    %280 = arith.addi %279, %c7_i32_208 : i32
    %281 = arith.index_cast %280 : i32 to index
    %c3_209 = arith.constant 3 : index
    %282 = memref.load %arg1[%281, %c3_209] : memref<16x8xi32, #tpu.memory_space<smem>>
    %c0_i32_210 = arith.constant 0 : i32
    %c31_i32_211 = arith.constant 31 : i32
    %283 = arith.maxsi %c0_i32_210, %282 : i32
    %284 = arith.minsi %c31_i32_211, %283 : i32
    %285 = arith.index_cast %284 : i32 to index
    %c0_212 = arith.constant 0 : index
    %286 = vector.load %arg2[%285, %c0_212] : memref<32x128xf32, #tpu.memory_space<vmem>>, vector<1x128xf32>
    %c31 = arith.constant 31 : index
    %c0_213 = arith.constant 0 : index
    %287 = vector.load %arg6[%c31, %c0_213] : memref<64x128xf32, #tpu.memory_space<vmem>>, vector<1x128xf32>
    tpu.vector_store %arg6[%c31, %c0_213], %286 {strides = array<i32>} : memref<64x128xf32, #tpu.memory_space<vmem>>, vector<1x128xf32>,
    %c8_i32_214 = arith.constant 8 : i32
    %288 = arith.muli %arg0, %c8_i32_214 : i32
    %c0_i32_215 = arith.constant 0 : i32
    %289 = arith.addi %288, %c0_i32_215 : i32
    %290 = arith.index_cast %289 : i32 to index
    %c4_216 = arith.constant 4 : index
    %291 = memref.load %arg1[%290, %c4_216] : memref<16x8xi32, #tpu.memory_space<smem>>
    %c0_i32_217 = arith.constant 0 : i32
    %c31_i32_218 = arith.constant 31 : i32
    %292 = arith.maxsi %c0_i32_217, %291 : i32
    %293 = arith.minsi %c31_i32_218, %292 : i32
    %294 = arith.index_cast %293 : i32 to index
    %c0_219 = arith.constant 0 : index
    %295 = vector.load %arg2[%294, %c0_219] : memref<32x128xf32, #tpu.memory_space<vmem>>, vector<1x128xf32>
    %c32 = arith.constant 32 : index
    %c0_220 = arith.constant 0 : index
    %296 = vector.load %arg6[%c32, %c0_220] : memref<64x128xf32, #tpu.memory_space<vmem>>, vector<1x128xf32>
    tpu.vector_store %arg6[%c32, %c0_220], %295 {strides = array<i32>} : memref<64x128xf32, #tpu.memory_space<vmem>>, vector<1x128xf32>,
    %c8_i32_221 = arith.constant 8 : i32
    %297 = arith.muli %arg0, %c8_i32_221 : i32
    %c1_i32_222 = arith.constant 1 : i32
    %298 = arith.addi %297, %c1_i32_222 : i32
    %299 = arith.index_cast %298 : i32 to index
    %c4_223 = arith.constant 4 : index
    %300 = memref.load %arg1[%299, %c4_223] : memref<16x8xi32, #tpu.memory_space<smem>>
    %c0_i32_224 = arith.constant 0 : i32
    %c31_i32_225 = arith.constant 31 : i32
    %301 = arith.maxsi %c0_i32_224, %300 : i32
    %302 = arith.minsi %c31_i32_225, %301 : i32
    %303 = arith.index_cast %302 : i32 to index
    %c0_226 = arith.constant 0 : index
    %304 = vector.load %arg2[%303, %c0_226] : memref<32x128xf32, #tpu.memory_space<vmem>>, vector<1x128xf32>
    %c33 = arith.constant 33 : index
    %c0_227 = arith.constant 0 : index
    %305 = vector.load %arg6[%c33, %c0_227] : memref<64x128xf32, #tpu.memory_space<vmem>>, vector<1x128xf32>
    tpu.vector_store %arg6[%c33, %c0_227], %304 {strides = array<i32>} : memref<64x128xf32, #tpu.memory_space<vmem>>, vector<1x128xf32>,
    %c8_i32_228 = arith.constant 8 : i32
    %306 = arith.muli %arg0, %c8_i32_228 : i32
    %c2_i32_229 = arith.constant 2 : i32
    %307 = arith.addi %306, %c2_i32_229 : i32
    %308 = arith.index_cast %307 : i32 to index
    %c4_230 = arith.constant 4 : index
    %309 = memref.load %arg1[%308, %c4_230] : memref<16x8xi32, #tpu.memory_space<smem>>
    %c0_i32_231 = arith.constant 0 : i32
    %c31_i32_232 = arith.constant 31 : i32
    %310 = arith.maxsi %c0_i32_231, %309 : i32
    %311 = arith.minsi %c31_i32_232, %310 : i32
    %312 = arith.index_cast %311 : i32 to index
    %c0_233 = arith.constant 0 : index
    %313 = vector.load %arg2[%312, %c0_233] : memref<32x128xf32, #tpu.memory_space<vmem>>, vector<1x128xf32>
    %c34 = arith.constant 34 : index
    %c0_234 = arith.constant 0 : index
    %314 = vector.load %arg6[%c34, %c0_234] : memref<64x128xf32, #tpu.memory_space<vmem>>, vector<1x128xf32>
    tpu.vector_store %arg6[%c34, %c0_234], %313 {strides = array<i32>} : memref<64x128xf32, #tpu.memory_space<vmem>>, vector<1x128xf32>,
    %c8_i32_235 = arith.constant 8 : i32
    %315 = arith.muli %arg0, %c8_i32_235 : i32
    %c3_i32_236 = arith.constant 3 : i32
    %316 = arith.addi %315, %c3_i32_236 : i32
    %317 = arith.index_cast %316 : i32 to index
    %c4_237 = arith.constant 4 : index
    %318 = memref.load %arg1[%317, %c4_237] : memref<16x8xi32, #tpu.memory_space<smem>>
    %c0_i32_238 = arith.constant 0 : i32
    %c31_i32_239 = arith.constant 31 : i32
    %319 = arith.maxsi %c0_i32_238, %318 : i32
    %320 = arith.minsi %c31_i32_239, %319 : i32
    %321 = arith.index_cast %320 : i32 to index
    %c0_240 = arith.constant 0 : index
    %322 = vector.load %arg2[%321, %c0_240] : memref<32x128xf32, #tpu.memory_space<vmem>>, vector<1x128xf32>
    %c35 = arith.constant 35 : index
    %c0_241 = arith.constant 0 : index
    %323 = vector.load %arg6[%c35, %c0_241] : memref<64x128xf32, #tpu.memory_space<vmem>>, vector<1x128xf32>
    tpu.vector_store %arg6[%c35, %c0_241], %322 {strides = array<i32>} : memref<64x128xf32, #tpu.memory_space<vmem>>, vector<1x128xf32>,
    %c8_i32_242 = arith.constant 8 : i32
    %324 = arith.muli %arg0, %c8_i32_242 : i32
    %c4_i32_243 = arith.constant 4 : i32
    %325 = arith.addi %324, %c4_i32_243 : i32
    %326 = arith.index_cast %325 : i32 to index
    %c4_244 = arith.constant 4 : index
    %327 = memref.load %arg1[%326, %c4_244] : memref<16x8xi32, #tpu.memory_space<smem>>
    %c0_i32_245 = arith.constant 0 : i32
    %c31_i32_246 = arith.constant 31 : i32
    %328 = arith.maxsi %c0_i32_245, %327 : i32
    %329 = arith.minsi %c31_i32_246, %328 : i32
    %330 = arith.index_cast %329 : i32 to index
    %c0_247 = arith.constant 0 : index
    %331 = vector.load %arg2[%330, %c0_247] : memref<32x128xf32, #tpu.memory_space<vmem>>, vector<1x128xf32>
    %c36 = arith.constant 36 : index
    %c0_248 = arith.constant 0 : index
    %332 = vector.load %arg6[%c36, %c0_248] : memref<64x128xf32, #tpu.memory_space<vmem>>, vector<1x128xf32>
    tpu.vector_store %arg6[%c36, %c0_248], %331 {strides = array<i32>} : memref<64x128xf32, #tpu.memory_space<vmem>>, vector<1x128xf32>,
    %c8_i32_249 = arith.constant 8 : i32
    %333 = arith.muli %arg0, %c8_i32_249 : i32
    %c5_i32_250 = arith.constant 5 : i32
    %334 = arith.addi %333, %c5_i32_250 : i32
    %335 = arith.index_cast %334 : i32 to index
    %c4_251 = arith.constant 4 : index
    %336 = memref.load %arg1[%335, %c4_251] : memref<16x8xi32, #tpu.memory_space<smem>>
    %c0_i32_252 = arith.constant 0 : i32
    %c31_i32_253 = arith.constant 31 : i32
    %337 = arith.maxsi %c0_i32_252, %336 : i32
    %338 = arith.minsi %c31_i32_253, %337 : i32
    %339 = arith.index_cast %338 : i32 to index
    %c0_254 = arith.constant 0 : index
    %340 = vector.load %arg2[%339, %c0_254] : memref<32x128xf32, #tpu.memory_space<vmem>>, vector<1x128xf32>
    %c37 = arith.constant 37 : index
    %c0_255 = arith.constant 0 : index
    %341 = vector.load %arg6[%c37, %c0_255] : memref<64x128xf32, #tpu.memory_space<vmem>>, vector<1x128xf32>
    tpu.vector_store %arg6[%c37, %c0_255], %340 {strides = array<i32>} : memref<64x128xf32, #tpu.memory_space<vmem>>, vector<1x128xf32>,
    %c8_i32_256 = arith.constant 8 : i32
    %342 = arith.muli %arg0, %c8_i32_256 : i32
    %c6_i32_257 = arith.constant 6 : i32
    %343 = arith.addi %342, %c6_i32_257 : i32
    %344 = arith.index_cast %343 : i32 to index
    %c4_258 = arith.constant 4 : index
    %345 = memref.load %arg1[%344, %c4_258] : memref<16x8xi32, #tpu.memory_space<smem>>
    %c0_i32_259 = arith.constant 0 : i32
    %c31_i32_260 = arith.constant 31 : i32
    %346 = arith.maxsi %c0_i32_259, %345 : i32
    %347 = arith.minsi %c31_i32_260, %346 : i32
    %348 = arith.index_cast %347 : i32 to index
    %c0_261 = arith.constant 0 : index
    %349 = vector.load %arg2[%348, %c0_261] : memref<32x128xf32, #tpu.memory_space<vmem>>, vector<1x128xf32>
    %c38 = arith.constant 38 : index
    %c0_262 = arith.constant 0 : index
    %350 = vector.load %arg6[%c38, %c0_262] : memref<64x128xf32, #tpu.memory_space<vmem>>, vector<1x128xf32>
    tpu.vector_store %arg6[%c38, %c0_262], %349 {strides = array<i32>} : memref<64x128xf32, #tpu.memory_space<vmem>>, vector<1x128xf32>,
    %c8_i32_263 = arith.constant 8 : i32
    %351 = arith.muli %arg0, %c8_i32_263 : i32
    %c7_i32_264 = arith.constant 7 : i32
    %352 = arith.addi %351, %c7_i32_264 : i32
    %353 = arith.index_cast %352 : i32 to index
    %c4_265 = arith.constant 4 : index
    %354 = memref.load %arg1[%353, %c4_265] : memref<16x8xi32, #tpu.memory_space<smem>>
    %c0_i32_266 = arith.constant 0 : i32
    %c31_i32_267 = arith.constant 31 : i32
    %355 = arith.maxsi %c0_i32_266, %354 : i32
    %356 = arith.minsi %c31_i32_267, %355 : i32
    %357 = arith.index_cast %356 : i32 to index
    %c0_268 = arith.constant 0 : index
    %358 = vector.load %arg2[%357, %c0_268] : memref<32x128xf32, #tpu.memory_space<vmem>>, vector<1x128xf32>
    %c39 = arith.constant 39 : index
    %c0_269 = arith.constant 0 : index
    %359 = vector.load %arg6[%c39, %c0_269] : memref<64x128xf32, #tpu.memory_space<vmem>>, vector<1x128xf32>
    tpu.vector_store %arg6[%c39, %c0_269], %358 {strides = array<i32>} : memref<64x128xf32, #tpu.memory_space<vmem>>, vector<1x128xf32>,
    %c8_i32_270 = arith.constant 8 : i32
    %360 = arith.muli %arg0, %c8_i32_270 : i32
    %c0_i32_271 = arith.constant 0 : i32
    %361 = arith.addi %360, %c0_i32_271 : i32
    %362 = arith.index_cast %361 : i32 to index
    %c5_272 = arith.constant 5 : index
    %363 = memref.load %arg1[%362, %c5_272] : memref<16x8xi32, #tpu.memory_space<smem>>
    %c0_i32_273 = arith.constant 0 : i32
    %c31_i32_274 = arith.constant 31 : i32
    %364 = arith.maxsi %c0_i32_273, %363 : i32
    %365 = arith.minsi %c31_i32_274, %364 : i32
    %366 = arith.index_cast %365 : i32 to index
    %c0_275 = arith.constant 0 : index
    %367 = vector.load %arg2[%366, %c0_275] : memref<32x128xf32, #tpu.memory_space<vmem>>, vector<1x128xf32>
    %c40 = arith.constant 40 : index
    %c0_276 = arith.constant 0 : index
    %368 = vector.load %arg6[%c40, %c0_276] : memref<64x128xf32, #tpu.memory_space<vmem>>, vector<1x128xf32>
    tpu.vector_store %arg6[%c40, %c0_276], %367 {strides = array<i32>} : memref<64x128xf32, #tpu.memory_space<vmem>>, vector<1x128xf32>,
    %c8_i32_277 = arith.constant 8 : i32
    %369 = arith.muli %arg0, %c8_i32_277 : i32
    %c1_i32_278 = arith.constant 1 : i32
    %370 = arith.addi %369, %c1_i32_278 : i32
    %371 = arith.index_cast %370 : i32 to index
    %c5_279 = arith.constant 5 : index
    %372 = memref.load %arg1[%371, %c5_279] : memref<16x8xi32, #tpu.memory_space<smem>>
    %c0_i32_280 = arith.constant 0 : i32
    %c31_i32_281 = arith.constant 31 : i32
    %373 = arith.maxsi %c0_i32_280, %372 : i32
    %374 = arith.minsi %c31_i32_281, %373 : i32
    %375 = arith.index_cast %374 : i32 to index
    %c0_282 = arith.constant 0 : index
    %376 = vector.load %arg2[%375, %c0_282] : memref<32x128xf32, #tpu.memory_space<vmem>>, vector<1x128xf32>
    %c41 = arith.constant 41 : index
    %c0_283 = arith.constant 0 : index
    %377 = vector.load %arg6[%c41, %c0_283] : memref<64x128xf32, #tpu.memory_space<vmem>>, vector<1x128xf32>
    tpu.vector_store %arg6[%c41, %c0_283], %376 {strides = array<i32>} : memref<64x128xf32, #tpu.memory_space<vmem>>, vector<1x128xf32>,
    %c8_i32_284 = arith.constant 8 : i32
    %378 = arith.muli %arg0, %c8_i32_284 : i32
    %c2_i32_285 = arith.constant 2 : i32
    %379 = arith.addi %378, %c2_i32_285 : i32
    %380 = arith.index_cast %379 : i32 to index
    %c5_286 = arith.constant 5 : index
    %381 = memref.load %arg1[%380, %c5_286] : memref<16x8xi32, #tpu.memory_space<smem>>
    %c0_i32_287 = arith.constant 0 : i32
    %c31_i32_288 = arith.constant 31 : i32
    %382 = arith.maxsi %c0_i32_287, %381 : i32
    %383 = arith.minsi %c31_i32_288, %382 : i32
    %384 = arith.index_cast %383 : i32 to index
    %c0_289 = arith.constant 0 : index
    %385 = vector.load %arg2[%384, %c0_289] : memref<32x128xf32, #tpu.memory_space<vmem>>, vector<1x128xf32>
    %c42 = arith.constant 42 : index
    %c0_290 = arith.constant 0 : index
    %386 = vector.load %arg6[%c42, %c0_290] : memref<64x128xf32, #tpu.memory_space<vmem>>, vector<1x128xf32>
    tpu.vector_store %arg6[%c42, %c0_290], %385 {strides = array<i32>} : memref<64x128xf32, #tpu.memory_space<vmem>>, vector<1x128xf32>,
    %c8_i32_291 = arith.constant 8 : i32
    %387 = arith.muli %arg0, %c8_i32_291 : i32
    %c3_i32_292 = arith.constant 3 : i32
    %388 = arith.addi %387, %c3_i32_292 : i32
    %389 = arith.index_cast %388 : i32 to index
    %c5_293 = arith.constant 5 : index
    %390 = memref.load %arg1[%389, %c5_293] : memref<16x8xi32, #tpu.memory_space<smem>>
    %c0_i32_294 = arith.constant 0 : i32
    %c31_i32_295 = arith.constant 31 : i32
    %391 = arith.maxsi %c0_i32_294, %390 : i32
    %392 = arith.minsi %c31_i32_295, %391 : i32
    %393 = arith.index_cast %392 : i32 to index
    %c0_296 = arith.constant 0 : index
    %394 = vector.load %arg2[%393, %c0_296] : memref<32x128xf32, #tpu.memory_space<vmem>>, vector<1x128xf32>
    %c43 = arith.constant 43 : index
    %c0_297 = arith.constant 0 : index
    %395 = vector.load %arg6[%c43, %c0_297] : memref<64x128xf32, #tpu.memory_space<vmem>>, vector<1x128xf32>
    tpu.vector_store %arg6[%c43, %c0_297], %394 {strides = array<i32>} : memref<64x128xf32, #tpu.memory_space<vmem>>, vector<1x128xf32>,
    %c8_i32_298 = arith.constant 8 : i32
    %396 = arith.muli %arg0, %c8_i32_298 : i32
    %c4_i32_299 = arith.constant 4 : i32
    %397 = arith.addi %396, %c4_i32_299 : i32
    %398 = arith.index_cast %397 : i32 to index
    %c5_300 = arith.constant 5 : index
    %399 = memref.load %arg1[%398, %c5_300] : memref<16x8xi32, #tpu.memory_space<smem>>
    %c0_i32_301 = arith.constant 0 : i32
    %c31_i32_302 = arith.constant 31 : i32
    %400 = arith.maxsi %c0_i32_301, %399 : i32
    %401 = arith.minsi %c31_i32_302, %400 : i32
    %402 = arith.index_cast %401 : i32 to index
    %c0_303 = arith.constant 0 : index
    %403 = vector.load %arg2[%402, %c0_303] : memref<32x128xf32, #tpu.memory_space<vmem>>, vector<1x128xf32>
    %c44 = arith.constant 44 : index
    %c0_304 = arith.constant 0 : index
    %404 = vector.load %arg6[%c44, %c0_304] : memref<64x128xf32, #tpu.memory_space<vmem>>, vector<1x128xf32>
    tpu.vector_store %arg6[%c44, %c0_304], %403 {strides = array<i32>} : memref<64x128xf32, #tpu.memory_space<vmem>>, vector<1x128xf32>,
    %c8_i32_305 = arith.constant 8 : i32
    %405 = arith.muli %arg0, %c8_i32_305 : i32
    %c5_i32_306 = arith.constant 5 : i32
    %406 = arith.addi %405, %c5_i32_306 : i32
    %407 = arith.index_cast %406 : i32 to index
    %c5_307 = arith.constant 5 : index
    %408 = memref.load %arg1[%407, %c5_307] : memref<16x8xi32, #tpu.memory_space<smem>>
    %c0_i32_308 = arith.constant 0 : i32
    %c31_i32_309 = arith.constant 31 : i32
    %409 = arith.maxsi %c0_i32_308, %408 : i32
    %410 = arith.minsi %c31_i32_309, %409 : i32
    %411 = arith.index_cast %410 : i32 to index
    %c0_310 = arith.constant 0 : index
    %412 = vector.load %arg2[%411, %c0_310] : memref<32x128xf32, #tpu.memory_space<vmem>>, vector<1x128xf32>
    %c45 = arith.constant 45 : index
    %c0_311 = arith.constant 0 : index
    %413 = vector.load %arg6[%c45, %c0_311] : memref<64x128xf32, #tpu.memory_space<vmem>>, vector<1x128xf32>
    tpu.vector_store %arg6[%c45, %c0_311], %412 {strides = array<i32>} : memref<64x128xf32, #tpu.memory_space<vmem>>, vector<1x128xf32>,
    %c8_i32_312 = arith.constant 8 : i32
    %414 = arith.muli %arg0, %c8_i32_312 : i32
    %c6_i32_313 = arith.constant 6 : i32
    %415 = arith.addi %414, %c6_i32_313 : i32
    %416 = arith.index_cast %415 : i32 to index
    %c5_314 = arith.constant 5 : index
    %417 = memref.load %arg1[%416, %c5_314] : memref<16x8xi32, #tpu.memory_space<smem>>
    %c0_i32_315 = arith.constant 0 : i32
    %c31_i32_316 = arith.constant 31 : i32
    %418 = arith.maxsi %c0_i32_315, %417 : i32
    %419 = arith.minsi %c31_i32_316, %418 : i32
    %420 = arith.index_cast %419 : i32 to index
    %c0_317 = arith.constant 0 : index
    %421 = vector.load %arg2[%420, %c0_317] : memref<32x128xf32, #tpu.memory_space<vmem>>, vector<1x128xf32>
    %c46 = arith.constant 46 : index
    %c0_318 = arith.constant 0 : index
    %422 = vector.load %arg6[%c46, %c0_318] : memref<64x128xf32, #tpu.memory_space<vmem>>, vector<1x128xf32>
    tpu.vector_store %arg6[%c46, %c0_318], %421 {strides = array<i32>} : memref<64x128xf32, #tpu.memory_space<vmem>>, vector<1x128xf32>,
    %c8_i32_319 = arith.constant 8 : i32
    %423 = arith.muli %arg0, %c8_i32_319 : i32
    %c7_i32_320 = arith.constant 7 : i32
    %424 = arith.addi %423, %c7_i32_320 : i32
    %425 = arith.index_cast %424 : i32 to index
    %c5_321 = arith.constant 5 : index
    %426 = memref.load %arg1[%425, %c5_321] : memref<16x8xi32, #tpu.memory_space<smem>>
    %c0_i32_322 = arith.constant 0 : i32
    %c31_i32_323 = arith.constant 31 : i32
    %427 = arith.maxsi %c0_i32_322, %426 : i32
    %428 = arith.minsi %c31_i32_323, %427 : i32
    %429 = arith.index_cast %428 : i32 to index
    %c0_324 = arith.constant 0 : index
    %430 = vector.load %arg2[%429, %c0_324] : memref<32x128xf32, #tpu.memory_space<vmem>>, vector<1x128xf32>
    %c47 = arith.constant 47 : index
    %c0_325 = arith.constant 0 : index
    %431 = vector.load %arg6[%c47, %c0_325] : memref<64x128xf32, #tpu.memory_space<vmem>>, vector<1x128xf32>
    tpu.vector_store %arg6[%c47, %c0_325], %430 {strides = array<i32>} : memref<64x128xf32, #tpu.memory_space<vmem>>, vector<1x128xf32>,
    %c8_i32_326 = arith.constant 8 : i32
    %432 = arith.muli %arg0, %c8_i32_326 : i32
    %c0_i32_327 = arith.constant 0 : i32
    %433 = arith.addi %432, %c0_i32_327 : i32
    %434 = arith.index_cast %433 : i32 to index
    %c6_328 = arith.constant 6 : index
    %435 = memref.load %arg1[%434, %c6_328] : memref<16x8xi32, #tpu.memory_space<smem>>
    %c0_i32_329 = arith.constant 0 : i32
    %c31_i32_330 = arith.constant 31 : i32
    %436 = arith.maxsi %c0_i32_329, %435 : i32
    %437 = arith.minsi %c31_i32_330, %436 : i32
    %438 = arith.index_cast %437 : i32 to index
    %c0_331 = arith.constant 0 : index
    %439 = vector.load %arg2[%438, %c0_331] : memref<32x128xf32, #tpu.memory_space<vmem>>, vector<1x128xf32>
    %c48 = arith.constant 48 : index
    %c0_332 = arith.constant 0 : index
    %440 = vector.load %arg6[%c48, %c0_332] : memref<64x128xf32, #tpu.memory_space<vmem>>, vector<1x128xf32>
    tpu.vector_store %arg6[%c48, %c0_332], %439 {strides = array<i32>} : memref<64x128xf32, #tpu.memory_space<vmem>>, vector<1x128xf32>,
    %c8_i32_333 = arith.constant 8 : i32
    %441 = arith.muli %arg0, %c8_i32_333 : i32
    %c1_i32_334 = arith.constant 1 : i32
    %442 = arith.addi %441, %c1_i32_334 : i32
    %443 = arith.index_cast %442 : i32 to index
    %c6_335 = arith.constant 6 : index
    %444 = memref.load %arg1[%443, %c6_335] : memref<16x8xi32, #tpu.memory_space<smem>>
    %c0_i32_336 = arith.constant 0 : i32
    %c31_i32_337 = arith.constant 31 : i32
    %445 = arith.maxsi %c0_i32_336, %444 : i32
    %446 = arith.minsi %c31_i32_337, %445 : i32
    %447 = arith.index_cast %446 : i32 to index
    %c0_338 = arith.constant 0 : index
    %448 = vector.load %arg2[%447, %c0_338] : memref<32x128xf32, #tpu.memory_space<vmem>>, vector<1x128xf32>
    %c49 = arith.constant 49 : index
    %c0_339 = arith.constant 0 : index
    %449 = vector.load %arg6[%c49, %c0_339] : memref<64x128xf32, #tpu.memory_space<vmem>>, vector<1x128xf32>
    tpu.vector_store %arg6[%c49, %c0_339], %448 {strides = array<i32>} : memref<64x128xf32, #tpu.memory_space<vmem>>, vector<1x128xf32>,
    %c8_i32_340 = arith.constant 8 : i32
    %450 = arith.muli %arg0, %c8_i32_340 : i32
    %c2_i32_341 = arith.constant 2 : i32
    %451 = arith.addi %450, %c2_i32_341 : i32
    %452 = arith.index_cast %451 : i32 to index
    %c6_342 = arith.constant 6 : index
    %453 = memref.load %arg1[%452, %c6_342] : memref<16x8xi32, #tpu.memory_space<smem>>
    %c0_i32_343 = arith.constant 0 : i32
    %c31_i32_344 = arith.constant 31 : i32
    %454 = arith.maxsi %c0_i32_343, %453 : i32
    %455 = arith.minsi %c31_i32_344, %454 : i32
    %456 = arith.index_cast %455 : i32 to index
    %c0_345 = arith.constant 0 : index
    %457 = vector.load %arg2[%456, %c0_345] : memref<32x128xf32, #tpu.memory_space<vmem>>, vector<1x128xf32>
    %c50 = arith.constant 50 : index
    %c0_346 = arith.constant 0 : index
    %458 = vector.load %arg6[%c50, %c0_346] : memref<64x128xf32, #tpu.memory_space<vmem>>, vector<1x128xf32>
    tpu.vector_store %arg6[%c50, %c0_346], %457 {strides = array<i32>} : memref<64x128xf32, #tpu.memory_space<vmem>>, vector<1x128xf32>,
    %c8_i32_347 = arith.constant 8 : i32
    %459 = arith.muli %arg0, %c8_i32_347 : i32
    %c3_i32_348 = arith.constant 3 : i32
    %460 = arith.addi %459, %c3_i32_348 : i32
    %461 = arith.index_cast %460 : i32 to index
    %c6_349 = arith.constant 6 : index
    %462 = memref.load %arg1[%461, %c6_349] : memref<16x8xi32, #tpu.memory_space<smem>>
    %c0_i32_350 = arith.constant 0 : i32
    %c31_i32_351 = arith.constant 31 : i32
    %463 = arith.maxsi %c0_i32_350, %462 : i32
    %464 = arith.minsi %c31_i32_351, %463 : i32
    %465 = arith.index_cast %464 : i32 to index
    %c0_352 = arith.constant 0 : index
    %466 = vector.load %arg2[%465, %c0_352] : memref<32x128xf32, #tpu.memory_space<vmem>>, vector<1x128xf32>
    %c51 = arith.constant 51 : index
    %c0_353 = arith.constant 0 : index
    %467 = vector.load %arg6[%c51, %c0_353] : memref<64x128xf32, #tpu.memory_space<vmem>>, vector<1x128xf32>
    tpu.vector_store %arg6[%c51, %c0_353], %466 {strides = array<i32>} : memref<64x128xf32, #tpu.memory_space<vmem>>, vector<1x128xf32>,
    %c8_i32_354 = arith.constant 8 : i32
    %468 = arith.muli %arg0, %c8_i32_354 : i32
    %c4_i32_355 = arith.constant 4 : i32
    %469 = arith.addi %468, %c4_i32_355 : i32
    %470 = arith.index_cast %469 : i32 to index
    %c6_356 = arith.constant 6 : index
    %471 = memref.load %arg1[%470, %c6_356] : memref<16x8xi32, #tpu.memory_space<smem>>
    %c0_i32_357 = arith.constant 0 : i32
    %c31_i32_358 = arith.constant 31 : i32
    %472 = arith.maxsi %c0_i32_357, %471 : i32
    %473 = arith.minsi %c31_i32_358, %472 : i32
    %474 = arith.index_cast %473 : i32 to index
    %c0_359 = arith.constant 0 : index
    %475 = vector.load %arg2[%474, %c0_359] : memref<32x128xf32, #tpu.memory_space<vmem>>, vector<1x128xf32>
    %c52 = arith.constant 52 : index
    %c0_360 = arith.constant 0 : index
    %476 = vector.load %arg6[%c52, %c0_360] : memref<64x128xf32, #tpu.memory_space<vmem>>, vector<1x128xf32>
    tpu.vector_store %arg6[%c52, %c0_360], %475 {strides = array<i32>} : memref<64x128xf32, #tpu.memory_space<vmem>>, vector<1x128xf32>,
    %c8_i32_361 = arith.constant 8 : i32
    %477 = arith.muli %arg0, %c8_i32_361 : i32
    %c5_i32_362 = arith.constant 5 : i32
    %478 = arith.addi %477, %c5_i32_362 : i32
    %479 = arith.index_cast %478 : i32 to index
    %c6_363 = arith.constant 6 : index
    %480 = memref.load %arg1[%479, %c6_363] : memref<16x8xi32, #tpu.memory_space<smem>>
    %c0_i32_364 = arith.constant 0 : i32
    %c31_i32_365 = arith.constant 31 : i32
    %481 = arith.maxsi %c0_i32_364, %480 : i32
    %482 = arith.minsi %c31_i32_365, %481 : i32
    %483 = arith.index_cast %482 : i32 to index
    %c0_366 = arith.constant 0 : index
    %484 = vector.load %arg2[%483, %c0_366] : memref<32x128xf32, #tpu.memory_space<vmem>>, vector<1x128xf32>
    %c53 = arith.constant 53 : index
    %c0_367 = arith.constant 0 : index
    %485 = vector.load %arg6[%c53, %c0_367] : memref<64x128xf32, #tpu.memory_space<vmem>>, vector<1x128xf32>
    tpu.vector_store %arg6[%c53, %c0_367], %484 {strides = array<i32>} : memref<64x128xf32, #tpu.memory_space<vmem>>, vector<1x128xf32>,
    %c8_i32_368 = arith.constant 8 : i32
    %486 = arith.muli %arg0, %c8_i32_368 : i32
    %c6_i32_369 = arith.constant 6 : i32
    %487 = arith.addi %486, %c6_i32_369 : i32
    %488 = arith.index_cast %487 : i32 to index
    %c6_370 = arith.constant 6 : index
    %489 = memref.load %arg1[%488, %c6_370] : memref<16x8xi32, #tpu.memory_space<smem>>
    %c0_i32_371 = arith.constant 0 : i32
    %c31_i32_372 = arith.constant 31 : i32
    %490 = arith.maxsi %c0_i32_371, %489 : i32
    %491 = arith.minsi %c31_i32_372, %490 : i32
    %492 = arith.index_cast %491 : i32 to index
    %c0_373 = arith.constant 0 : index
    %493 = vector.load %arg2[%492, %c0_373] : memref<32x128xf32, #tpu.memory_space<vmem>>, vector<1x128xf32>
    %c54 = arith.constant 54 : index
    %c0_374 = arith.constant 0 : index
    %494 = vector.load %arg6[%c54, %c0_374] : memref<64x128xf32, #tpu.memory_space<vmem>>, vector<1x128xf32>
    tpu.vector_store %arg6[%c54, %c0_374], %493 {strides = array<i32>} : memref<64x128xf32, #tpu.memory_space<vmem>>, vector<1x128xf32>,
    %c8_i32_375 = arith.constant 8 : i32
    %495 = arith.muli %arg0, %c8_i32_375 : i32
    %c7_i32_376 = arith.constant 7 : i32
    %496 = arith.addi %495, %c7_i32_376 : i32
    %497 = arith.index_cast %496 : i32 to index
    %c6_377 = arith.constant 6 : index
    %498 = memref.load %arg1[%497, %c6_377] : memref<16x8xi32, #tpu.memory_space<smem>>
    %c0_i32_378 = arith.constant 0 : i32
    %c31_i32_379 = arith.constant 31 : i32
    %499 = arith.maxsi %c0_i32_378, %498 : i32
    %500 = arith.minsi %c31_i32_379, %499 : i32
    %501 = arith.index_cast %500 : i32 to index
    %c0_380 = arith.constant 0 : index
    %502 = vector.load %arg2[%501, %c0_380] : memref<32x128xf32, #tpu.memory_space<vmem>>, vector<1x128xf32>
    %c55 = arith.constant 55 : index
    %c0_381 = arith.constant 0 : index
    %503 = vector.load %arg6[%c55, %c0_381] : memref<64x128xf32, #tpu.memory_space<vmem>>, vector<1x128xf32>
    tpu.vector_store %arg6[%c55, %c0_381], %502 {strides = array<i32>} : memref<64x128xf32, #tpu.memory_space<vmem>>, vector<1x128xf32>,
    %c8_i32_382 = arith.constant 8 : i32
    %504 = arith.muli %arg0, %c8_i32_382 : i32
    %c0_i32_383 = arith.constant 0 : i32
    %505 = arith.addi %504, %c0_i32_383 : i32
    %506 = arith.index_cast %505 : i32 to index
    %c7_384 = arith.constant 7 : index
    %507 = memref.load %arg1[%506, %c7_384] : memref<16x8xi32, #tpu.memory_space<smem>>
    %c0_i32_385 = arith.constant 0 : i32
    %c31_i32_386 = arith.constant 31 : i32
    %508 = arith.maxsi %c0_i32_385, %507 : i32
    %509 = arith.minsi %c31_i32_386, %508 : i32
    %510 = arith.index_cast %509 : i32 to index
    %c0_387 = arith.constant 0 : index
    %511 = vector.load %arg2[%510, %c0_387] : memref<32x128xf32, #tpu.memory_space<vmem>>, vector<1x128xf32>
    %c56 = arith.constant 56 : index
    %c0_388 = arith.constant 0 : index
    %512 = vector.load %arg6[%c56, %c0_388] : memref<64x128xf32, #tpu.memory_space<vmem>>, vector<1x128xf32>
    tpu.vector_store %arg6[%c56, %c0_388], %511 {strides = array<i32>} : memref<64x128xf32, #tpu.memory_space<vmem>>, vector<1x128xf32>,
    %c8_i32_389 = arith.constant 8 : i32
    %513 = arith.muli %arg0, %c8_i32_389 : i32
    %c1_i32_390 = arith.constant 1 : i32
    %514 = arith.addi %513, %c1_i32_390 : i32
    %515 = arith.index_cast %514 : i32 to index
    %c7_391 = arith.constant 7 : index
    %516 = memref.load %arg1[%515, %c7_391] : memref<16x8xi32, #tpu.memory_space<smem>>
    %c0_i32_392 = arith.constant 0 : i32
    %c31_i32_393 = arith.constant 31 : i32
    %517 = arith.maxsi %c0_i32_392, %516 : i32
    %518 = arith.minsi %c31_i32_393, %517 : i32
    %519 = arith.index_cast %518 : i32 to index
    %c0_394 = arith.constant 0 : index
    %520 = vector.load %arg2[%519, %c0_394] : memref<32x128xf32, #tpu.memory_space<vmem>>, vector<1x128xf32>
    %c57 = arith.constant 57 : index
    %c0_395 = arith.constant 0 : index
    %521 = vector.load %arg6[%c57, %c0_395] : memref<64x128xf32, #tpu.memory_space<vmem>>, vector<1x128xf32>
    tpu.vector_store %arg6[%c57, %c0_395], %520 {strides = array<i32>} : memref<64x128xf32, #tpu.memory_space<vmem>>, vector<1x128xf32>,
    %c8_i32_396 = arith.constant 8 : i32
    %522 = arith.muli %arg0, %c8_i32_396 : i32
    %c2_i32_397 = arith.constant 2 : i32
    %523 = arith.addi %522, %c2_i32_397 : i32
    %524 = arith.index_cast %523 : i32 to index
    %c7_398 = arith.constant 7 : index
    %525 = memref.load %arg1[%524, %c7_398] : memref<16x8xi32, #tpu.memory_space<smem>>
    %c0_i32_399 = arith.constant 0 : i32
    %c31_i32_400 = arith.constant 31 : i32
    %526 = arith.maxsi %c0_i32_399, %525 : i32
    %527 = arith.minsi %c31_i32_400, %526 : i32
    %528 = arith.index_cast %527 : i32 to index
    %c0_401 = arith.constant 0 : index
    %529 = vector.load %arg2[%528, %c0_401] : memref<32x128xf32, #tpu.memory_space<vmem>>, vector<1x128xf32>
    %c58 = arith.constant 58 : index
    %c0_402 = arith.constant 0 : index
    %530 = vector.load %arg6[%c58, %c0_402] : memref<64x128xf32, #tpu.memory_space<vmem>>, vector<1x128xf32>
    tpu.vector_store %arg6[%c58, %c0_402], %529 {strides = array<i32>} : memref<64x128xf32, #tpu.memory_space<vmem>>, vector<1x128xf32>,
    %c8_i32_403 = arith.constant 8 : i32
    %531 = arith.muli %arg0, %c8_i32_403 : i32
    %c3_i32_404 = arith.constant 3 : i32
    %532 = arith.addi %531, %c3_i32_404 : i32
    %533 = arith.index_cast %532 : i32 to index
    %c7_405 = arith.constant 7 : index
    %534 = memref.load %arg1[%533, %c7_405] : memref<16x8xi32, #tpu.memory_space<smem>>
    %c0_i32_406 = arith.constant 0 : i32
    %c31_i32_407 = arith.constant 31 : i32
    %535 = arith.maxsi %c0_i32_406, %534 : i32
    %536 = arith.minsi %c31_i32_407, %535 : i32
    %537 = arith.index_cast %536 : i32 to index
    %c0_408 = arith.constant 0 : index
    %538 = vector.load %arg2[%537, %c0_408] : memref<32x128xf32, #tpu.memory_space<vmem>>, vector<1x128xf32>
    %c59 = arith.constant 59 : index
    %c0_409 = arith.constant 0 : index
    %539 = vector.load %arg6[%c59, %c0_409] : memref<64x128xf32, #tpu.memory_space<vmem>>, vector<1x128xf32>
    tpu.vector_store %arg6[%c59, %c0_409], %538 {strides = array<i32>} : memref<64x128xf32, #tpu.memory_space<vmem>>, vector<1x128xf32>,
    %c8_i32_410 = arith.constant 8 : i32
    %540 = arith.muli %arg0, %c8_i32_410 : i32
    %c4_i32_411 = arith.constant 4 : i32
    %541 = arith.addi %540, %c4_i32_411 : i32
    %542 = arith.index_cast %541 : i32 to index
    %c7_412 = arith.constant 7 : index
    %543 = memref.load %arg1[%542, %c7_412] : memref<16x8xi32, #tpu.memory_space<smem>>
    %c0_i32_413 = arith.constant 0 : i32
    %c31_i32_414 = arith.constant 31 : i32
    %544 = arith.maxsi %c0_i32_413, %543 : i32
    %545 = arith.minsi %c31_i32_414, %544 : i32
    %546 = arith.index_cast %545 : i32 to index
    %c0_415 = arith.constant 0 : index
    %547 = vector.load %arg2[%546, %c0_415] : memref<32x128xf32, #tpu.memory_space<vmem>>, vector<1x128xf32>
    %c60 = arith.constant 60 : index
    %c0_416 = arith.constant 0 : index
    %548 = vector.load %arg6[%c60, %c0_416] : memref<64x128xf32, #tpu.memory_space<vmem>>, vector<1x128xf32>
    tpu.vector_store %arg6[%c60, %c0_416], %547 {strides = array<i32>} : memref<64x128xf32, #tpu.memory_space<vmem>>, vector<1x128xf32>,
    %c8_i32_417 = arith.constant 8 : i32
    %549 = arith.muli %arg0, %c8_i32_417 : i32
    %c5_i32_418 = arith.constant 5 : i32
    %550 = arith.addi %549, %c5_i32_418 : i32
    %551 = arith.index_cast %550 : i32 to index
    %c7_419 = arith.constant 7 : index
    %552 = memref.load %arg1[%551, %c7_419] : memref<16x8xi32, #tpu.memory_space<smem>>
    %c0_i32_420 = arith.constant 0 : i32
    %c31_i32_421 = arith.constant 31 : i32
    %553 = arith.maxsi %c0_i32_420, %552 : i32
    %554 = arith.minsi %c31_i32_421, %553 : i32
    %555 = arith.index_cast %554 : i32 to index
    %c0_422 = arith.constant 0 : index
    %556 = vector.load %arg2[%555, %c0_422] : memref<32x128xf32, #tpu.memory_space<vmem>>, vector<1x128xf32>
    %c61 = arith.constant 61 : index
    %c0_423 = arith.constant 0 : index
    %557 = vector.load %arg6[%c61, %c0_423] : memref<64x128xf32, #tpu.memory_space<vmem>>, vector<1x128xf32>
    tpu.vector_store %arg6[%c61, %c0_423], %556 {strides = array<i32>} : memref<64x128xf32, #tpu.memory_space<vmem>>, vector<1x128xf32>,
    %c8_i32_424 = arith.constant 8 : i32
    %558 = arith.muli %arg0, %c8_i32_424 : i32
    %c6_i32_425 = arith.constant 6 : i32
    %559 = arith.addi %558, %c6_i32_425 : i32
    %560 = arith.index_cast %559 : i32 to index
    %c7_426 = arith.constant 7 : index
    %561 = memref.load %arg1[%560, %c7_426] : memref<16x8xi32, #tpu.memory_space<smem>>
    %c0_i32_427 = arith.constant 0 : i32
    %c31_i32_428 = arith.constant 31 : i32
    %562 = arith.maxsi %c0_i32_427, %561 : i32
    %563 = arith.minsi %c31_i32_428, %562 : i32
    %564 = arith.index_cast %563 : i32 to index
    %c0_429 = arith.constant 0 : index
    %565 = vector.load %arg2[%564, %c0_429] : memref<32x128xf32, #tpu.memory_space<vmem>>, vector<1x128xf32>
    %c62 = arith.constant 62 : index
    %c0_430 = arith.constant 0 : index
    %566 = vector.load %arg6[%c62, %c0_430] : memref<64x128xf32, #tpu.memory_space<vmem>>, vector<1x128xf32>
    tpu.vector_store %arg6[%c62, %c0_430], %565 {strides = array<i32>} : memref<64x128xf32, #tpu.memory_space<vmem>>, vector<1x128xf32>,
    %c8_i32_431 = arith.constant 8 : i32
    %567 = arith.muli %arg0, %c8_i32_431 : i32
    %c7_i32_432 = arith.constant 7 : i32
    %568 = arith.addi %567, %c7_i32_432 : i32
    %569 = arith.index_cast %568 : i32 to index
    %c7_433 = arith.constant 7 : index
    %570 = memref.load %arg1[%569, %c7_433] : memref<16x8xi32, #tpu.memory_space<smem>>
    %c0_i32_434 = arith.constant 0 : i32
    %c31_i32_435 = arith.constant 31 : i32
    %571 = arith.maxsi %c0_i32_434, %570 : i32
    %572 = arith.minsi %c31_i32_435, %571 : i32
    %573 = arith.index_cast %572 : i32 to index
    %c0_436 = arith.constant 0 : index
    %574 = vector.load %arg2[%573, %c0_436] : memref<32x128xf32, #tpu.memory_space<vmem>>, vector<1x128xf32>
    %c63 = arith.constant 63 : index
    %c0_437 = arith.constant 0 : index
    %575 = vector.load %arg6[%c63, %c0_437] : memref<64x128xf32, #tpu.memory_space<vmem>>, vector<1x128xf32>
    tpu.vector_store %arg6[%c63, %c0_437], %574 {strides = array<i32>} : memref<64x128xf32, #tpu.memory_space<vmem>>, vector<1x128xf32>,
    %c0_438 = arith.constant 0 : index
    %c0_439 = arith.constant 0 : index
    %576 = vector.load %arg4[%c0_438, %c0_439] : memref<200x128xf32, #tpu.memory_space<vmem>>, vector<32x128xf32>
    %c192 = arith.constant 192 : index
    %c0_440 = arith.constant 0 : index
    %577 = vector.load %arg4[%c192, %c0_440] : memref<200x128xf32, #tpu.memory_space<vmem>>, vector<8x128xf32>
    %cst = arith.constant 0.000000e+00 : f32
    %578 = vector.broadcast %cst : f32 to vector<8x32xf32>
    %cst_441 = arith.constant 0.000000e+00 : f32
    %579 = vector.broadcast %cst_441 : f32 to vector<8x32xf32>
    %c0_442 = arith.constant 0 : index
    %c0_443 = arith.constant 0 : index
    %580 = vector.load %arg6[%c0_442, %c0_443] : memref<64x128xf32, #tpu.memory_space<vmem>>, vector<8x128xf32>
    %cst_444 = arith.constant dense<0.000000e+00> : vector<8x128xf32>
    %581 = tpu.matmul %578, %576, %cst_444 {dimension_numbers = #tpu.dot_dimension_numbers<[1], [0], [0], [1], [0, 0, 1, 1], [], []>} : vector<8x32xf32>, vector<32x128xf32>, vector<8x128xf32> -> vector<8x128xf32>
    %582 = arith.addf %580, %581 : vector<8x128xf32>
    %583 = arith.negf %582 : vector<8x128xf32>
    %584 = math.exp %583 : vector<8x128xf32>
    %cst_445 = arith.constant 1.000000e+00 : f32
    %585 = vector.broadcast %cst_445 : f32 to vector<8x128xf32>
    %586 = arith.addf %585, %584 : vector<8x128xf32>
    %587 = arith.divf %585, %586 : vector<8x128xf32>
    %588 = vector.extract_strided_slice %587 {offsets = [0, 0], sizes = [8, 32], strides = [1, 1]} : vector<8x128xf32> to vector<8x32xf32>
    %589 = vector.extract_strided_slice %587 {offsets = [0, 32], sizes = [8, 32], strides = [1, 1]} : vector<8x128xf32> to vector<8x32xf32>
    %590 = vector.extract_strided_slice %587 {offsets = [0, 96], sizes = [8, 32], strides = [1, 1]} : vector<8x128xf32> to vector<8x32xf32>
    %591 = vector.extract_strided_slice %582 {offsets = [0, 64], sizes = [8, 32], strides = [1, 1]} : vector<8x128xf32> to vector<8x32xf32>
    %592 = math.tanh %591 : vector<8x32xf32>
    %593 = arith.mulf %589, %579 : vector<8x32xf32>
    %594 = arith.mulf %588, %592 : vector<8x32xf32>
    %595 = arith.addf %593, %594 : vector<8x32xf32>
    %596 = math.tanh %595 : vector<8x32xf32>
    %597 = arith.mulf %590, %596 : vector<8x32xf32>
    %c8_446 = arith.constant 8 : index
    %c0_447 = arith.constant 0 : index
    %598 = vector.load %arg6[%c8_446, %c0_447] : memref<64x128xf32, #tpu.memory_space<vmem>>, vector<8x128xf32>
    %cst_448 = arith.constant dense<0.000000e+00> : vector<8x128xf32>
    %599 = tpu.matmul %597, %576, %cst_448 {dimension_numbers = #tpu.dot_dimension_numbers<[1], [0], [0], [1], [0, 0, 1, 1], [], []>} : vector<8x32xf32>, vector<32x128xf32>, vector<8x128xf32> -> vector<8x128xf32>
    %600 = arith.addf %598, %599 : vector<8x128xf32>
    %601 = arith.negf %600 : vector<8x128xf32>
    %602 = math.exp %601 : vector<8x128xf32>
    %cst_449 = arith.constant 1.000000e+00 : f32
    %603 = vector.broadcast %cst_449 : f32 to vector<8x128xf32>
    %604 = arith.addf %603, %602 : vector<8x128xf32>
    %605 = arith.divf %603, %604 : vector<8x128xf32>
    %606 = vector.extract_strided_slice %605 {offsets = [0, 0], sizes = [8, 32], strides = [1, 1]} : vector<8x128xf32> to vector<8x32xf32>
    %607 = vector.extract_strided_slice %605 {offsets = [0, 32], sizes = [8, 32], strides = [1, 1]} : vector<8x128xf32> to vector<8x32xf32>
    %608 = vector.extract_strided_slice %605 {offsets = [0, 96], sizes = [8, 32], strides = [1, 1]} : vector<8x128xf32> to vector<8x32xf32>
    %609 = vector.extract_strided_slice %600 {offsets = [0, 64], sizes = [8, 32], strides = [1, 1]} : vector<8x128xf32> to vector<8x32xf32>
    %610 = math.tanh %609 : vector<8x32xf32>
    %611 = arith.mulf %607, %595 : vector<8x32xf32>
    %612 = arith.mulf %606, %610 : vector<8x32xf32>
    %613 = arith.addf %611, %612 : vector<8x32xf32>
    %614 = math.tanh %613 : vector<8x32xf32>
    %615 = arith.mulf %608, %614 : vector<8x32xf32>
    %c16_450 = arith.constant 16 : index
    %c0_451 = arith.constant 0 : index
    %616 = vector.load %arg6[%c16_450, %c0_451] : memref<64x128xf32, #tpu.memory_space<vmem>>, vector<8x128xf32>
    %cst_452 = arith.constant dense<0.000000e+00> : vector<8x128xf32>
    %617 = tpu.matmul %615, %576, %cst_452 {dimension_numbers = #tpu.dot_dimension_numbers<[1], [0], [0], [1], [0, 0, 1, 1], [], []>} : vector<8x32xf32>, vector<32x128xf32>, vector<8x128xf32> -> vector<8x128xf32>
    %618 = arith.addf %616, %617 : vector<8x128xf32>
    %619 = arith.negf %618 : vector<8x128xf32>
    %620 = math.exp %619 : vector<8x128xf32>
    %cst_453 = arith.constant 1.000000e+00 : f32
    %621 = vector.broadcast %cst_453 : f32 to vector<8x128xf32>
    %622 = arith.addf %621, %620 : vector<8x128xf32>
    %623 = arith.divf %621, %622 : vector<8x128xf32>
    %624 = vector.extract_strided_slice %623 {offsets = [0, 0], sizes = [8, 32], strides = [1, 1]} : vector<8x128xf32> to vector<8x32xf32>
    %625 = vector.extract_strided_slice %623 {offsets = [0, 32], sizes = [8, 32], strides = [1, 1]} : vector<8x128xf32> to vector<8x32xf32>
    %626 = vector.extract_strided_slice %623 {offsets = [0, 96], sizes = [8, 32], strides = [1, 1]} : vector<8x128xf32> to vector<8x32xf32>
    %627 = vector.extract_strided_slice %618 {offsets = [0, 64], sizes = [8, 32], strides = [1, 1]} : vector<8x128xf32> to vector<8x32xf32>
    %628 = math.tanh %627 : vector<8x32xf32>
    %629 = arith.mulf %625, %613 : vector<8x32xf32>
    %630 = arith.mulf %624, %628 : vector<8x32xf32>
    %631 = arith.addf %629, %630 : vector<8x32xf32>
    %632 = math.tanh %631 : vector<8x32xf32>
    %633 = arith.mulf %626, %632 : vector<8x32xf32>
    %c24_454 = arith.constant 24 : index
    %c0_455 = arith.constant 0 : index
    %634 = vector.load %arg6[%c24_454, %c0_455] : memref<64x128xf32, #tpu.memory_space<vmem>>, vector<8x128xf32>
    %cst_456 = arith.constant dense<0.000000e+00> : vector<8x128xf32>
    %635 = tpu.matmul %633, %576, %cst_456 {dimension_numbers = #tpu.dot_dimension_numbers<[1], [0], [0], [1], [0, 0, 1, 1], [], []>} : vector<8x32xf32>, vector<32x128xf32>, vector<8x128xf32> -> vector<8x128xf32>
    %636 = arith.addf %634, %635 : vector<8x128xf32>
    %637 = arith.negf %636 : vector<8x128xf32>
    %638 = math.exp %637 : vector<8x128xf32>
    %cst_457 = arith.constant 1.000000e+00 : f32
    %639 = vector.broadcast %cst_457 : f32 to vector<8x128xf32>
    %640 = arith.addf %639, %638 : vector<8x128xf32>
    %641 = arith.divf %639, %640 : vector<8x128xf32>
    %642 = vector.extract_strided_slice %641 {offsets = [0, 0], sizes = [8, 32], strides = [1, 1]} : vector<8x128xf32> to vector<8x32xf32>
    %643 = vector.extract_strided_slice %641 {offsets = [0, 32], sizes = [8, 32], strides = [1, 1]} : vector<8x128xf32> to vector<8x32xf32>
    %644 = vector.extract_strided_slice %641 {offsets = [0, 96], sizes = [8, 32], strides = [1, 1]} : vector<8x128xf32> to vector<8x32xf32>
    %645 = vector.extract_strided_slice %636 {offsets = [0, 64], sizes = [8, 32], strides = [1, 1]} : vector<8x128xf32> to vector<8x32xf32>
    %646 = math.tanh %645 : vector<8x32xf32>
    %647 = arith.mulf %643, %631 : vector<8x32xf32>
    %648 = arith.mulf %642, %646 : vector<8x32xf32>
    %649 = arith.addf %647, %648 : vector<8x32xf32>
    %650 = math.tanh %649 : vector<8x32xf32>
    %651 = arith.mulf %644, %650 : vector<8x32xf32>
    %c32_458 = arith.constant 32 : index
    %c0_459 = arith.constant 0 : index
    %652 = vector.load %arg6[%c32_458, %c0_459] : memref<64x128xf32, #tpu.memory_space<vmem>>, vector<8x128xf32>
    %cst_460 = arith.constant dense<0.000000e+00> : vector<8x128xf32>
    %653 = tpu.matmul %651, %576, %cst_460 {dimension_numbers = #tpu.dot_dimension_numbers<[1], [0], [0], [1], [0, 0, 1, 1], [], []>} : vector<8x32xf32>, vector<32x128xf32>, vector<8x128xf32> -> vector<8x128xf32>
    %654 = arith.addf %652, %653 : vector<8x128xf32>
    %655 = arith.negf %654 : vector<8x128xf32>
    %656 = math.exp %655 : vector<8x128xf32>
    %cst_461 = arith.constant 1.000000e+00 : f32
    %657 = vector.broadcast %cst_461 : f32 to vector<8x128xf32>
    %658 = arith.addf %657, %656 : vector<8x128xf32>
    %659 = arith.divf %657, %658 : vector<8x128xf32>
    %660 = vector.extract_strided_slice %659 {offsets = [0, 0], sizes = [8, 32], strides = [1, 1]} : vector<8x128xf32> to vector<8x32xf32>
    %661 = vector.extract_strided_slice %659 {offsets = [0, 32], sizes = [8, 32], strides = [1, 1]} : vector<8x128xf32> to vector<8x32xf32>
    %662 = vector.extract_strided_slice %659 {offsets = [0, 96], sizes = [8, 32], strides = [1, 1]} : vector<8x128xf32> to vector<8x32xf32>
    %663 = vector.extract_strided_slice %654 {offsets = [0, 64], sizes = [8, 32], strides = [1, 1]} : vector<8x128xf32> to vector<8x32xf32>
    %664 = math.tanh %663 : vector<8x32xf32>
    %665 = arith.mulf %661, %649 : vector<8x32xf32>
    %666 = arith.mulf %660, %664 : vector<8x32xf32>
    %667 = arith.addf %665, %666 : vector<8x32xf32>
    %668 = math.tanh %667 : vector<8x32xf32>
    %669 = arith.mulf %662, %668 : vector<8x32xf32>
    %c40_462 = arith.constant 40 : index
    %c0_463 = arith.constant 0 : index
    %670 = vector.load %arg6[%c40_462, %c0_463] : memref<64x128xf32, #tpu.memory_space<vmem>>, vector<8x128xf32>
    %cst_464 = arith.constant dense<0.000000e+00> : vector<8x128xf32>
    %671 = tpu.matmul %669, %576, %cst_464 {dimension_numbers = #tpu.dot_dimension_numbers<[1], [0], [0], [1], [0, 0, 1, 1], [], []>} : vector<8x32xf32>, vector<32x128xf32>, vector<8x128xf32> -> vector<8x128xf32>
    %672 = arith.addf %670, %671 : vector<8x128xf32>
    %673 = arith.negf %672 : vector<8x128xf32>
    %674 = math.exp %673 : vector<8x128xf32>
    %cst_465 = arith.constant 1.000000e+00 : f32
    %675 = vector.broadcast %cst_465 : f32 to vector<8x128xf32>
    %676 = arith.addf %675, %674 : vector<8x128xf32>
    %677 = arith.divf %675, %676 : vector<8x128xf32>
    %678 = vector.extract_strided_slice %677 {offsets = [0, 0], sizes = [8, 32], strides = [1, 1]} : vector<8x128xf32> to vector<8x32xf32>
    %679 = vector.extract_strided_slice %677 {offsets = [0, 32], sizes = [8, 32], strides = [1, 1]} : vector<8x128xf32> to vector<8x32xf32>
    %680 = vector.extract_strided_slice %677 {offsets = [0, 96], sizes = [8, 32], strides = [1, 1]} : vector<8x128xf32> to vector<8x32xf32>
    %681 = vector.extract_strided_slice %672 {offsets = [0, 64], sizes = [8, 32], strides = [1, 1]} : vector<8x128xf32> to vector<8x32xf32>
    %682 = math.tanh %681 : vector<8x32xf32>
    %683 = arith.mulf %679, %667 : vector<8x32xf32>
    %684 = arith.mulf %678, %682 : vector<8x32xf32>
    %685 = arith.addf %683, %684 : vector<8x32xf32>
    %686 = math.tanh %685 : vector<8x32xf32>
    %687 = arith.mulf %680, %686 : vector<8x32xf32>
    %c48_466 = arith.constant 48 : index
    %c0_467 = arith.constant 0 : index
    %688 = vector.load %arg6[%c48_466, %c0_467] : memref<64x128xf32, #tpu.memory_space<vmem>>, vector<8x128xf32>
    %cst_468 = arith.constant dense<0.000000e+00> : vector<8x128xf32>
    %689 = tpu.matmul %687, %576, %cst_468 {dimension_numbers = #tpu.dot_dimension_numbers<[1], [0], [0], [1], [0, 0, 1, 1], [], []>} : vector<8x32xf32>, vector<32x128xf32>, vector<8x128xf32> -> vector<8x128xf32>
    %690 = arith.addf %688, %689 : vector<8x128xf32>
    %691 = arith.negf %690 : vector<8x128xf32>
    %692 = math.exp %691 : vector<8x128xf32>
    %cst_469 = arith.constant 1.000000e+00 : f32
    %693 = vector.broadcast %cst_469 : f32 to vector<8x128xf32>
    %694 = arith.addf %693, %692 : vector<8x128xf32>
    %695 = arith.divf %693, %694 : vector<8x128xf32>
    %696 = vector.extract_strided_slice %695 {offsets = [0, 0], sizes = [8, 32], strides = [1, 1]} : vector<8x128xf32> to vector<8x32xf32>
    %697 = vector.extract_strided_slice %695 {offsets = [0, 32], sizes = [8, 32], strides = [1, 1]} : vector<8x128xf32> to vector<8x32xf32>
    %698 = vector.extract_strided_slice %695 {offsets = [0, 96], sizes = [8, 32], strides = [1, 1]} : vector<8x128xf32> to vector<8x32xf32>
    %699 = vector.extract_strided_slice %690 {offsets = [0, 64], sizes = [8, 32], strides = [1, 1]} : vector<8x128xf32> to vector<8x32xf32>
    %700 = math.tanh %699 : vector<8x32xf32>
    %701 = arith.mulf %697, %685 : vector<8x32xf32>
    %702 = arith.mulf %696, %700 : vector<8x32xf32>
    %703 = arith.addf %701, %702 : vector<8x32xf32>
    %704 = math.tanh %703 : vector<8x32xf32>
    %705 = arith.mulf %698, %704 : vector<8x32xf32>
    %c56_470 = arith.constant 56 : index
    %c0_471 = arith.constant 0 : index
    %706 = vector.load %arg6[%c56_470, %c0_471] : memref<64x128xf32, #tpu.memory_space<vmem>>, vector<8x128xf32>
    %cst_472 = arith.constant dense<0.000000e+00> : vector<8x128xf32>
    %707 = tpu.matmul %705, %576, %cst_472 {dimension_numbers = #tpu.dot_dimension_numbers<[1], [0], [0], [1], [0, 0, 1, 1], [], []>} : vector<8x32xf32>, vector<32x128xf32>, vector<8x128xf32> -> vector<8x128xf32>
    %708 = arith.addf %706, %707 : vector<8x128xf32>
    %709 = arith.negf %708 : vector<8x128xf32>
    %710 = math.exp %709 : vector<8x128xf32>
    %cst_473 = arith.constant 1.000000e+00 : f32
    %711 = vector.broadcast %cst_473 : f32 to vector<8x128xf32>
    %712 = arith.addf %711, %710 : vector<8x128xf32>
    %713 = arith.divf %711, %712 : vector<8x128xf32>
    %714 = vector.extract_strided_slice %713 {offsets = [0, 0], sizes = [8, 32], strides = [1, 1]} : vector<8x128xf32> to vector<8x32xf32>
    %715 = vector.extract_strided_slice %713 {offsets = [0, 32], sizes = [8, 32], strides = [1, 1]} : vector<8x128xf32> to vector<8x32xf32>
    %716 = vector.extract_strided_slice %713 {offsets = [0, 96], sizes = [8, 32], strides = [1, 1]} : vector<8x128xf32> to vector<8x32xf32>
    %717 = vector.extract_strided_slice %708 {offsets = [0, 64], sizes = [8, 32], strides = [1, 1]} : vector<8x128xf32> to vector<8x32xf32>
    %718 = math.tanh %717 : vector<8x32xf32>
    %719 = arith.mulf %715, %703 : vector<8x32xf32>
    %720 = arith.mulf %714, %718 : vector<8x32xf32>
    %721 = arith.addf %719, %720 : vector<8x32xf32>
    %722 = math.tanh %721 : vector<8x32xf32>
    %723 = arith.mulf %716, %722 : vector<8x32xf32>
    %c0_474 = arith.constant 0 : index
    %c0_475 = arith.constant 0 : index
    %724 = vector.load %arg3[%c0_474, %c0_475] : memref<8x128xf32, #tpu.memory_space<vmem>>, vector<8x128xf32>
    %725 = vector.extract_strided_slice %577 {offsets = [3, 0], sizes = [1, 128], strides = [1, 1]} : vector<8x128xf32> to vector<1x128xf32>
    %726 = vector.broadcast %725 : vector<1x128xf32> to vector<8x128xf32>
    %727 = arith.mulf %724, %726 : vector<8x128xf32>
    %cst_476 = arith.constant dense<0.000000e+00> : vector<8xf32>
    %728 = vector.multi_reduction <add>, %727, %cst_476 [1] : vector<8x128xf32> to vector<8xf32>
    %729 = vector.shape_cast %728 : vector<8xf32> to vector<8x1xf32>
    %cst_477 = arith.constant 0.000000e+00 : f32
    %730 = vector.broadcast %cst_477 : f32 to vector<8x1xf32>
    %731 = arith.maximumf %729, %730 : vector<8x1xf32>
    %c32_478 = arith.constant 32 : index
    %c0_479 = arith.constant 0 : index
    %732 = vector.load %arg4[%c32_478, %c0_479] : memref<200x128xf32, #tpu.memory_space<vmem>>, vector<32x128xf32>
    %cst_480 = arith.constant dense<0.000000e+00> : vector<8x128xf32>
    %733 = tpu.matmul %723, %732, %cst_480 {dimension_numbers = #tpu.dot_dimension_numbers<[1], [0], [0], [1], [0, 0, 1, 1], [], []>} : vector<8x32xf32>, vector<32x128xf32>, vector<8x128xf32> -> vector<8x128xf32>
    %734 = vector.extract_strided_slice %577 {offsets = [0, 0], sizes = [1, 128], strides = [1, 1]} : vector<8x128xf32> to vector<1x128xf32>
    %735 = vector.broadcast %731 : vector<8x1xf32> to vector<8x128xf32>
    %736 = vector.broadcast %734 : vector<1x128xf32> to vector<8x128xf32>
    %737 = arith.mulf %735, %736 : vector<8x128xf32>
    %738 = arith.addf %733, %737 : vector<8x128xf32>
    %739 = vector.extract_strided_slice %577 {offsets = [1, 0], sizes = [1, 128], strides = [1, 1]} : vector<8x128xf32> to vector<1x128xf32>
    %740 = vector.broadcast %739 : vector<1x128xf32> to vector<8x128xf32>
    %741 = arith.addf %738, %740 : vector<8x128xf32>
    %cst_481 = arith.constant 0.000000e+00 : f32
    %742 = vector.broadcast %cst_481 : f32 to vector<8x128xf32>
    %743 = arith.maximumf %741, %742 : vector<8x128xf32>
    %c64 = arith.constant 64 : index
    %c0_482 = arith.constant 0 : index
    %744 = vector.load %arg4[%c64, %c0_482] : memref<200x128xf32, #tpu.memory_space<vmem>>, vector<128x128xf32>
    %cst_483 = arith.constant dense<0.000000e+00> : vector<8x128xf32>
    %745 = tpu.matmul %743, %744, %cst_483 {dimension_numbers = #tpu.dot_dimension_numbers<[1], [0], [0], [1], [0, 0, 1, 1], [], []>} : vector<8x128xf32>, vector<128x128xf32>, vector<8x128xf32> -> vector<8x128xf32>
    %746 = vector.extract_strided_slice %577 {offsets = [2, 0], sizes = [1, 128], strides = [1, 1]} : vector<8x128xf32> to vector<1x128xf32>
    %747 = vector.broadcast %746 : vector<1x128xf32> to vector<8x128xf32>
    %748 = arith.addf %745, %747 : vector<8x128xf32>
    %749 = arith.negf %748 : vector<8x128xf32>
    %750 = math.exp %749 : vector<8x128xf32>
    %cst_484 = arith.constant 1.000000e+00 : f32
    %751 = vector.broadcast %cst_484 : f32 to vector<8x128xf32>
    %752 = arith.addf %751, %750 : vector<8x128xf32>
    %753 = arith.divf %751, %752 : vector<8x128xf32>
    %c0_485 = arith.constant 0 : index
    %c0_486 = arith.constant 0 : index
    %754 = vector.load %arg5[%c0_485, %c0_486] : memref<8x128xf32, #tpu.memory_space<vmem>>, vector<8x128xf32>
    tpu.vector_store %arg5[%c0_485, %c0_486], %753 {strides = array<i32>} : memref<8x128xf32, #tpu.memory_space<vmem>>, vector<8x128xf32>,
    return
  }
  func.func @transform_0(%arg0: i32, %arg1: memref<16x8xi32, #tpu.memory_space<smem>>) -> (i32, i32) {
    %c0_i32 = arith.constant 0 : i32
    %c0_i32_0 = arith.constant 0 : i32
    %c0_i32_1 = arith.constant 0 : i32
    return %c0_i32, %c0_i32_0 : i32, i32
  }
  func.func @transform_1(%arg0: i32, %arg1: memref<16x8xi32, #tpu.memory_space<smem>>) -> (i32, i32) {
    %c0_i32 = arith.constant 0 : i32
    %c0_i32_0 = arith.constant 0 : i32
    return %arg0, %c0_i32 : i32, i32
  }
  func.func @transform_2(%arg0: i32, %arg1: memref<16x8xi32, #tpu.memory_space<smem>>) -> (i32, i32) {
    %c0_i32 = arith.constant 0 : i32
    %c0_i32_0 = arith.constant 0 : i32
    %c0_i32_1 = arith.constant 0 : i32
    return %c0_i32, %c0_i32_0 : i32, i32
  }
  func.func @transform_3(%arg0: i32, %arg1: memref<16x8xi32, #tpu.memory_space<smem>>) -> (i32, i32) {
    %c0_i32 = arith.constant 0 : i32
    %c0_i32_0 = arith.constant 0 : i32
    return %arg0, %c0_i32 : i32, i32
  }
}

</mosaic_0001>

<llo_original>
// kernel: tpu_custom_call.1
$region0: #{tpu_custom_call.1}
  #allocation0 [shape = 'u32[]', space=smem, size = 0x4, offset = 0x4, fixed_abs, tag = 'smem constant byte address 0x4 - core index']
  #allocation1 [shape = 'u32[144,128]{1,0:T(1,128)}', space=vmem, size = 0x12000, scoped, tag = 'internal scratch']
  #allocation2 [shape = 'f32[64,128]{1,0:T(8,128)}', space=vmem, size = 0x8000, scoped, tag = 'scratch operand']
  #allocation3 [shape = 's32[1]{0}', space=sflag, size = 0x4, scoped, tag = 'scoped memory for tpu_custom_call.1']
  #allocation4 [shape = 'u8[8192]{0}', space=smem, size = 0x2000, scoped, tag = 'prefetched SMEM operand 0']
  %s0 = inlined_call_operand.vmem [shape: s32[16,8], index: 0, kind: input, shape index: {}]
  %s1 = inlined_call_operand.hbm [shape: f32[32,128], index: 1, kind: input, shape index: {}]
  %s2 = inlined_call_operand.vmem [shape: f32[16,128], index: 2, kind: input, shape index: {}]
  %s3 = inlined_call_operand.hbm [shape: f32[200,128], index: 3, kind: input, shape index: {}]
  %s4 = inlined_call_operand.hbm [shape: f32[16,128], index: 4, kind: output, shape index: {}]
  %s5 = sld [smem:[#allocation0]]
  $region53: #{tpu_custom_call.1} parent=0
    _
  %s7 = ssub.s32 1, %s5
  %s8 = scalar_select 0, %s7, %s5
  %s9 = sshll.u32 %s0, 4
  %s10 = int_to_ptr.vmem [resolvable:$true] %s9
  %12 = dma.vmem_to_smem %s10, 256, [#allocation4], [#allocation3]
  %13 = dma.done [#allocation3], 256
  %14 = sfence
  $region1: #{tpu_custom_call.1} parent=0
    #allocation5 [shape = 'u8[16384]{0}', space=vmem, size = 0x4000, scoped, tag = 'input window, operand 1, single buffered']
    #allocation6 [shape = 's32[2]{0}', space=sflag, size = 0x8, scoped, tag = 'scoped memory for tpu_custom_call.1']
    #allocation7 [shape = 's32[2]{0}', space=sflag, size = 0x8, scoped, tag = 'scoped memory for tpu_custom_call.1']
    #allocation8 [shape = 'u8[102400]{0}', space=vmem, size = 0x19000, scoped, tag = 'input window, operand 3, single buffered']
    #allocation9 [shape = 's32[1]{0}', space=sflag, size = 0x4, scoped, tag = 'scoped memory for tpu_custom_call.1']
    #allocation10 [shape = 'u8[8192]{0}', space=vmem, size = 0x2000, scoped, tag = 'output window, operand 0']
    %15 = vsyncpa [#allocation6], 0
    %16 = vsyncpa [#allocation9], 0
    %17 = vsyncpa [#allocation7], 0
    %s18 = scalar_lea.sflag [#allocation7], 1
    %19 = vsyncpa %s18, 0
    loop: start=0, step=1, limit=4
    $region2: #{tpu_custom_call.1} parent=1 // loop_pre_header
      _
    $region3: #{tpu_custom_call.1} parent=1 // loop_header
      %s21 = sphi 0, %s25
      %p22 = scmp.ge.s32.totalorder %s21, 4
      %s29 = sphi 0, %s29
      %s31 = sphi 0, %s29
      %s32 = sphi 0, %s31
      %s46 = sphi 0, %s32
      %s52 = sphi 0, %s54
      %s55 = sphi 0, %s52
      %s56 = sphi 0, %s55
      %s72 = sphi 0, %s56
      %s76 = sphi 0, %s76
      %s78 = sphi 0, %s76
      %s79 = sphi 0, %s78
      %s93 = sphi 0, %s79
      %s99 = sphi 0, %s101
      %s102 = sphi 0, %s99
      %s103 = sphi 0, %s102
      %s119 = sphi 0, %s103
    $region4: #{tpu_custom_call.1} parent=1 // loop_header_branch
      %24 = sbr.rel (%p22) target = $region8
    $region5: #{tpu_custom_call.1} parent=1 // loop_body
      %s26 = ssub.s32 %s21, 1
      %s27 = ssub.s32 %s21, 2
      %s28 = sadd.s32 %s21, 1
      %s30 = sadd.s32 %s29, 1
      %p33 = scmp.eq.s32.totalorder %s21, 1
      %p34 = scmp.ne.s32.totalorder %s29, %s31
      %p35 = scmp.eq.s32.totalorder %s21, 0
      %p36 = por %p34, %p35
      %p37 = scmp.ne.s32.totalorder %s29, %s31
      %p38 = scmp.eq.s32.totalorder %s26, 1
      %p39 = por %p37, %p38
      %p40 = scmp.ne.s32.totalorder %s31, %s32
      %p41 = scmp.eq.s32.totalorder %s26, 0
      %p42 = por %p40, %p41
      %p43 = scmp.ne.s32.totalorder %s31, %s32
      %p44 = scmp.eq.s32.totalorder %s27, 1
      %p45 = por %p43, %p44
      %p47 = scmp.ne.s32.totalorder %s32, %s46
      %p48 = scmp.eq.s32.totalorder %s27, 0
      %p49 = por %p47, %p48
      %s50 = ssub.s32 %s21, %s28
      %p51 = scmp.eq.s32.totalorder %s50, 0
      %s53 = sadd.s32 %s52, 1
      %s54 = scalar_select %p51, %s52, %s53
      %p57 = pneg %p51
      %p58 = scmp.eq.s32.totalorder %s21, 1
      %p59 = por %p57, %p58
      %p60 = scmp.ne.s32.totalorder %s52, %s55
      %p61 = scmp.eq.s32.totalorder %s21, 0
      %p62 = por %p60, %p61
      %p63 = scmp.ne.s32.totalorder %s52, %s55
      %p64 = scmp.eq.s32.totalorder %s26, 1
      %p65 = por %p63, %p64
      %p66 = scmp.ne.s32.totalorder %s55, %s56
      %p67 = scmp.eq.s32.totalorder %s26, 0
      %p68 = por %p66, %p67
      %p69 = scmp.ne.s32.totalorder %s55, %s56
      %p70 = scmp.eq.s32.totalorder %s27, 1
      %p71 = por %p69, %p70
      %p73 = scmp.ne.s32.totalorder %s56, %s72
      %p74 = scmp.eq.s32.totalorder %s27, 0
      %p75 = por %p73, %p74
      %s77 = sadd.s32 %s76, 1
      %p80 = scmp.eq.s32.totalorder %s21, 1
      %p81 = scmp.ne.s32.totalorder %s76, %s78
      %p82 = scmp.eq.s32.totalorder %s21, 0
      %p83 = por %p81, %p82
      %p84 = scmp.ne.s32.totalorder %s76, %s78
      %p85 = scmp.eq.s32.totalorder %s26, 1
      %p86 = por %p84, %p85
      %p87 = scmp.ne.s32.totalorder %s78, %s79
      %p88 = scmp.eq.s32.totalorder %s26, 0
      %p89 = por %p87, %p88
      %p90 = scmp.ne.s32.totalorder %s78, %s79
      %p91 = scmp.eq.s32.totalorder %s27, 1
      %p92 = por %p90, %p91
      %p94 = scmp.ne.s32.totalorder %s79, %s93
      %p95 = scmp.eq.s32.totalorder %s27, 0
      %p96 = por %p94, %p95
      %s97 = ssub.s32 %s21, %s28
      %p98 = scmp.eq.s32.totalorder %s97, 0
      %s100 = sadd.s32 %s99, 1
      %s101 = scalar_select %p98, %s99, %s100
      %p104 = pneg %p98
      %p105 = scmp.eq.s32.totalorder %s21, 1
      %p106 = por %p104, %p105
      %p107 = scmp.ne.s32.totalorder %s99, %s102
      %p108 = scmp.eq.s32.totalorder %s21, 0
      %p109 = por %p107, %p108
      %p110 = scmp.ne.s32.totalorder %s99, %s102
      %p111 = scmp.eq.s32.totalorder %s26, 1
      %p112 = por %p110, %p111
      %p113 = scmp.ne.s32.totalorder %s102, %s103
      %p114 = scmp.eq.s32.totalorder %s26, 0
      %p115 = por %p113, %p114
      %p116 = scmp.ne.s32.totalorder %s102, %s103
      %p117 = scmp.eq.s32.totalorder %s27, 1
      %p118 = por %p116, %p117
      %p120 = scmp.ne.s32.totalorder %s103, %s119
      %p121 = scmp.eq.s32.totalorder %s27, 0
      %p122 = por %p120, %p121
      %p123 = scmp.le.s32.totalorder 1, %s21
      %p124 = scmp.lt.s32.totalorder %s21, 3
      %p125 = pnand %p123, %p124
      %p126 = pneg %p125
      // Predicated region
      $region9: #{tpu_custom_call.1} parent=5 // pred_check
        _
      $region10: #{tpu_custom_call.1} parent=5 // pred_check_branch
        %128 = sbr.rel (%p125) target = $region12
      $region11: #{tpu_custom_call.1} parent=5 // pred_region
        %s129 = ssub.s32 %s21, 1
        // Predicated region
        $region13: #{tpu_custom_call.1} parent=11 // pred_check
          %p130 = pneg %p42
        $region14: #{tpu_custom_call.1} parent=11 // pred_check_branch
          %132 = sbr.rel (%p130) target = $region16
        $region15: #{tpu_custom_call.1} parent=11 // pred_region
          %s134 = ssub.s32 512, 512
          %135 = vsyncadd [#allocation6], %s134
          %s136 = sshll.u32 [#allocation5], 4
          %s137 = int_to_ptr.vmem [resolvable:$true] %s136
          %142 = dma.hbm_to_vmem [thread:$0]  %s1, 512, %s137, [#allocation6], 128, 128, 8
        $region16: #{tpu_custom_call.1} parent=11 // pred_fallthru
          _
        // Predicated region
        $region17: #{tpu_custom_call.1} parent=11 // pred_check
          %p143 = pneg %p89
        $region18: #{tpu_custom_call.1} parent=11 // pred_check_branch
          %145 = sbr.rel (%p143) target = $region20
        $region19: #{tpu_custom_call.1} parent=11 // pred_region
          %s147 = ssub.s32 3200, 3200
          %148 = vsyncadd [#allocation9], %s147
          %s149 = sshll.u32 [#allocation8], 4
          %s150 = int_to_ptr.vmem [resolvable:$true] %s149
          %155 = dma.hbm_to_vmem [thread:$0]  %s3, 3200, %s150, [#allocation9], 128, 128, 8
        $region20: #{tpu_custom_call.1} parent=11 // pred_fallthru
          _
      $region12: #{tpu_custom_call.1} parent=5 // pred_fallthru
        _
      %p156 = scmp.lt.s32.totalorder %s21, 2
      // Predicated region
      $region21: #{tpu_custom_call.1} parent=5 // pred_check
        %p157 = pneg %p156
      $region22: #{tpu_custom_call.1} parent=5 // pred_check_branch
        %159 = sbr.rel (%p157) target = $region24
      $region23: #{tpu_custom_call.1} parent=5 // pred_region
        // Predicated region
        $region25: #{tpu_custom_call.1} parent=23 // pred_check
          %p160 = pneg %p62
        $region26: #{tpu_custom_call.1} parent=23 // pred_check_branch
          %162 = sbr.rel (%p160) target = $region28
        $region27: #{tpu_custom_call.1} parent=23 // pred_region
          %p163 = scmp.lt.s32.totalorder %s21, 1
          %s164 = scalar_select %p163, %s21, 1
          %s165 = smul.addr %s164, 8
          %s166 = scalar_lea.vmem %s2, %s165
        $region28: #{tpu_custom_call.1} parent=23 // pred_fallthru
          _
      $region24: #{tpu_custom_call.1} parent=5 // pred_fallthru
        _
      %p167 = scmp.le.s32.totalorder 1, %s21
      %p168 = scmp.lt.s32.totalorder %s21, 3
      %p169 = pnand %p167, %p168
      %p170 = pneg %p169
      // Predicated region
      $region29: #{tpu_custom_call.1} parent=5 // pred_check
        _
      $region30: #{tpu_custom_call.1} parent=5 // pred_check_branch
        %172 = sbr.rel (%p169) target = $region32
      $region31: #{tpu_custom_call.1} parent=5 // pred_region
        %s173 = ssub.s32 %s21, 1
        // Predicated region
        $region33: #{tpu_custom_call.1} parent=31 // pred_check
          %p174 = pneg %p42
        $region34: #{tpu_custom_call.1} parent=31 // pred_check_branch
          %176 = sbr.rel (%p174) target = $region36
        $region35: #{tpu_custom_call.1} parent=31 // pred_region
          %177 = dma.done [#allocation6], 512
        $region36: #{tpu_custom_call.1} parent=31 // pred_fallthru
          _
        // Predicated region
        $region37: #{tpu_custom_call.1} parent=31 // pred_check
          %p178 = pneg %p89
        $region38: #{tpu_custom_call.1} parent=31 // pred_check_branch
          %180 = sbr.rel (%p178) target = $region40
        $region39: #{tpu_custom_call.1} parent=31 // pred_region
          %181 = dma.done [#allocation9], 3200
        $region40: #{tpu_custom_call.1} parent=31 // pred_fallthru
          _
        %p182 = pneg %p42
        %p183 = pneg %p39
        %p184 = scmp.lt.s32.totalorder %s26, 1
        %s185 = scalar_select %p184, %s26, 1
        %s186 = smul.addr %s185, 8
        %s187 = scalar_lea.vmem %s2, %s186
        %p188 = pneg %p68
        %p189 = pneg %p65
        %p190 = pneg %p89
        %p191 = pneg %p86
        %p192 = pneg %p115
        %p193 = pneg %p112
        %s194 = sand.u32 %s102, 1
        %s195 = scalar_lea.sflag [#allocation7], %s194
        %s196 = sand.u32 %s102, 1
        %s197 = smul.addr %s196, 8
        %s198 = scalar_lea.vmem [#allocation10], %s197
        %p199 = scmp.lt.s32.totalorder %s26, 1
        %s200 = scalar_select %p199, %s26, 1
        %s201 = smul.addr %s200, 8
        %s202 = scalar_lea.vmem %s2, %s201
        %s203 = smul.u32 %s26, 8
        %s204 = smul.u32 %s203, 128
        %s205 = sld [smem:[#allocation4 + %s204]]
        %p206 = scmp.gt.s32.totalorder %s205, 0
        %s207 = scalar_select %p206, %s205, 0
        %p208 = scmp.lt.s32.totalorder %s207, 31
        %s209 = scalar_select %p208, %s207, 31
        %s210 = scalar_lea.vmem [#allocation5], %s209
        %v211 = vld [vmem:[%s210] sm:$0x1]
        %212 = vst [vmem:[#allocation2] sm:$0x1] %v211
        %s213 = sadd.s32 %s203, 1
        %s214 = smul.u32 %s213, 128
        %s215 = sld [smem:[#allocation4 + %s214]]
        %p216 = scmp.gt.s32.totalorder %s215, 0
        %s217 = scalar_select %p216, %s215, 0
        %p218 = scmp.lt.s32.totalorder %s217, 31
        %s219 = scalar_select %p218, %s217, 31
        %s220 = scalar_lea.vmem [#allocation5], %s219
        %v221 = vld [vmem:[%s220] sm:$0x1]
        %222 = vst [vmem:[#allocation2 + $0x1] sm:$0x1] %v221
        %s223 = sadd.s32 %s203, 2
        %s224 = smul.u32 %s223, 128
        %s225 = sld [smem:[#allocation4 + %s224]]
        %p226 = scmp.gt.s32.totalorder %s225, 0
        %s227 = scalar_select %p226, %s225, 0
        %p228 = scmp.lt.s32.totalorder %s227, 31
        %s229 = scalar_select %p228, %s227, 31
        %s230 = scalar_lea.vmem [#allocation5], %s229
        %v231 = vld [vmem:[%s230] sm:$0x1]
        %232 = vst [vmem:[#allocation2 + $0x2] sm:$0x1] %v231
        %s233 = sadd.s32 %s203, 3
        %s234 = smul.u32 %s233, 128
        %s235 = sld [smem:[#allocation4 + %s234]]
        %p236 = scmp.gt.s32.totalorder %s235, 0
        %s237 = scalar_select %p236, %s235, 0
        %p238 = scmp.lt.s32.totalorder %s237, 31
        %s239 = scalar_select %p238, %s237, 31
        %s240 = scalar_lea.vmem [#allocation5], %s239
        %v241 = vld [vmem:[%s240] sm:$0x1]
        %242 = vst [vmem:[#allocation2 + $0x3] sm:$0x1] %v241
        %s243 = sadd.s32 %s203, 4
        %s244 = smul.u32 %s243, 128
        %s245 = sld [smem:[#allocation4 + %s244]]
        %p246 = scmp.gt.s32.totalorder %s245, 0
        %s247 = scalar_select %p246, %s245, 0
        %p248 = scmp.lt.s32.totalorder %s247, 31
        %s249 = scalar_select %p248, %s247, 31
        %s250 = scalar_lea.vmem [#allocation5], %s249
        %v251 = vld [vmem:[%s250] sm:$0x1]
        %252 = vst [vmem:[#allocation2 + $0x4] sm:$0x1] %v251
        %s253 = sadd.s32 %s203, 5
        %s254 = smul.u32 %s253, 128
        %s255 = sld [smem:[#allocation4 + %s254]]
        %p256 = scmp.gt.s32.totalorder %s255, 0
        %s257 = scalar_select %p256, %s255, 0
        %p258 = scmp.lt.s32.totalorder %s257, 31
        %s259 = scalar_select %p258, %s257, 31
        %s260 = scalar_lea.vmem [#allocation5], %s259
        %v261 = vld [vmem:[%s260] sm:$0x1]
        %262 = vst [vmem:[#allocation2 + $0x5] sm:$0x1] %v261
        %s263 = sadd.s32 %s203, 6
        %s264 = smul.u32 %s263, 128
        %s265 = sld [smem:[#allocation4 + %s264]]
        %p266 = scmp.gt.s32.totalorder %s265, 0
        %s267 = scalar_select %p266, %s265, 0
        %p268 = scmp.lt.s32.totalorder %s267, 31
        %s269 = scalar_select %p268, %s267, 31
        %s270 = scalar_lea.vmem [#allocation5], %s269
        %v271 = vld [vmem:[%s270] sm:$0x1]
        %272 = vst [vmem:[#allocation2 + $0x6] sm:$0x1] %v271
        %s273 = sadd.s32 %s203, 7
        %s274 = smul.u32 %s273, 128
        %s275 = sld [smem:[#allocation4 + %s274]]
        %p276 = scmp.gt.s32.totalorder %s275, 0
        %s277 = scalar_select %p276, %s275, 0
        %p278 = scmp.lt.s32.totalorder %s277, 31
        %s279 = scalar_select %p278, %s277, 31
        %s280 = scalar_lea.vmem [#allocation5], %s279
        %v281 = vld [vmem:[%s280] sm:$0x1]
        %282 = vst [vmem:[#allocation2 + $0x7] sm:$0x1] %v281
        %s283 = sadd.s32 %s204, 1
        %s284 = sld [smem:[#allocation4 + %s283]]
        %p285 = scmp.gt.s32.totalorder %s284, 0
        %s286 = scalar_select %p285, %s284, 0
        %p287 = scmp.lt.s32.totalorder %s286, 31
        %s288 = scalar_select %p287, %s286, 31
        %s289 = scalar_lea.vmem [#allocation5], %s288
        %v290 = vld [vmem:[%s289] sm:$0x1]
        %291 = vst [vmem:[#allocation2 + $0x8] sm:$0x1] %v290
        %s292 = sadd.s32 %s214, 1
        %s293 = sld [smem:[#allocation4 + %s292]]
        %p294 = scmp.gt.s32.totalorder %s293, 0
        %s295 = scalar_select %p294, %s293, 0
        %p296 = scmp.lt.s32.totalorder %s295, 31
        %s297 = scalar_select %p296, %s295, 31
        %s298 = scalar_lea.vmem [#allocation5], %s297
        %v299 = vld [vmem:[%s298] sm:$0x1]
        %300 = vst [vmem:[#allocation2 + $0x9] sm:$0x1] %v299
        %s301 = sadd.s32 %s224, 1
        %s302 = sld [smem:[#allocation4 + %s301]]
        %p303 = scmp.gt.s32.totalorder %s302, 0
        %s304 = scalar_select %p303, %s302, 0
        %p305 = scmp.lt.s32.totalorder %s304, 31
        %s306 = scalar_select %p305, %s304, 31
        %s307 = scalar_lea.vmem [#allocation5], %s306
        %v308 = vld [vmem:[%s307] sm:$0x1]
        %309 = vst [vmem:[#allocation2 + $0xa] sm:$0x1] %v308
        %s310 = sadd.s32 %s234, 1
        %s311 = sld [smem:[#allocation4 + %s310]]
        %p312 = scmp.gt.s32.totalorder %s311, 0
        %s313 = scalar_select %p312, %s311, 0
        %p314 = scmp.lt.s32.totalorder %s313, 31
        %s315 = scalar_select %p314, %s313, 31
        %s316 = scalar_lea.vmem [#allocation5], %s315
        %v317 = vld [vmem:[%s316] sm:$0x1]
        %318 = vst [vmem:[#allocation2 + $0xb] sm:$0x1] %v317
        %s319 = sadd.s32 %s244, 1
        %s320 = sld [smem:[#allocation4 + %s319]]
        %p321 = scmp.gt.s32.totalorder %s320, 0
        %s322 = scalar_select %p321, %s320, 0
        %p323 = scmp.lt.s32.totalorder %s322, 31
        %s324 = scalar_select %p323, %s322, 31
        %s325 = scalar_lea.vmem [#allocation5], %s324
        %v326 = vld [vmem:[%s325] sm:$0x1]
        %327 = vst [vmem:[#allocation2 + $0xc] sm:$0x1] %v326
        %s328 = sadd.s32 %s254, 1
        %s329 = sld [smem:[#allocation4 + %s328]]
        %p330 = scmp.gt.s32.totalorder %s329, 0
        %s331 = scalar_select %p330, %s329, 0
        %p332 = scmp.lt.s32.totalorder %s331, 31
        %s333 = scalar_select %p332, %s331, 31
        %s334 = scalar_lea.vmem [#allocation5], %s333
        %v335 = vld [vmem:[%s334] sm:$0x1]
        %336 = vst [vmem:[#allocation2 + $0xd] sm:$0x1] %v335
        %s337 = sadd.s32 %s264, 1
        %s338 = sld [smem:[#allocation4 + %s337]]
        %p339 = scmp.gt.s32.totalorder %s338, 0
        %s340 = scalar_select %p339, %s338, 0
        %p341 = scmp.lt.s32.totalorder %s340, 31
        %s342 = scalar_select %p341, %s340, 31
        %s343 = scalar_lea.vmem [#allocation5], %s342
        %v344 = vld [vmem:[%s343] sm:$0x1]
        %345 = vst [vmem:[#allocation2 + $0xe] sm:$0x1] %v344
        %s346 = sadd.s32 %s274, 1
        %s347 = sld [smem:[#allocation4 + %s346]]
        %p348 = scmp.gt.s32.totalorder %s347, 0
        %s349 = scalar_select %p348, %s347, 0
        %p350 = scmp.lt.s32.totalorder %s349, 31
        %s351 = scalar_select %p350, %s349, 31
        %s352 = scalar_lea.vmem [#allocation5], %s351
        %v353 = vld [vmem:[%s352] sm:$0x1]
        %354 = vst [vmem:[#allocation2 + $0xf] sm:$0x1] %v353
        %s355 = sadd.s32 %s204, 2
        %s356 = sld [smem:[#allocation4 + %s355]]
        %p357 = scmp.gt.s32.totalorder %s356, 0
        %s358 = scalar_select %p357, %s356, 0
        %p359 = scmp.lt.s32.totalorder %s358, 31
        %s360 = scalar_select %p359, %s358, 31
        %s361 = scalar_lea.vmem [#allocation5], %s360
        %v362 = vld [vmem:[%s361] sm:$0x1]
        %363 = vst [vmem:[#allocation2 + $0x10] sm:$0x1] %v362
        %s364 = sadd.s32 %s214, 2
        %s365 = sld [smem:[#allocation4 + %s364]]
        %p366 = scmp.gt.s32.totalorder %s365, 0
        %s367 = scalar_select %p366, %s365, 0
        %p368 = scmp.lt.s32.totalorder %s367, 31
        %s369 = scalar_select %p368, %s367, 31
        %s370 = scalar_lea.vmem [#allocation5], %s369
        %v371 = vld [vmem:[%s370] sm:$0x1]
        %372 = vst [vmem:[#allocation2 + $0x11] sm:$0x1] %v371
        %s373 = sadd.s32 %s224, 2
        %s374 = sld [smem:[#allocation4 + %s373]]
        %p375 = scmp.gt.s32.totalorder %s374, 0
        %s376 = scalar_select %p375, %s374, 0
        %p377 = scmp.lt.s32.totalorder %s376, 31
        %s378 = scalar_select %p377, %s376, 31
        %s379 = scalar_lea.vmem [#allocation5], %s378
        %v380 = vld [vmem:[%s379] sm:$0x1]
        %381 = vst [vmem:[#allocation2 + $0x12] sm:$0x1] %v380
        %s382 = sadd.s32 %s234, 2
        %s383 = sld [smem:[#allocation4 + %s382]]
        %p384 = scmp.gt.s32.totalorder %s383, 0
        %s385 = scalar_select %p384, %s383, 0
        %p386 = scmp.lt.s32.totalorder %s385, 31
        %s387 = scalar_select %p386, %s385, 31
        %s388 = scalar_lea.vmem [#allocation5], %s387
        %v389 = vld [vmem:[%s388] sm:$0x1]
        %390 = vst [vmem:[#allocation2 + $0x13] sm:$0x1] %v389
        %s391 = sadd.s32 %s244, 2
        %s392 = sld [smem:[#allocation4 + %s391]]
        %p393 = scmp.gt.s32.totalorder %s392, 0
        %s394 = scalar_select %p393, %s392, 0
        %p395 = scmp.lt.s32.totalorder %s394, 31
        %s396 = scalar_select %p395, %s394, 31
        %s397 = scalar_lea.vmem [#allocation5], %s396
        %v398 = vld [vmem:[%s397] sm:$0x1]
        %399 = vst [vmem:[#allocation2 + $0x14] sm:$0x1] %v398
        %s400 = sadd.s32 %s254, 2
        %s401 = sld [smem:[#allocation4 + %s400]]
        %p402 = scmp.gt.s32.totalorder %s401, 0
        %s403 = scalar_select %p402, %s401, 0
        %p404 = scmp.lt.s32.totalorder %s403, 31
        %s405 = scalar_select %p404, %s403, 31
        %s406 = scalar_lea.vmem [#allocation5], %s405
        %v407 = vld [vmem:[%s406] sm:$0x1]
        %408 = vst [vmem:[#allocation2 + $0x15] sm:$0x1] %v407
        %s409 = sadd.s32 %s264, 2
        %s410 = sld [smem:[#allocation4 + %s409]]
        %p411 = scmp.gt.s32.totalorder %s410, 0
        %s412 = scalar_select %p411, %s410, 0
        %p413 = scmp.lt.s32.totalorder %s412, 31
        %s414 = scalar_select %p413, %s412, 31
        %s415 = scalar_lea.vmem [#allocation5], %s414
        %v416 = vld [vmem:[%s415] sm:$0x1]
        %417 = vst [vmem:[#allocation2 + $0x16] sm:$0x1] %v416
        %s418 = sadd.s32 %s274, 2
        %s419 = sld [smem:[#allocation4 + %s418]]
        %p420 = scmp.gt.s32.totalorder %s419, 0
        %s421 = scalar_select %p420, %s419, 0
        %p422 = scmp.lt.s32.totalorder %s421, 31
        %s423 = scalar_select %p422, %s421, 31
        %s424 = scalar_lea.vmem [#allocation5], %s423
        %v425 = vld [vmem:[%s424] sm:$0x1]
        %426 = vst [vmem:[#allocation2 + $0x17] sm:$0x1] %v425
        %s427 = sadd.s32 %s204, 3
        %s428 = sld [smem:[#allocation4 + %s427]]
        %p429 = scmp.gt.s32.totalorder %s428, 0
        %s430 = scalar_select %p429, %s428, 0
        %p431 = scmp.lt.s32.totalorder %s430, 31
        %s432 = scalar_select %p431, %s430, 31
        %s433 = scalar_lea.vmem [#allocation5], %s432
        %v434 = vld [vmem:[%s433] sm:$0x1]
        %435 = vst [vmem:[#allocation2 + $0x18] sm:$0x1] %v434
        %s436 = sadd.s32 %s214, 3
        %s437 = sld [smem:[#allocation4 + %s436]]
        %p438 = scmp.gt.s32.totalorder %s437, 0
        %s439 = scalar_select %p438, %s437, 0
        %p440 = scmp.lt.s32.totalorder %s439, 31
        %s441 = scalar_select %p440, %s439, 31
        %s442 = scalar_lea.vmem [#allocation5], %s441
        %v443 = vld [vmem:[%s442] sm:$0x1]
        %444 = vst [vmem:[#allocation2 + $0x19] sm:$0x1] %v443
        %s445 = sadd.s32 %s224, 3
        %s446 = sld [smem:[#allocation4 + %s445]]
        %p447 = scmp.gt.s32.totalorder %s446, 0
        %s448 = scalar_select %p447, %s446, 0
        %p449 = scmp.lt.s32.totalorder %s448, 31
        %s450 = scalar_select %p449, %s448, 31
        %s451 = scalar_lea.vmem [#allocation5], %s450
        %v452 = vld [vmem:[%s451] sm:$0x1]
        %453 = vst [vmem:[#allocation2 + $0x1a] sm:$0x1] %v452
        %s454 = sadd.s32 %s234, 3
        %s455 = sld [smem:[#allocation4 + %s454]]
        %p456 = scmp.gt.s32.totalorder %s455, 0
        %s457 = scalar_select %p456, %s455, 0
        %p458 = scmp.lt.s32.totalorder %s457, 31
        %s459 = scalar_select %p458, %s457, 31
        %s460 = scalar_lea.vmem [#allocation5], %s459
        %v461 = vld [vmem:[%s460] sm:$0x1]
        %462 = vst [vmem:[#allocation2 + $0x1b] sm:$0x1] %v461
        %s463 = sadd.s32 %s244, 3
        %s464 = sld [smem:[#allocation4 + %s463]]
        %p465 = scmp.gt.s32.totalorder %s464, 0
        %s466 = scalar_select %p465, %s464, 0
        %p467 = scmp.lt.s32.totalorder %s466, 31
        %s468 = scalar_select %p467, %s466, 31
        %s469 = scalar_lea.vmem [#allocation5], %s468
        %v470 = vld [vmem:[%s469] sm:$0x1]
        %471 = vst [vmem:[#allocation2 + $0x1c] sm:$0x1] %v470
        %s472 = sadd.s32 %s254, 3
        %s473 = sld [smem:[#allocation4 + %s472]]
        %p474 = scmp.gt.s32.totalorder %s473, 0
        %s475 = scalar_select %p474, %s473, 0
        %p476 = scmp.lt.s32.totalorder %s475, 31
        %s477 = scalar_select %p476, %s475, 31
        %s478 = scalar_lea.vmem [#allocation5], %s477
        %v479 = vld [vmem:[%s478] sm:$0x1]
        %480 = vst [vmem:[#allocation2 + $0x1d] sm:$0x1] %v479
        %s481 = sadd.s32 %s264, 3
        %s482 = sld [smem:[#allocation4 + %s481]]
        %p483 = scmp.gt.s32.totalorder %s482, 0
        %s484 = scalar_select %p483, %s482, 0
        %p485 = scmp.lt.s32.totalorder %s484, 31
        %s486 = scalar_select %p485, %s484, 31
        %s487 = scalar_lea.vmem [#allocation5], %s486
        %v488 = vld [vmem:[%s487] sm:$0x1]
        %489 = vst [vmem:[#allocation2 + $0x1e] sm:$0x1] %v488
        %s490 = sadd.s32 %s274, 3
        %s491 = sld [smem:[#allocation4 + %s490]]
        %p492 = scmp.gt.s32.totalorder %s491, 0
        %s493 = scalar_select %p492, %s491, 0
        %p494 = scmp.lt.s32.totalorder %s493, 31
        %s495 = scalar_select %p494, %s493, 31
        %s496 = scalar_lea.vmem [#allocation5], %s495
        %v497 = vld [vmem:[%s496] sm:$0x1]
        %498 = vst [vmem:[#allocation2 + $0x1f] sm:$0x1] %v497
        %s499 = sadd.s32 %s204, 4
        %s500 = sld [smem:[#allocation4 + %s499]]
        %p501 = scmp.gt.s32.totalorder %s500, 0
        %s502 = scalar_select %p501, %s500, 0
        %p503 = scmp.lt.s32.totalorder %s502, 31
        %s504 = scalar_select %p503, %s502, 31
        %s505 = scalar_lea.vmem [#allocation5], %s504
        %v506 = vld [vmem:[%s505] sm:$0x1]
        %507 = vst [vmem:[#allocation2 + $0x20] sm:$0x1] %v506
        %s508 = sadd.s32 %s214, 4
        %s509 = sld [smem:[#allocation4 + %s508]]
        %p510 = scmp.gt.s32.totalorder %s509, 0
        %s511 = scalar_select %p510, %s509, 0
        %p512 = scmp.lt.s32.totalorder %s511, 31
        %s513 = scalar_select %p512, %s511, 31
        %s514 = scalar_lea.vmem [#allocation5], %s513
        %v515 = vld [vmem:[%s514] sm:$0x1]
        %516 = vst [vmem:[#allocation2 + $0x21] sm:$0x1] %v515
        %s517 = sadd.s32 %s224, 4
        %s518 = sld [smem:[#allocation4 + %s517]]
        %p519 = scmp.gt.s32.totalorder %s518, 0
        %s520 = scalar_select %p519, %s518, 0
        %p521 = scmp.lt.s32.totalorder %s520, 31
        %s522 = scalar_select %p521, %s520, 31
        %s523 = scalar_lea.vmem [#allocation5], %s522
        %v524 = vld [vmem:[%s523] sm:$0x1]
        %525 = vst [vmem:[#allocation2 + $0x22] sm:$0x1] %v524
        %s526 = sadd.s32 %s234, 4
        %s527 = sld [smem:[#allocation4 + %s526]]
        %p528 = scmp.gt.s32.totalorder %s527, 0
        %s529 = scalar_select %p528, %s527, 0
        %p530 = scmp.lt.s32.totalorder %s529, 31
        %s531 = scalar_select %p530, %s529, 31
        %s532 = scalar_lea.vmem [#allocation5], %s531
        %v533 = vld [vmem:[%s532] sm:$0x1]
        %534 = vst [vmem:[#allocation2 + $0x23] sm:$0x1] %v533
        %s535 = sadd.s32 %s244, 4
        %s536 = sld [smem:[#allocation4 + %s535]]
        %p537 = scmp.gt.s32.totalorder %s536, 0
        %s538 = scalar_select %p537, %s536, 0
        %p539 = scmp.lt.s32.totalorder %s538, 31
        %s540 = scalar_select %p539, %s538, 31
        %s541 = scalar_lea.vmem [#allocation5], %s540
        %v542 = vld [vmem:[%s541] sm:$0x1]
        %543 = vst [vmem:[#allocation2 + $0x24] sm:$0x1] %v542
        %s544 = sadd.s32 %s254, 4
        %s545 = sld [smem:[#allocation4 + %s544]]
        %p546 = scmp.gt.s32.totalorder %s545, 0
        %s547 = scalar_select %p546, %s545, 0
        %p548 = scmp.lt.s32.totalorder %s547, 31
        %s549 = scalar_select %p548, %s547, 31
        %s550 = scalar_lea.vmem [#allocation5], %s549
        %v551 = vld [vmem:[%s550] sm:$0x1]
        %552 = vst [vmem:[#allocation2 + $0x25] sm:$0x1] %v551
        %s553 = sadd.s32 %s264, 4
        %s554 = sld [smem:[#allocation4 + %s553]]
        %p555 = scmp.gt.s32.totalorder %s554, 0
        %s556 = scalar_select %p555, %s554, 0
        %p557 = scmp.lt.s32.totalorder %s556, 31
        %s558 = scalar_select %p557, %s556, 31
        %s559 = scalar_lea.vmem [#allocation5], %s558
        %v560 = vld [vmem:[%s559] sm:$0x1]
        %561 = vst [vmem:[#allocation2 + $0x26] sm:$0x1] %v560
        %s562 = sadd.s32 %s274, 4
        %s563 = sld [smem:[#allocation4 + %s562]]
        %p564 = scmp.gt.s32.totalorder %s563, 0
        %s565 = scalar_select %p564, %s563, 0
        %p566 = scmp.lt.s32.totalorder %s565, 31
        %s567 = scalar_select %p566, %s565, 31
        %s568 = scalar_lea.vmem [#allocation5], %s567
        %v569 = vld [vmem:[%s568] sm:$0x1]
        %570 = vst [vmem:[#allocation2 + $0x27] sm:$0x1] %v569
        %s571 = sadd.s32 %s204, 5
        %s572 = sld [smem:[#allocation4 + %s571]]
        %p573 = scmp.gt.s32.totalorder %s572, 0
        %s574 = scalar_select %p573, %s572, 0
        %p575 = scmp.lt.s32.totalorder %s574, 31
        %s576 = scalar_select %p575, %s574, 31
        %s577 = scalar_lea.vmem [#allocation5], %s576
        %v578 = vld [vmem:[%s577] sm:$0x1]
        %579 = vst [vmem:[#allocation2 + $0x28] sm:$0x1] %v578
        %s580 = sadd.s32 %s214, 5
        %s581 = sld [smem:[#allocation4 + %s580]]
        %p582 = scmp.gt.s32.totalorder %s581, 0
        %s583 = scalar_select %p582, %s581, 0
        %p584 = scmp.lt.s32.totalorder %s583, 31
        %s585 = scalar_select %p584, %s583, 31
        %s586 = scalar_lea.vmem [#allocation5], %s585
        %v587 = vld [vmem:[%s586] sm:$0x1]
        %588 = vst [vmem:[#allocation2 + $0x29] sm:$0x1] %v587
        %s589 = sadd.s32 %s224, 5
        %s590 = sld [smem:[#allocation4 + %s589]]
        %p591 = scmp.gt.s32.totalorder %s590, 0
        %s592 = scalar_select %p591, %s590, 0
        %p593 = scmp.lt.s32.totalorder %s592, 31
        %s594 = scalar_select %p593, %s592, 31
        %s595 = scalar_lea.vmem [#allocation5], %s594
        %v596 = vld [vmem:[%s595] sm:$0x1]
        %597 = vst [vmem:[#allocation2 + $0x2a] sm:$0x1] %v596
        %s598 = sadd.s32 %s234, 5
        %s599 = sld [smem:[#allocation4 + %s598]]
        %p600 = scmp.gt.s32.totalorder %s599, 0
        %s601 = scalar_select %p600, %s599, 0
        %p602 = scmp.lt.s32.totalorder %s601, 31
        %s603 = scalar_select %p602, %s601, 31
        %s604 = scalar_lea.vmem [#allocation5], %s603
        %v605 = vld [vmem:[%s604] sm:$0x1]
        %606 = vst [vmem:[#allocation2 + $0x2b] sm:$0x1] %v605
        %s607 = sadd.s32 %s244, 5
        %s608 = sld [smem:[#allocation4 + %s607]]
        %p609 = scmp.gt.s32.totalorder %s608, 0
        %s610 = scalar_select %p609, %s608, 0
        %p611 = scmp.lt.s32.totalorder %s610, 31
        %s612 = scalar_select %p611, %s610, 31
        %s613 = scalar_lea.vmem [#allocation5], %s612
        %v614 = vld [vmem:[%s613] sm:$0x1]
        %615 = vst [vmem:[#allocation2 + $0x2c] sm:$0x1] %v614
        %s616 = sadd.s32 %s254, 5
        %s617 = sld [smem:[#allocation4 + %s616]]
        %p618 = scmp.gt.s32.totalorder %s617, 0
        %s619 = scalar_select %p618, %s617, 0
        %p620 = scmp.lt.s32.totalorder %s619, 31
        %s621 = scalar_select %p620, %s619, 31
        %s622 = scalar_lea.vmem [#allocation5], %s621
        %v623 = vld [vmem:[%s622] sm:$0x1]
        %624 = vst [vmem:[#allocation2 + $0x2d] sm:$0x1] %v623
        %s625 = sadd.s32 %s264, 5
        %s626 = sld [smem:[#allocation4 + %s625]]
        %p627 = scmp.gt.s32.totalorder %s626, 0
        %s628 = scalar_select %p627, %s626, 0
        %p629 = scmp.lt.s32.totalorder %s628, 31
        %s630 = scalar_select %p629, %s628, 31
        %s631 = scalar_lea.vmem [#allocation5], %s630
        %v632 = vld [vmem:[%s631] sm:$0x1]
        %633 = vst [vmem:[#allocation2 + $0x2e] sm:$0x1] %v632
        %s634 = sadd.s32 %s274, 5
        %s635 = sld [smem:[#allocation4 + %s634]]
        %p636 = scmp.gt.s32.totalorder %s635, 0
        %s637 = scalar_select %p636, %s635, 0
        %p638 = scmp.lt.s32.totalorder %s637, 31
        %s639 = scalar_select %p638, %s637, 31
        %s640 = scalar_lea.vmem [#allocation5], %s639
        %v641 = vld [vmem:[%s640] sm:$0x1]
        %642 = vst [vmem:[#allocation2 + $0x2f] sm:$0x1] %v641
        %s643 = sadd.s32 %s204, 6
        %s644 = sld [smem:[#allocation4 + %s643]]
        %p645 = scmp.gt.s32.totalorder %s644, 0
        %s646 = scalar_select %p645, %s644, 0
        %p647 = scmp.lt.s32.totalorder %s646, 31
        %s648 = scalar_select %p647, %s646, 31
        %s649 = scalar_lea.vmem [#allocation5], %s648
        %v650 = vld [vmem:[%s649] sm:$0x1]
        %651 = vst [vmem:[#allocation2 + $0x30] sm:$0x1] %v650
        %s652 = sadd.s32 %s214, 6
        %s653 = sld [smem:[#allocation4 + %s652]]
        %p654 = scmp.gt.s32.totalorder %s653, 0
        %s655 = scalar_select %p654, %s653, 0
        %p656 = scmp.lt.s32.totalorder %s655, 31
        %s657 = scalar_select %p656, %s655, 31
        %s658 = scalar_lea.vmem [#allocation5], %s657
        %v659 = vld [vmem:[%s658] sm:$0x1]
        %660 = vst [vmem:[#allocation2 + $0x31] sm:$0x1] %v659
        %s661 = sadd.s32 %s224, 6
        %s662 = sld [smem:[#allocation4 + %s661]]
        %p663 = scmp.gt.s32.totalorder %s662, 0
        %s664 = scalar_select %p663, %s662, 0
        %p665 = scmp.lt.s32.totalorder %s664, 31
        %s666 = scalar_select %p665, %s664, 31
        %s667 = scalar_lea.vmem [#allocation5], %s666
        %v668 = vld [vmem:[%s667] sm:$0x1]
        %669 = vst [vmem:[#allocation2 + $0x32] sm:$0x1] %v668
        %s670 = sadd.s32 %s234, 6
        %s671 = sld [smem:[#allocation4 + %s670]]
        %p672 = scmp.gt.s32.totalorder %s671, 0
        %s673 = scalar_select %p672, %s671, 0
        %p674 = scmp.lt.s32.totalorder %s673, 31
        %s675 = scalar_select %p674, %s673, 31
        %s676 = scalar_lea.vmem [#allocation5], %s675
        %v677 = vld [vmem:[%s676] sm:$0x1]
        %678 = vst [vmem:[#allocation2 + $0x33] sm:$0x1] %v677
        %s679 = sadd.s32 %s244, 6
        %s680 = sld [smem:[#allocation4 + %s679]]
        %p681 = scmp.gt.s32.totalorder %s680, 0
        %s682 = scalar_select %p681, %s680, 0
        %p683 = scmp.lt.s32.totalorder %s682, 31
        %s684 = scalar_select %p683, %s682, 31
        %s685 = scalar_lea.vmem [#allocation5], %s684
        %v686 = vld [vmem:[%s685] sm:$0x1]
        %687 = vst [vmem:[#allocation2 + $0x34] sm:$0x1] %v686
        %s688 = sadd.s32 %s254, 6
        %s689 = sld [smem:[#allocation4 + %s688]]
        %p690 = scmp.gt.s32.totalorder %s689, 0
        %s691 = scalar_select %p690, %s689, 0
        %p692 = scmp.lt.s32.totalorder %s691, 31
        %s693 = scalar_select %p692, %s691, 31
        %s694 = scalar_lea.vmem [#allocation5], %s693
        %v695 = vld [vmem:[%s694] sm:$0x1]
        %696 = vst [vmem:[#allocation2 + $0x35] sm:$0x1] %v695
        %s697 = sadd.s32 %s264, 6
        %s698 = sld [smem:[#allocation4 + %s697]]
        %p699 = scmp.gt.s32.totalorder %s698, 0
        %s700 = scalar_select %p699, %s698, 0
        %p701 = scmp.lt.s32.totalorder %s700, 31
        %s702 = scalar_select %p701, %s700, 31
        %s703 = scalar_lea.vmem [#allocation5], %s702
        %v704 = vld [vmem:[%s703] sm:$0x1]
        %705 = vst [vmem:[#allocation2 + $0x36] sm:$0x1] %v704
        %s706 = sadd.s32 %s274, 6
        %s707 = sld [smem:[#allocation4 + %s706]]
        %p708 = scmp.gt.s32.totalorder %s707, 0
        %s709 = scalar_select %p708, %s707, 0
        %p710 = scmp.lt.s32.totalorder %s709, 31
        %s711 = scalar_select %p710, %s709, 31
        %s712 = scalar_lea.vmem [#allocation5], %s711
        %v713 = vld [vmem:[%s712] sm:$0x1]
        %714 = vst [vmem:[#allocation2 + $0x37] sm:$0x1] %v713
        %s715 = sadd.s32 %s204, 7
        %s716 = sld [smem:[#allocation4 + %s715]]
        %p717 = scmp.gt.s32.totalorder %s716, 0
        %s718 = scalar_select %p717, %s716, 0
        %p719 = scmp.lt.s32.totalorder %s718, 31
        %s720 = scalar_select %p719, %s718, 31
        %s721 = scalar_lea.vmem [#allocation5], %s720
        %v722 = vld [vmem:[%s721] sm:$0x1]
        %723 = vst [vmem:[#allocation2 + $0x38] sm:$0x1] %v722
        %s724 = sadd.s32 %s214, 7
        %s725 = sld [smem:[#allocation4 + %s724]]
        %p726 = scmp.gt.s32.totalorder %s725, 0
        %s727 = scalar_select %p726, %s725, 0
        %p728 = scmp.lt.s32.totalorder %s727, 31
        %s729 = scalar_select %p728, %s727, 31
        %s730 = scalar_lea.vmem [#allocation5], %s729
        %v731 = vld [vmem:[%s730] sm:$0x1]
        %732 = vst [vmem:[#allocation2 + $0x39] sm:$0x1] %v731
        %s733 = sadd.s32 %s224, 7
        %s734 = sld [smem:[#allocation4 + %s733]]
        %p735 = scmp.gt.s32.totalorder %s734, 0
        %s736 = scalar_select %p735, %s734, 0
        %p737 = scmp.lt.s32.totalorder %s736, 31
        %s738 = scalar_select %p737, %s736, 31
        %s739 = scalar_lea.vmem [#allocation5], %s738
        %v740 = vld [vmem:[%s739] sm:$0x1]
        %741 = vst [vmem:[#allocation2 + $0x3a] sm:$0x1] %v740
        %s742 = sadd.s32 %s234, 7
        %s743 = sld [smem:[#allocation4 + %s742]]
        %p744 = scmp.gt.s32.totalorder %s743, 0
        %s745 = scalar_select %p744, %s743, 0
        %p746 = scmp.lt.s32.totalorder %s745, 31
        %s747 = scalar_select %p746, %s745, 31
        %s748 = scalar_lea.vmem [#allocation5], %s747
        %v749 = vld [vmem:[%s748] sm:$0x1]
        %750 = vst [vmem:[#allocation2 + $0x3b] sm:$0x1] %v749
        %s751 = sadd.s32 %s244, 7
        %s752 = sld [smem:[#allocation4 + %s751]]
        %p753 = scmp.gt.s32.totalorder %s752, 0
        %s754 = scalar_select %p753, %s752, 0
        %p755 = scmp.lt.s32.totalorder %s754, 31
        %s756 = scalar_select %p755, %s754, 31
        %s757 = scalar_lea.vmem [#allocation5], %s756
        %v758 = vld [vmem:[%s757] sm:$0x1]
        %759 = vst [vmem:[#allocation2 + $0x3c] sm:$0x1] %v758
        %s760 = sadd.s32 %s254, 7
        %s761 = sld [smem:[#allocation4 + %s760]]
        %p762 = scmp.gt.s32.totalorder %s761, 0
        %s763 = scalar_select %p762, %s761, 0
        %p764 = scmp.lt.s32.totalorder %s763, 31
        %s765 = scalar_select %p764, %s763, 31
        %s766 = scalar_lea.vmem [#allocation5], %s765
        %v767 = vld [vmem:[%s766] sm:$0x1]
        %768 = vst [vmem:[#allocation2 + $0x3d] sm:$0x1] %v767
        %s769 = sadd.s32 %s264, 7
        %s770 = sld [smem:[#allocation4 + %s769]]
        %p771 = scmp.gt.s32.totalorder %s770, 0
        %s772 = scalar_select %p771, %s770, 0
        %p773 = scmp.lt.s32.totalorder %s772, 31
        %s774 = scalar_select %p773, %s772, 31
        %s775 = scalar_lea.vmem [#allocation5], %s774
        %v776 = vld [vmem:[%s775] sm:$0x1]
        %777 = vst [vmem:[#allocation2 + $0x3e] sm:$0x1] %v776
        %s778 = sadd.s32 %s274, 7
        %s779 = sld [smem:[#allocation4 + %s778]]
        %p780 = scmp.gt.s32.totalorder %s779, 0
        %s781 = scalar_select %p780, %s779, 0
        %p782 = scmp.lt.s32.totalorder %s781, 31
        %s783 = scalar_select %p782, %s781, 31
        %s784 = scalar_lea.vmem [#allocation5], %s783
        %v785 = vld [vmem:[%s784] sm:$0x1]
        %786 = vst [vmem:[#allocation2 + $0x3f] sm:$0x1] %v785
        %v787 = vld [vmem:[#allocation8] sm:$0xff]
        %v788 = vld [vmem:[#allocation8 + $0x8] sm:$0xff]
        %v789 = vld [vmem:[#allocation8 + $0x10] sm:$0xff]
        %v790 = vld [vmem:[#allocation8 + $0x18] sm:$0xff]
        %v791 = vld [vmem:[#allocation8 + $0xc0] sm:$0xff]
        %v792 = vld [vmem:[#allocation2] sm:$0xff]
        %vm793 = vcmask 261120
        %v795 = vsel %vm793, 0.0, 0
        %797 = vmatprep.subr.mxu0 0.0
        %798 = vmatpush1.msra.mxu0 %v787
        %799 = vmatprep.subr.mxu0 0.0
        %800 = vmatpush1.msra.mxu0 %v788
        %801 = vmatprep.subr.mxu0 0.0
        %802 = vmatpush1.msra.mxu0 %v789
        %803 = vmatprep.subr.mxu0 0.0
        %804 = vmatpush1.msra.mxu0 %v790
        %805 = vmatprep.subr.mxu0 0.0
        %806 = vmatpush1.msra.mxu0 0.0
        %807 = vmatprep.subr.mxu0 0.0
        %808 = vmatpush1.msra.mxu0 0.0
        %809 = vmatprep.subr.mxu0 0.0
        %810 = vmatpush1.msra.mxu0 0.0
        %811 = vmatprep.subr.mxu0 0.0
        %812 = vmatpush1.msra.mxu0 0.0
        %813 = vmatprep.subr.mxu0 0.0
        %814 = vmatpush1.msra.mxu0 0.0
        %815 = vmatprep.subr.mxu0 0.0
        %816 = vmatpush1.msra.mxu0 0.0
        %817 = vmatprep.subr.mxu0 0.0
        %818 = vmatpush1.msra.mxu0 0.0
        %819 = vmatprep.subr.mxu0 0.0
        %820 = vmatpush1.msra.mxu0 0.0
        %821 = vmatprep.subr.mxu0 0.0
        %822 = vmatpush1.msra.mxu0 0.0
        %823 = vmatprep.subr.mxu0 0.0
        %824 = vmatpush1.msra.mxu0 0.0
        %825 = vmatprep.subr.mxu0 0.0
        %826 = vmatpush1.msra.mxu0 0.0
        %827 = vmatprep.subr.mxu0 0.0
        %828 = vmatpush1.msra.mxu0 0.0
        %829 = vmatprep.subr.mxu0 0.0
        %830 = vmatpush1.msra.mxu0 0.0
        %831 = vmatprep.subr.mxu0 0.0
        %832 = vmatpush1.msra.mxu0 0.0
        %833 = vmatprep.subr.mxu0 0.0
        %834 = vmatpush1.msra.mxu0 0.0
        %835 = vmatprep.subr.mxu0 0.0
        %836 = vmatpush1.msra.mxu0 0.0
        %837 = vmatprep.subr.mxu0 0.0
        %838 = vmatpush1.msra.mxu0 0.0
        %839 = vmatprep.subr.mxu0 0.0
        %840 = vmatpush1.msra.mxu0 0.0
        %841 = vmatprep.subr.mxu0 0.0
        %842 = vmatpush1.msra.mxu0 0.0
        %843 = vmatprep.subr.mxu0 0.0
        %844 = vmatpush1.msra.mxu0 0.0
        %845 = vmatprep.subr.mxu0 0.0
        %846 = vmatpush1.msra.mxu0 0.0
        %847 = vmatprep.subr.mxu0 0.0
        %848 = vmatpush1.msra.mxu0 0.0
        %849 = vmatprep.subr.mxu0 0.0
        %850 = vmatpush1.msra.mxu0 0.0
        %851 = vmatprep.subr.mxu0 0.0
        %852 = vmatpush1.msra.mxu0 0.0
        %853 = vmatprep.subr.mxu0 0.0
        %854 = vmatpush1.msra.mxu0 0.0
        %855 = vmatprep.subr.mxu0 0.0
        %856 = vmatpush1.msra.mxu0 0.0
        %857 = vmatprep.subr.mxu0 0.0
        %858 = vmatpush1.msra.mxu0 0.0
        %859 = vmatprep.subr.mxu0 0.0
        %860 = vmatpush1.msra.mxu0 0.0
        %861 = vmatprep.mubr.f32.mxu0 0.0
        %862 = vmatmul.mubr.f32.gmra.mrb[0].mxu0 %v795
        %v863 = vpop.f32.mrb[0].mxu0
        %v864 = vadd.f32 0.0, %v863
        %v865 = vpop.f32.mrb[0].mxu0
        %866 = vdwg.mxu0
        %v867 = vadd.f32 %v792, %v864
        %v868 = vxor.u32 %v867, 2147483648
        %v869 = vmul.f32 %v868, 1.442695
        %v870 = vpow.pop %v869
        %v871 = vadd.f32 %v870, 1.0
        %v872 = vrcp.pop %v871
        %v873 = vmul.f32 1.0, %v872
        %v874 = vtanh.pop %v867
        %v875 = vmul.f32 %v873, 0.0
        %877 = vrot.lane.b32.xlu0 %v874, 64
        %v878 = vpop.permute.xlu0 %877
        %v880 = vmul.f32 %v873, %v878
        %882 = vrot.lane.b32.xlu0 %v880, 32
        %v883 = vpop.permute.xlu0 %882
        %v885 = vadd.f32 %v875, %v883
        %v886 = vtanh.pop %v885
        %888 = vrot.lane.b32.xlu0 %v886, 64
        %v889 = vpop.permute.xlu0 %888
        %v891 = vmul.f32 %v873, %v889
        %v892 = vld [vmem:[#allocation2 + $0x8] sm:$0xff]
        %894 = vrot.lane.b32.xlu0 %v891, 32
        %v895 = vpop.permute.xlu0 %894
        %v896 = vsel %vm793, %v895, 0
        %898 = vmatprep.subr.mxu0 0.0
        %899 = vmatpush1.msra.mxu0 %v787
        %900 = vmatprep.subr.mxu0 0.0
        %901 = vmatpush1.msra.mxu0 %v788
        %902 = vmatprep.subr.mxu0 0.0
        %903 = vmatpush1.msra.mxu0 %v789
        %904 = vmatprep.subr.mxu0 0.0
        %905 = vmatpush1.msra.mxu0 %v790
        %906 = vmatprep.subr.mxu0 0.0
        %907 = vmatpush1.msra.mxu0 0.0
        %908 = vmatprep.subr.mxu0 0.0
        %909 = vmatpush1.msra.mxu0 0.0
        %910 = vmatprep.subr.mxu0 0.0
        %911 = vmatpush1.msra.mxu0 0.0
        %912 = vmatprep.subr.mxu0 0.0
        %913 = vmatpush1.msra.mxu0 0.0
        %914 = vmatprep.subr.mxu0 0.0
        %915 = vmatpush1.msra.mxu0 0.0
        %916 = vmatprep.subr.mxu0 0.0
        %917 = vmatpush1.msra.mxu0 0.0
        %918 = vmatprep.subr.mxu0 0.0
        %919 = vmatpush1.msra.mxu0 0.0
        %920 = vmatprep.subr.mxu0 0.0
        %921 = vmatpush1.msra.mxu0 0.0
        %922 = vmatprep.subr.mxu0 0.0
        %923 = vmatpush1.msra.mxu0 0.0
        %924 = vmatprep.subr.mxu0 0.0
        %925 = vmatpush1.msra.mxu0 0.0
        %926 = vmatprep.subr.mxu0 0.0
        %927 = vmatpush1.msra.mxu0 0.0
        %928 = vmatprep.subr.mxu0 0.0
        %929 = vmatpush1.msra.mxu0 0.0
        %930 = vmatprep.subr.mxu0 0.0
        %931 = vmatpush1.msra.mxu0 0.0
        %932 = vmatprep.subr.mxu0 0.0
        %933 = vmatpush1.msra.mxu0 0.0
        %934 = vmatprep.subr.mxu0 0.0
        %935 = vmatpush1.msra.mxu0 0.0
        %936 = vmatprep.subr.mxu0 0.0
        %937 = vmatpush1.msra.mxu0 0.0
        %938 = vmatprep.subr.mxu0 0.0
        %939 = vmatpush1.msra.mxu0 0.0
        %940 = vmatprep.subr.mxu0 0.0
        %941 = vmatpush1.msra.mxu0 0.0
        %942 = vmatprep.subr.mxu0 0.0
        %943 = vmatpush1.msra.mxu0 0.0
        %944 = vmatprep.subr.mxu0 0.0
        %945 = vmatpush1.msra.mxu0 0.0
        %946 = vmatprep.subr.mxu0 0.0
        %947 = vmatpush1.msra.mxu0 0.0
        %948 = vmatprep.subr.mxu0 0.0
        %949 = vmatpush1.msra.mxu0 0.0
        %950 = vmatprep.subr.mxu0 0.0
        %951 = vmatpush1.msra.mxu0 0.0
        %952 = vmatprep.subr.mxu0 0.0
        %953 = vmatpush1.msra.mxu0 0.0
        %954 = vmatprep.subr.mxu0 0.0
        %955 = vmatpush1.msra.mxu0 0.0
        %956 = vmatprep.subr.mxu0 0.0
        %957 = vmatpush1.msra.mxu0 0.0
        %958 = vmatprep.subr.mxu0 0.0
        %959 = vmatpush1.msra.mxu0 0.0
        %960 = vmatprep.subr.mxu0 0.0
        %961 = vmatpush1.msra.mxu0 0.0
        %962 = vmatprep.mubr.f32.mxu0 0.0
        %963 = vmatmul.mubr.f32.gmra.mrb[0].mxu0 %v896
        %v964 = vpop.f32.mrb[0].mxu0
        %v965 = vadd.f32 0.0, %v964
        %v966 = vpop.f32.mrb[0].mxu0
        %967 = vdwg.mxu0
        %v968 = vadd.f32 %v892, %v965
        %v969 = vxor.u32 %v968, 2147483648
        %v970 = vmul.f32 %v969, 1.442695
        %v971 = vpow.pop %v970
        %v972 = vadd.f32 %v971, 1.0
        %v973 = vrcp.pop %v972
        %v974 = vmul.f32 1.0, %v973
        %v975 = vtanh.pop %v968
        %v976 = vmul.f32 %v974, %v885
        %978 = vrot.lane.b32.xlu0 %v975, 64
        %v979 = vpop.permute.xlu0 %978
        %v981 = vmul.f32 %v974, %v979
        %983 = vrot.lane.b32.xlu0 %v981, 32
        %v984 = vpop.permute.xlu0 %983
        %v986 = vadd.f32 %v976, %v984
        %v987 = vtanh.pop %v986
        %989 = vrot.lane.b32.xlu0 %v987, 64
        %v990 = vpop.permute.xlu0 %989
        %v992 = vmul.f32 %v974, %v990
        %v993 = vld [vmem:[#allocation2 + $0x10] sm:$0xff]
        %995 = vrot.lane.b32.xlu0 %v992, 32
        %v996 = vpop.permute.xlu0 %995
        %v997 = vsel %vm793, %v996, 0
        %999 = vmatprep.subr.mxu0 0.0
        %1000 = vmatpush1.msra.mxu0 %v787
        %1001 = vmatprep.subr.mxu0 0.0
        %1002 = vmatpush1.msra.mxu0 %v788
        %1003 = vmatprep.subr.mxu0 0.0
        %1004 = vmatpush1.msra.mxu0 %v789
        %1005 = vmatprep.subr.mxu0 0.0
        %1006 = vmatpush1.msra.mxu0 %v790
        %1007 = vmatprep.subr.mxu0 0.0
        %1008 = vmatpush1.msra.mxu0 0.0
        %1009 = vmatprep.subr.mxu0 0.0
        %1010 = vmatpush1.msra.mxu0 0.0
        %1011 = vmatprep.subr.mxu0 0.0
        %1012 = vmatpush1.msra.mxu0 0.0
        %1013 = vmatprep.subr.mxu0 0.0
        %1014 = vmatpush1.msra.mxu0 0.0
        %1015 = vmatprep.subr.mxu0 0.0
        %1016 = vmatpush1.msra.mxu0 0.0
        %1017 = vmatprep.subr.mxu0 0.0
        %1018 = vmatpush1.msra.mxu0 0.0
        %1019 = vmatprep.subr.mxu0 0.0
        %1020 = vmatpush1.msra.mxu0 0.0
        %1021 = vmatprep.subr.mxu0 0.0
        %1022 = vmatpush1.msra.mxu0 0.0
        %1023 = vmatprep.subr.mxu0 0.0
        %1024 = vmatpush1.msra.mxu0 0.0
        %1025 = vmatprep.subr.mxu0 0.0
        %1026 = vmatpush1.msra.mxu0 0.0
        %1027 = vmatprep.subr.mxu0 0.0
        %1028 = vmatpush1.msra.mxu0 0.0
        %1029 = vmatprep.subr.mxu0 0.0
        %1030 = vmatpush1.msra.mxu0 0.0
        %1031 = vmatprep.subr.mxu0 0.0
        %1032 = vmatpush1.msra.mxu0 0.0
        %1033 = vmatprep.subr.mxu0 0.0
        %1034 = vmatpush1.msra.mxu0 0.0
        %1035 = vmatprep.subr.mxu0 0.0
        %1036 = vmatpush1.msra.mxu0 0.0
        %1037 = vmatprep.subr.mxu0 0.0
        %1038 = vmatpush1.msra.mxu0 0.0
        %1039 = vmatprep.subr.mxu0 0.0
        %1040 = vmatpush1.msra.mxu0 0.0
        %1041 = vmatprep.subr.mxu0 0.0
        %1042 = vmatpush1.msra.mxu0 0.0
        %1043 = vmatprep.subr.mxu0 0.0
        %1044 = vmatpush1.msra.mxu0 0.0
        %1045 = vmatprep.subr.mxu0 0.0
        %1046 = vmatpush1.msra.mxu0 0.0
        %1047 = vmatprep.subr.mxu0 0.0
        %1048 = vmatpush1.msra.mxu0 0.0
        %1049 = vmatprep.subr.mxu0 0.0
        %1050 = vmatpush1.msra.mxu0 0.0
        %1051 = vmatprep.subr.mxu0 0.0
        %1052 = vmatpush1.msra.mxu0 0.0
        %1053 = vmatprep.subr.mxu0 0.0
        %1054 = vmatpush1.msra.mxu0 0.0
        %1055 = vmatprep.subr.mxu0 0.0
        %1056 = vmatpush1.msra.mxu0 0.0
        %1057 = vmatprep.subr.mxu0 0.0
        %1058 = vmatpush1.msra.mxu0 0.0
        %1059 = vmatprep.subr.mxu0 0.0
        %1060 = vmatpush1.msra.mxu0 0.0
        %1061 = vmatprep.subr.mxu0 0.0
        %1062 = vmatpush1.msra.mxu0 0.0
        %1063 = vmatprep.mubr.f32.mxu0 0.0
        %1064 = vmatmul.mubr.f32.gmra.mrb[0].mxu0 %v997
        %v1065 = vpop.f32.mrb[0].mxu0
        %v1066 = vadd.f32 0.0, %v1065
        %v1067 = vpop.f32.mrb[0].mxu0
        %1068 = vdwg.mxu0
        %v1069 = vadd.f32 %v993, %v1066
        %v1070 = vxor.u32 %v1069, 2147483648
        %v1071 = vmul.f32 %v1070, 1.442695
        %v1072 = vpow.pop %v1071
        %v1073 = vadd.f32 %v1072, 1.0
        %v1074 = vrcp.pop %v1073
        %v1075 = vmul.f32 1.0, %v1074
        %v1076 = vtanh.pop %v1069
        %v1077 = vmul.f32 %v1075, %v986
        %1079 = vrot.lane.b32.xlu0 %v1076, 64
        %v1080 = vpop.permute.xlu0 %1079
        %v1082 = vmul.f32 %v1075, %v1080
        %1084 = vrot.lane.b32.xlu0 %v1082, 32
        %v1085 = vpop.permute.xlu0 %1084
        %v1087 = vadd.f32 %v1077, %v1085
        %v1088 = vtanh.pop %v1087
        %1090 = vrot.lane.b32.xlu0 %v1088, 64
        %v1091 = vpop.permute.xlu0 %1090
        %v1093 = vmul.f32 %v1075, %v1091
        %v1094 = vld [vmem:[#allocation2 + $0x18] sm:$0xff]
        %1096 = vrot.lane.b32.xlu0 %v1093, 32
        %v1097 = vpop.permute.xlu0 %1096
        %v1098 = vsel %vm793, %v1097, 0
        %1100 = vmatprep.subr.mxu0 0.0
        %1101 = vmatpush1.msra.mxu0 %v787
        %1102 = vmatprep.subr.mxu0 0.0
        %1103 = vmatpush1.msra.mxu0 %v788
        %1104 = vmatprep.subr.mxu0 0.0
        %1105 = vmatpush1.msra.mxu0 %v789
        %1106 = vmatprep.subr.mxu0 0.0
        %1107 = vmatpush1.msra.mxu0 %v790
        %1108 = vmatprep.subr.mxu0 0.0
        %1109 = vmatpush1.msra.mxu0 0.0
        %1110 = vmatprep.subr.mxu0 0.0
        %1111 = vmatpush1.msra.mxu0 0.0
        %1112 = vmatprep.subr.mxu0 0.0
        %1113 = vmatpush1.msra.mxu0 0.0
        %1114 = vmatprep.subr.mxu0 0.0
        %1115 = vmatpush1.msra.mxu0 0.0
        %1116 = vmatprep.subr.mxu0 0.0
        %1117 = vmatpush1.msra.mxu0 0.0
        %1118 = vmatprep.subr.mxu0 0.0
        %1119 = vmatpush1.msra.mxu0 0.0
        %1120 = vmatprep.subr.mxu0 0.0
        %1121 = vmatpush1.msra.mxu0 0.0
        %1122 = vmatprep.subr.mxu0 0.0
        %1123 = vmatpush1.msra.mxu0 0.0
        %1124 = vmatprep.subr.mxu0 0.0
        %1125 = vmatpush1.msra.mxu0 0.0
        %1126 = vmatprep.subr.mxu0 0.0
        %1127 = vmatpush1.msra.mxu0 0.0
        %1128 = vmatprep.subr.mxu0 0.0
        %1129 = vmatpush1.msra.mxu0 0.0
        %1130 = vmatprep.subr.mxu0 0.0
        %1131 = vmatpush1.msra.mxu0 0.0
        %1132 = vmatprep.subr.mxu0 0.0
        %1133 = vmatpush1.msra.mxu0 0.0
        %1134 = vmatprep.subr.mxu0 0.0
        %1135 = vmatpush1.msra.mxu0 0.0
        %1136 = vmatprep.subr.mxu0 0.0
        %1137 = vmatpush1.msra.mxu0 0.0
        %1138 = vmatprep.subr.mxu0 0.0
        %1139 = vmatpush1.msra.mxu0 0.0
        %1140 = vmatprep.subr.mxu0 0.0
        %1141 = vmatpush1.msra.mxu0 0.0
        %1142 = vmatprep.subr.mxu0 0.0
        %1143 = vmatpush1.msra.mxu0 0.0
        %1144 = vmatprep.subr.mxu0 0.0
        %1145 = vmatpush1.msra.mxu0 0.0
        %1146 = vmatprep.subr.mxu0 0.0
        %1147 = vmatpush1.msra.mxu0 0.0
        %1148 = vmatprep.subr.mxu0 0.0
        %1149 = vmatpush1.msra.mxu0 0.0
        %1150 = vmatprep.subr.mxu0 0.0
        %1151 = vmatpush1.msra.mxu0 0.0
        %1152 = vmatprep.subr.mxu0 0.0
        %1153 = vmatpush1.msra.mxu0 0.0
        %1154 = vmatprep.subr.mxu0 0.0
        %1155 = vmatpush1.msra.mxu0 0.0
        %1156 = vmatprep.subr.mxu0 0.0
        %1157 = vmatpush1.msra.mxu0 0.0
        %1158 = vmatprep.subr.mxu0 0.0
        %1159 = vmatpush1.msra.mxu0 0.0
        %1160 = vmatprep.subr.mxu0 0.0
        %1161 = vmatpush1.msra.mxu0 0.0
        %1162 = vmatprep.subr.mxu0 0.0
        %1163 = vmatpush1.msra.mxu0 0.0
        %1164 = vmatprep.mubr.f32.mxu0 0.0
        %1165 = vmatmul.mubr.f32.gmra.mrb[0].mxu0 %v1098
        %v1166 = vpop.f32.mrb[0].mxu0
        %v1167 = vadd.f32 0.0, %v1166
        %v1168 = vpop.f32.mrb[0].mxu0
        %1169 = vdwg.mxu0
        %v1170 = vadd.f32 %v1094, %v1167
        %v1171 = vxor.u32 %v1170, 2147483648
        %v1172 = vmul.f32 %v1171, 1.442695
        %v1173 = vpow.pop %v1172
        %v1174 = vadd.f32 %v1173, 1.0
        %v1175 = vrcp.pop %v1174
        %v1176 = vmul.f32 1.0, %v1175
        %v1177 = vtanh.pop %v1170
        %v1178 = vmul.f32 %v1176, %v1087
        %1180 = vrot.lane.b32.xlu0 %v1177, 64
        %v1181 = vpop.permute.xlu0 %1180
        %v1183 = vmul.f32 %v1176, %v1181
        %1185 = vrot.lane.b32.xlu0 %v1183, 32
        %v1186 = vpop.permute.xlu0 %1185
        %v1188 = vadd.f32 %v1178, %v1186
        %v1189 = vtanh.pop %v1188
        %1191 = vrot.lane.b32.xlu0 %v1189, 64
        %v1192 = vpop.permute.xlu0 %1191
        %v1194 = vmul.f32 %v1176, %v1192
        %v1195 = vld [vmem:[#allocation2 + $0x20] sm:$0xff]
        %1197 = vrot.lane.b32.xlu0 %v1194, 32
        %v1198 = vpop.permute.xlu0 %1197
        %v1199 = vsel %vm793, %v1198, 0
        %1201 = vmatprep.subr.mxu0 0.0
        %1202 = vmatpush1.msra.mxu0 %v787
        %1203 = vmatprep.subr.mxu0 0.0
        %1204 = vmatpush1.msra.mxu0 %v788
        %1205 = vmatprep.subr.mxu0 0.0
        %1206 = vmatpush1.msra.mxu0 %v789
        %1207 = vmatprep.subr.mxu0 0.0
        %1208 = vmatpush1.msra.mxu0 %v790
        %1209 = vmatprep.subr.mxu0 0.0
        %1210 = vmatpush1.msra.mxu0 0.0
        %1211 = vmatprep.subr.mxu0 0.0
        %1212 = vmatpush1.msra.mxu0 0.0
        %1213 = vmatprep.subr.mxu0 0.0
        %1214 = vmatpush1.msra.mxu0 0.0
        %1215 = vmatprep.subr.mxu0 0.0
        %1216 = vmatpush1.msra.mxu0 0.0
        %1217 = vmatprep.subr.mxu0 0.0
        %1218 = vmatpush1.msra.mxu0 0.0
        %1219 = vmatprep.subr.mxu0 0.0
        %1220 = vmatpush1.msra.mxu0 0.0
        %1221 = vmatprep.subr.mxu0 0.0
        %1222 = vmatpush1.msra.mxu0 0.0
        %1223 = vmatprep.subr.mxu0 0.0
        %1224 = vmatpush1.msra.mxu0 0.0
        %1225 = vmatprep.subr.mxu0 0.0
        %1226 = vmatpush1.msra.mxu0 0.0
        %1227 = vmatprep.subr.mxu0 0.0
        %1228 = vmatpush1.msra.mxu0 0.0
        %1229 = vmatprep.subr.mxu0 0.0
        %1230 = vmatpush1.msra.mxu0 0.0
        %1231 = vmatprep.subr.mxu0 0.0
        %1232 = vmatpush1.msra.mxu0 0.0
        %1233 = vmatprep.subr.mxu0 0.0
        %1234 = vmatpush1.msra.mxu0 0.0
        %1235 = vmatprep.subr.mxu0 0.0
        %1236 = vmatpush1.msra.mxu0 0.0
        %1237 = vmatprep.subr.mxu0 0.0
        %1238 = vmatpush1.msra.mxu0 0.0
        %1239 = vmatprep.subr.mxu0 0.0
        %1240 = vmatpush1.msra.mxu0 0.0
        %1241 = vmatprep.subr.mxu0 0.0
        %1242 = vmatpush1.msra.mxu0 0.0
        %1243 = vmatprep.subr.mxu0 0.0
        %1244 = vmatpush1.msra.mxu0 0.0
        %1245 = vmatprep.subr.mxu0 0.0
        %1246 = vmatpush1.msra.mxu0 0.0
        %1247 = vmatprep.subr.mxu0 0.0
        %1248 = vmatpush1.msra.mxu0 0.0
        %1249 = vmatprep.subr.mxu0 0.0
        %1250 = vmatpush1.msra.mxu0 0.0
        %1251 = vmatprep.subr.mxu0 0.0
        %1252 = vmatpush1.msra.mxu0 0.0
        %1253 = vmatprep.subr.mxu0 0.0
        %1254 = vmatpush1.msra.mxu0 0.0
        %1255 = vmatprep.subr.mxu0 0.0
        %1256 = vmatpush1.msra.mxu0 0.0
        %1257 = vmatprep.subr.mxu0 0.0
        %1258 = vmatpush1.msra.mxu0 0.0
        %1259 = vmatprep.subr.mxu0 0.0
        %1260 = vmatpush1.msra.mxu0 0.0
        %1261 = vmatprep.subr.mxu0 0.0
        %1262 = vmatpush1.msra.mxu0 0.0
        %1263 = vmatprep.subr.mxu0 0.0
        %1264 = vmatpush1.msra.mxu0 0.0
        %1265 = vmatprep.mubr.f32.mxu0 0.0
        %1266 = vmatmul.mubr.f32.gmra.mrb[0].mxu0 %v1199
        %v1267 = vpop.f32.mrb[0].mxu0
        %v1268 = vadd.f32 0.0, %v1267
        %v1269 = vpop.f32.mrb[0].mxu0
        %1270 = vdwg.mxu0
        %v1271 = vadd.f32 %v1195, %v1268
        %v1272 = vxor.u32 %v1271, 2147483648
        %v1273 = vmul.f32 %v1272, 1.442695
        %v1274 = vpow.pop %v1273
        %v1275 = vadd.f32 %v1274, 1.0
        %v1276 = vrcp.pop %v1275
        %v1277 = vmul.f32 1.0, %v1276
        %v1278 = vtanh.pop %v1271
        %v1279 = vmul.f32 %v1277, %v1188
        %1281 = vrot.lane.b32.xlu0 %v1278, 64
        %v1282 = vpop.permute.xlu0 %1281
        %v1284 = vmul.f32 %v1277, %v1282
        %1286 = vrot.lane.b32.xlu0 %v1284, 32
        %v1287 = vpop.permute.xlu0 %1286
        %v1289 = vadd.f32 %v1279, %v1287
        %v1290 = vtanh.pop %v1289
        %1292 = vrot.lane.b32.xlu0 %v1290, 64
        %v1293 = vpop.permute.xlu0 %1292
        %v1295 = vmul.f32 %v1277, %v1293
        %v1296 = vld [vmem:[#allocation2 + $0x28] sm:$0xff]
        %1298 = vrot.lane.b32.xlu0 %v1295, 32
        %v1299 = vpop.permute.xlu0 %1298
        %v1300 = vsel %vm793, %v1299, 0
        %1302 = vmatprep.subr.mxu0 0.0
        %1303 = vmatpush1.msra.mxu0 %v787
        %1304 = vmatprep.subr.mxu0 0.0
        %1305 = vmatpush1.msra.mxu0 %v788
        %1306 = vmatprep.subr.mxu0 0.0
        %1307 = vmatpush1.msra.mxu0 %v789
        %1308 = vmatprep.subr.mxu0 0.0
        %1309 = vmatpush1.msra.mxu0 %v790
        %1310 = vmatprep.subr.mxu0 0.0
        %1311 = vmatpush1.msra.mxu0 0.0
        %1312 = vmatprep.subr.mxu0 0.0
        %1313 = vmatpush1.msra.mxu0 0.0
        %1314 = vmatprep.subr.mxu0 0.0
        %1315 = vmatpush1.msra.mxu0 0.0
        %1316 = vmatprep.subr.mxu0 0.0
        %1317 = vmatpush1.msra.mxu0 0.0
        %1318 = vmatprep.subr.mxu0 0.0
        %1319 = vmatpush1.msra.mxu0 0.0
        %1320 = vmatprep.subr.mxu0 0.0
        %1321 = vmatpush1.msra.mxu0 0.0
        %1322 = vmatprep.subr.mxu0 0.0
        %1323 = vmatpush1.msra.mxu0 0.0
        %1324 = vmatprep.subr.mxu0 0.0
        %1325 = vmatpush1.msra.mxu0 0.0
        %1326 = vmatprep.subr.mxu0 0.0
        %1327 = vmatpush1.msra.mxu0 0.0
        %1328 = vmatprep.subr.mxu0 0.0
        %1329 = vmatpush1.msra.mxu0 0.0
        %1330 = vmatprep.subr.mxu0 0.0
        %1331 = vmatpush1.msra.mxu0 0.0
        %1332 = vmatprep.subr.mxu0 0.0
        %1333 = vmatpush1.msra.mxu0 0.0
        %1334 = vmatprep.subr.mxu0 0.0
        %1335 = vmatpush1.msra.mxu0 0.0
        %1336 = vmatprep.subr.mxu0 0.0
        %1337 = vmatpush1.msra.mxu0 0.0
        %1338 = vmatprep.subr.mxu0 0.0
        %1339 = vmatpush1.msra.mxu0 0.0
        %1340 = vmatprep.subr.mxu0 0.0
        %1341 = vmatpush1.msra.mxu0 0.0
        %1342 = vmatprep.subr.mxu0 0.0
        %1343 = vmatpush1.msra.mxu0 0.0
        %1344 = vmatprep.subr.mxu0 0.0
        %1345 = vmatpush1.msra.mxu0 0.0
        %1346 = vmatprep.subr.mxu0 0.0
        %1347 = vmatpush1.msra.mxu0 0.0
        %1348 = vmatprep.subr.mxu0 0.0
        %1349 = vmatpush1.msra.mxu0 0.0
        %1350 = vmatprep.subr.mxu0 0.0
        %1351 = vmatpush1.msra.mxu0 0.0
        %1352 = vmatprep.subr.mxu0 0.0
        %1353 = vmatpush1.msra.mxu0 0.0
        %1354 = vmatprep.subr.mxu0 0.0
        %1355 = vmatpush1.msra.mxu0 0.0
        %1356 = vmatprep.subr.mxu0 0.0
        %1357 = vmatpush1.msra.mxu0 0.0
        %1358 = vmatprep.subr.mxu0 0.0
        %1359 = vmatpush1.msra.mxu0 0.0
        %1360 = vmatprep.subr.mxu0 0.0
        %1361 = vmatpush1.msra.mxu0 0.0
        %1362 = vmatprep.subr.mxu0 0.0
        %1363 = vmatpush1.msra.mxu0 0.0
        %1364 = vmatprep.subr.mxu0 0.0
        %1365 = vmatpush1.msra.mxu0 0.0
        %1366 = vmatprep.mubr.f32.mxu0 0.0
        %1367 = vmatmul.mubr.f32.gmra.mrb[0].mxu0 %v1300
        %v1368 = vpop.f32.mrb[0].mxu0
        %v1369 = vadd.f32 0.0, %v1368
        %v1370 = vpop.f32.mrb[0].mxu0
        %1371 = vdwg.mxu0
        %v1372 = vadd.f32 %v1296, %v1369
        %v1373 = vxor.u32 %v1372, 2147483648
        %v1374 = vmul.f32 %v1373, 1.442695
        %v1375 = vpow.pop %v1374
        %v1376 = vadd.f32 %v1375, 1.0
        %v1377 = vrcp.pop %v1376
        %v1378 = vmul.f32 1.0, %v1377
        %v1379 = vtanh.pop %v1372
        %v1380 = vmul.f32 %v1378, %v1289
        %1382 = vrot.lane.b32.xlu0 %v1379, 64
        %v1383 = vpop.permute.xlu0 %1382
        %v1385 = vmul.f32 %v1378, %v1383
        %1387 = vrot.lane.b32.xlu0 %v1385, 32
        %v1388 = vpop.permute.xlu0 %1387
        %v1390 = vadd.f32 %v1380, %v1388
        %v1391 = vtanh.pop %v1390
        %1393 = vrot.lane.b32.xlu0 %v1391, 64
        %v1394 = vpop.permute.xlu0 %1393
        %v1396 = vmul.f32 %v1378, %v1394
        %v1397 = vld [vmem:[#allocation2 + $0x30] sm:$0xff]
        %1399 = vrot.lane.b32.xlu0 %v1396, 32
        %v1400 = vpop.permute.xlu0 %1399
        %v1401 = vsel %vm793, %v1400, 0
        %1403 = vmatprep.subr.mxu0 0.0
        %1404 = vmatpush1.msra.mxu0 %v787
        %1405 = vmatprep.subr.mxu0 0.0
        %1406 = vmatpush1.msra.mxu0 %v788
        %1407 = vmatprep.subr.mxu0 0.0
        %1408 = vmatpush1.msra.mxu0 %v789
        %1409 = vmatprep.subr.mxu0 0.0
        %1410 = vmatpush1.msra.mxu0 %v790
        %1411 = vmatprep.subr.mxu0 0.0
        %1412 = vmatpush1.msra.mxu0 0.0
        %1413 = vmatprep.subr.mxu0 0.0
        %1414 = vmatpush1.msra.mxu0 0.0
        %1415 = vmatprep.subr.mxu0 0.0
        %1416 = vmatpush1.msra.mxu0 0.0
        %1417 = vmatprep.subr.mxu0 0.0
        %1418 = vmatpush1.msra.mxu0 0.0
        %1419 = vmatprep.subr.mxu0 0.0
        %1420 = vmatpush1.msra.mxu0 0.0
        %1421 = vmatprep.subr.mxu0 0.0
        %1422 = vmatpush1.msra.mxu0 0.0
        %1423 = vmatprep.subr.mxu0 0.0
        %1424 = vmatpush1.msra.mxu0 0.0
        %1425 = vmatprep.subr.mxu0 0.0
        %1426 = vmatpush1.msra.mxu0 0.0
        %1427 = vmatprep.subr.mxu0 0.0
        %1428 = vmatpush1.msra.mxu0 0.0
        %1429 = vmatprep.subr.mxu0 0.0
        %1430 = vmatpush1.msra.mxu0 0.0
        %1431 = vmatprep.subr.mxu0 0.0
        %1432 = vmatpush1.msra.mxu0 0.0
        %1433 = vmatprep.subr.mxu0 0.0
        %1434 = vmatpush1.msra.mxu0 0.0
        %1435 = vmatprep.subr.mxu0 0.0
        %1436 = vmatpush1.msra.mxu0 0.0
        %1437 = vmatprep.subr.mxu0 0.0
        %1438 = vmatpush1.msra.mxu0 0.0
        %1439 = vmatprep.subr.mxu0 0.0
        %1440 = vmatpush1.msra.mxu0 0.0
        %1441 = vmatprep.subr.mxu0 0.0
        %1442 = vmatpush1.msra.mxu0 0.0
        %1443 = vmatprep.subr.mxu0 0.0
        %1444 = vmatpush1.msra.mxu0 0.0
        %1445 = vmatprep.subr.mxu0 0.0
        %1446 = vmatpush1.msra.mxu0 0.0
        %1447 = vmatprep.subr.mxu0 0.0
        %1448 = vmatpush1.msra.mxu0 0.0
        %1449 = vmatprep.subr.mxu0 0.0
        %1450 = vmatpush1.msra.mxu0 0.0
        %1451 = vmatprep.subr.mxu0 0.0
        %1452 = vmatpush1.msra.mxu0 0.0
        %1453 = vmatprep.subr.mxu0 0.0
        %1454 = vmatpush1.msra.mxu0 0.0
        %1455 = vmatprep.subr.mxu0 0.0
        %1456 = vmatpush1.msra.mxu0 0.0
        %1457 = vmatprep.subr.mxu0 0.0
        %1458 = vmatpush1.msra.mxu0 0.0
        %1459 = vmatprep.subr.mxu0 0.0
        %1460 = vmatpush1.msra.mxu0 0.0
        %1461 = vmatprep.subr.mxu0 0.0
        %1462 = vmatpush1.msra.mxu0 0.0
        %1463 = vmatprep.subr.mxu0 0.0
        %1464 = vmatpush1.msra.mxu0 0.0
        %1465 = vmatprep.subr.mxu0 0.0
        %1466 = vmatpush1.msra.mxu0 0.0
        %1467 = vmatprep.mubr.f32.mxu0 0.0
        %1468 = vmatmul.mubr.f32.gmra.mrb[0].mxu0 %v1401
        %v1469 = vpop.f32.mrb[0].mxu0
        %v1470 = vadd.f32 0.0, %v1469
        %v1471 = vpop.f32.mrb[0].mxu0
        %1472 = vdwg.mxu0
        %v1473 = vadd.f32 %v1397, %v1470
        %v1474 = vxor.u32 %v1473, 2147483648
        %v1475 = vmul.f32 %v1474, 1.442695
        %v1476 = vpow.pop %v1475
        %v1477 = vadd.f32 %v1476, 1.0
        %v1478 = vrcp.pop %v1477
        %v1479 = vmul.f32 1.0, %v1478
        %v1480 = vtanh.pop %v1473
        %v1481 = vmul.f32 %v1479, %v1390
        %1483 = vrot.lane.b32.xlu0 %v1480, 64
        %v1484 = vpop.permute.xlu0 %1483
        %v1486 = vmul.f32 %v1479, %v1484
        %1488 = vrot.lane.b32.xlu0 %v1486, 32
        %v1489 = vpop.permute.xlu0 %1488
        %v1491 = vadd.f32 %v1481, %v1489
        %v1492 = vtanh.pop %v1491
        %1494 = vrot.lane.b32.xlu0 %v1492, 64
        %v1495 = vpop.permute.xlu0 %1494
        %v1497 = vmul.f32 %v1479, %v1495
        %v1498 = vld [vmem:[#allocation2 + $0x38] sm:$0xff]
        %1500 = vrot.lane.b32.xlu0 %v1497, 32
        %v1501 = vpop.permute.xlu0 %1500
        %v1502 = vsel %vm793, %v1501, 0
        %1504 = vmatprep.subr.mxu0 0.0
        %1505 = vmatpush1.msra.mxu0 %v787
        %1506 = vmatprep.subr.mxu0 0.0
        %1507 = vmatpush1.msra.mxu0 %v788
        %1508 = vmatprep.subr.mxu0 0.0
        %1509 = vmatpush1.msra.mxu0 %v789
        %1510 = vmatprep.subr.mxu0 0.0
        %1511 = vmatpush1.msra.mxu0 %v790
        %1512 = vmatprep.subr.mxu0 0.0
        %1513 = vmatpush1.msra.mxu0 0.0
        %1514 = vmatprep.subr.mxu0 0.0
        %1515 = vmatpush1.msra.mxu0 0.0
        %1516 = vmatprep.subr.mxu0 0.0
        %1517 = vmatpush1.msra.mxu0 0.0
        %1518 = vmatprep.subr.mxu0 0.0
        %1519 = vmatpush1.msra.mxu0 0.0
        %1520 = vmatprep.subr.mxu0 0.0
        %1521 = vmatpush1.msra.mxu0 0.0
        %1522 = vmatprep.subr.mxu0 0.0
        %1523 = vmatpush1.msra.mxu0 0.0
        %1524 = vmatprep.subr.mxu0 0.0
        %1525 = vmatpush1.msra.mxu0 0.0
        %1526 = vmatprep.subr.mxu0 0.0
        %1527 = vmatpush1.msra.mxu0 0.0
        %1528 = vmatprep.subr.mxu0 0.0
        %1529 = vmatpush1.msra.mxu0 0.0
        %1530 = vmatprep.subr.mxu0 0.0
        %1531 = vmatpush1.msra.mxu0 0.0
        %1532 = vmatprep.subr.mxu0 0.0
        %1533 = vmatpush1.msra.mxu0 0.0
        %1534 = vmatprep.subr.mxu0 0.0
        %1535 = vmatpush1.msra.mxu0 0.0
        %1536 = vmatprep.subr.mxu0 0.0
        %1537 = vmatpush1.msra.mxu0 0.0
        %1538 = vmatprep.subr.mxu0 0.0
        %1539 = vmatpush1.msra.mxu0 0.0
        %1540 = vmatprep.subr.mxu0 0.0
        %1541 = vmatpush1.msra.mxu0 0.0
        %1542 = vmatprep.subr.mxu0 0.0
        %1543 = vmatpush1.msra.mxu0 0.0
        %1544 = vmatprep.subr.mxu0 0.0
        %1545 = vmatpush1.msra.mxu0 0.0
        %1546 = vmatprep.subr.mxu0 0.0
        %1547 = vmatpush1.msra.mxu0 0.0
        %1548 = vmatprep.subr.mxu0 0.0
        %1549 = vmatpush1.msra.mxu0 0.0
        %1550 = vmatprep.subr.mxu0 0.0
        %1551 = vmatpush1.msra.mxu0 0.0
        %1552 = vmatprep.subr.mxu0 0.0
        %1553 = vmatpush1.msra.mxu0 0.0
        %1554 = vmatprep.subr.mxu0 0.0
        %1555 = vmatpush1.msra.mxu0 0.0
        %1556 = vmatprep.subr.mxu0 0.0
        %1557 = vmatpush1.msra.mxu0 0.0
        %1558 = vmatprep.subr.mxu0 0.0
        %1559 = vmatpush1.msra.mxu0 0.0
        %1560 = vmatprep.subr.mxu0 0.0
        %1561 = vmatpush1.msra.mxu0 0.0
        %1562 = vmatprep.subr.mxu0 0.0
        %1563 = vmatpush1.msra.mxu0 0.0
        %1564 = vmatprep.subr.mxu0 0.0
        %1565 = vmatpush1.msra.mxu0 0.0
        %1566 = vmatprep.subr.mxu0 0.0
        %1567 = vmatpush1.msra.mxu0 0.0
        %1568 = vmatprep.mubr.f32.mxu0 0.0
        %1569 = vmatmul.mubr.f32.gmra.mrb[0].mxu0 %v1502
        %v1570 = vpop.f32.mrb[0].mxu0
        %v1571 = vadd.f32 0.0, %v1570
        %v1572 = vpop.f32.mrb[0].mxu0
        %1573 = vdwg.mxu0
        %v1574 = vadd.f32 %v1498, %v1571
        %v1575 = vxor.u32 %v1574, 2147483648
        %v1576 = vmul.f32 %v1575, 1.442695
        %v1577 = vpow.pop %v1576
        %v1578 = vadd.f32 %v1577, 1.0
        %v1579 = vrcp.pop %v1578
        %v1580 = vmul.f32 1.0, %v1579
        %v1581 = vtanh.pop %v1574
        %v1582 = vmul.f32 %v1580, %v1491
        %1584 = vrot.lane.b32.xlu0 %v1581, 64
        %v1585 = vpop.permute.xlu0 %1584
        %v1587 = vmul.f32 %v1580, %v1585
        %1589 = vrot.lane.b32.xlu0 %v1587, 32
        %v1590 = vpop.permute.xlu0 %1589
        %v1592 = vadd.f32 %v1582, %v1590
        %v1593 = vtanh.pop %v1592
        %1595 = vrot.lane.b32.xlu0 %v1593, 64
        %v1596 = vpop.permute.xlu0 %1595
        %v1598 = vmul.f32 %v1580, %v1596
        %v1599 = vld [vmem:[%s202] sm:$0xff]
        %v1600 = vlaneseq
        %v1601 = vshrl.u32 %v1600, 7
        %v1602 = vsub.s32 3, %v1601
        %v1603 = vrot.slane %v791, %v1602
        %v1604 = vmul.f32 %v1599, %v1603
        %1605 = vadd.xlane.f32.xlu0 %v1604
        %v1606 = vpop.xlane.xlu0 %1605
        %v1607 = vmax.f32 %v1606, 0.0
        %v1608 = vld [vmem:[#allocation8 + $0x20] sm:$0xff]
        %v1609 = vld [vmem:[#allocation8 + $0x28] sm:$0xff]
        %v1610 = vld [vmem:[#allocation8 + $0x30] sm:$0xff]
        %v1611 = vld [vmem:[#allocation8 + $0x38] sm:$0xff]
        %v1612 = vlaneseq
        %v1613 = vshrl.u32 %v1612, 7
        %v1614 = vsub.s32 0, %v1613
        %v1615 = vrot.slane %v791, %v1614
        %v1616 = vmul.f32 %v1607, %v1615
        %1618 = vrot.lane.b32.xlu0 %v1598, 32
        %v1619 = vpop.permute.xlu0 %1618
        %v1620 = vsel %vm793, %v1619, 0
        %1622 = vmatprep.subr.mxu0 0.0
        %1623 = vmatpush1.msra.mxu0 %v1608
        %1624 = vmatprep.subr.mxu0 0.0
        %1625 = vmatpush1.msra.mxu0 %v1609
        %1626 = vmatprep.subr.mxu0 0.0
        %1627 = vmatpush1.msra.mxu0 %v1610
        %1628 = vmatprep.subr.mxu0 0.0
        %1629 = vmatpush1.msra.mxu0 %v1611
        %1630 = vmatprep.subr.mxu0 0.0
        %1631 = vmatpush1.msra.mxu0 0.0
        %1632 = vmatprep.subr.mxu0 0.0
        %1633 = vmatpush1.msra.mxu0 0.0
        %1634 = vmatprep.subr.mxu0 0.0
        %1635 = vmatpush1.msra.mxu0 0.0
        %1636 = vmatprep.subr.mxu0 0.0
        %1637 = vmatpush1.msra.mxu0 0.0
        %1638 = vmatprep.subr.mxu0 0.0
        %1639 = vmatpush1.msra.mxu0 0.0
        %1640 = vmatprep.subr.mxu0 0.0
        %1641 = vmatpush1.msra.mxu0 0.0
        %1642 = vmatprep.subr.mxu0 0.0
        %1643 = vmatpush1.msra.mxu0 0.0
        %1644 = vmatprep.subr.mxu0 0.0
        %1645 = vmatpush1.msra.mxu0 0.0
        %1646 = vmatprep.subr.mxu0 0.0
        %1647 = vmatpush1.msra.mxu0 0.0
        %1648 = vmatprep.subr.mxu0 0.0
        %1649 = vmatpush1.msra.mxu0 0.0
        %1650 = vmatprep.subr.mxu0 0.0
        %1651 = vmatpush1.msra.mxu0 0.0
        %1652 = vmatprep.subr.mxu0 0.0
        %1653 = vmatpush1.msra.mxu0 0.0
        %1654 = vmatprep.subr.mxu0 0.0
        %1655 = vmatpush1.msra.mxu0 0.0
        %1656 = vmatprep.subr.mxu0 0.0
        %1657 = vmatpush1.msra.mxu0 0.0
        %1658 = vmatprep.subr.mxu0 0.0
        %1659 = vmatpush1.msra.mxu0 0.0
        %1660 = vmatprep.subr.mxu0 0.0
        %1661 = vmatpush1.msra.mxu0 0.0
        %1662 = vmatprep.subr.mxu0 0.0
        %1663 = vmatpush1.msra.mxu0 0.0
        %1664 = vmatprep.subr.mxu0 0.0
        %1665 = vmatpush1.msra.mxu0 0.0
        %1666 = vmatprep.subr.mxu0 0.0
        %1667 = vmatpush1.msra.mxu0 0.0
        %1668 = vmatprep.subr.mxu0 0.0
        %1669 = vmatpush1.msra.mxu0 0.0
        %1670 = vmatprep.subr.mxu0 0.0
        %1671 = vmatpush1.msra.mxu0 0.0
        %1672 = vmatprep.subr.mxu0 0.0
        %1673 = vmatpush1.msra.mxu0 0.0
        %1674 = vmatprep.subr.mxu0 0.0
        %1675 = vmatpush1.msra.mxu0 0.0
        %1676 = vmatprep.subr.mxu0 0.0
        %1677 = vmatpush1.msra.mxu0 0.0
        %1678 = vmatprep.subr.mxu0 0.0
        %1679 = vmatpush1.msra.mxu0 0.0
        %1680 = vmatprep.subr.mxu0 0.0
        %1681 = vmatpush1.msra.mxu0 0.0
        %1682 = vmatprep.subr.mxu0 0.0
        %1683 = vmatpush1.msra.mxu0 0.0
        %1684 = vmatprep.subr.mxu0 0.0
        %1685 = vmatpush1.msra.mxu0 0.0
        %1686 = vmatprep.mubr.f32.mxu0 0.0
        %1687 = vmatmul.mubr.f32.gmra.mrb[0].mxu0 %v1620
        %v1688 = vpop.f32.mrb[0].mxu0
        %v1689 = vadd.f32 %v1616, %v1688
        %v1690 = vpop.f32.mrb[0].mxu0
        %1691 = vdwg.mxu0
        %v1692 = vlaneseq
        %v1693 = vshrl.u32 %v1692, 7
        %v1694 = vsub.s32 1, %v1693
        %v1695 = vrot.slane %v791, %v1694
        %v1696 = vadd.f32 %v1689, %v1695
        %v1697 = vmax.f32 %v1696, 0.0
        %v1698 = vld [vmem:[#allocation8 + $0x40] sm:$0xff]
        %v1699 = vld [vmem:[#allocation8 + $0x48] sm:$0xff]
        %v1700 = vld [vmem:[#allocation8 + $0x50] sm:$0xff]
        %v1701 = vld [vmem:[#allocation8 + $0x58] sm:$0xff]
        %v1702 = vld [vmem:[#allocation8 + $0x60] sm:$0xff]
        %v1703 = vld [vmem:[#allocation8 + $0x68] sm:$0xff]
        %v1704 = vld [vmem:[#allocation8 + $0x70] sm:$0xff]
        %v1705 = vld [vmem:[#allocation8 + $0x78] sm:$0xff]
        %v1706 = vld [vmem:[#allocation8 + $0x80] sm:$0xff]
        %v1707 = vld [vmem:[#allocation8 + $0x88] sm:$0xff]
        %v1708 = vld [vmem:[#allocation8 + $0x90] sm:$0xff]
        %v1709 = vld [vmem:[#allocation8 + $0x98] sm:$0xff]
        %v1710 = vld [vmem:[#allocation8 + $0xa0] sm:$0xff]
        %v1711 = vld [vmem:[#allocation8 + $0xa8] sm:$0xff]
        %v1712 = vld [vmem:[#allocation8 + $0xb0] sm:$0xff]
        %v1713 = vld [vmem:[#allocation8 + $0xb8] sm:$0xff]
        %v1714 = vlaneseq
        %v1715 = vshrl.u32 %v1714, 7
        %v1716 = vsub.s32 2, %v1715
        %v1717 = vrot.slane %v791, %v1716
        %1718 = vmatprep.subr.mxu0 0.0
        %1719 = vmatpush1.msra.mxu0 %v1698
        %1720 = vmatprep.subr.mxu0 0.0
        %1721 = vmatpush1.msra.mxu0 %v1699
        %1722 = vmatprep.subr.mxu0 0.0
        %1723 = vmatpush1.msra.mxu0 %v1700
        %1724 = vmatprep.subr.mxu0 0.0
        %1725 = vmatpush1.msra.mxu0 %v1701
        %1726 = vmatprep.subr.mxu0 0.0
        %1727 = vmatpush1.msra.mxu0 %v1702
        %1728 = vmatprep.subr.mxu0 0.0
        %1729 = vmatpush1.msra.mxu0 %v1703
        %1730 = vmatprep.subr.mxu0 0.0
        %1731 = vmatpush1.msra.mxu0 %v1704
        %1732 = vmatprep.subr.mxu0 0.0
        %1733 = vmatpush1.msra.mxu0 %v1705
        %1734 = vmatprep.subr.mxu0 0.0
        %1735 = vmatpush1.msra.mxu0 %v1706
        %1736 = vmatprep.subr.mxu0 0.0
        %1737 = vmatpush1.msra.mxu0 %v1707
        %1738 = vmatprep.subr.mxu0 0.0
        %1739 = vmatpush1.msra.mxu0 %v1708
        %1740 = vmatprep.subr.mxu0 0.0
        %1741 = vmatpush1.msra.mxu0 %v1709
        %1742 = vmatprep.subr.mxu0 0.0
        %1743 = vmatpush1.msra.mxu0 %v1710
        %1744 = vmatprep.subr.mxu0 0.0
        %1745 = vmatpush1.msra.mxu0 %v1711
        %1746 = vmatprep.subr.mxu0 0.0
        %1747 = vmatpush1.msra.mxu0 %v1712
        %1748 = vmatprep.subr.mxu0 0.0
        %1749 = vmatpush1.msra.mxu0 %v1713
        %1750 = vmatprep.subr.mxu0 0.0
        %1751 = vmatpush1.msra.mxu0 0.0
        %1752 = vmatprep.subr.mxu0 0.0
        %1753 = vmatpush1.msra.mxu0 0.0
        %1754 = vmatprep.subr.mxu0 0.0
        %1755 = vmatpush1.msra.mxu0 0.0
        %1756 = vmatprep.subr.mxu0 0.0
        %1757 = vmatpush1.msra.mxu0 0.0
        %1758 = vmatprep.subr.mxu0 0.0
        %1759 = vmatpush1.msra.mxu0 0.0
        %1760 = vmatprep.subr.mxu0 0.0
        %1761 = vmatpush1.msra.mxu0 0.0
        %1762 = vmatprep.subr.mxu0 0.0
        %1763 = vmatpush1.msra.mxu0 0.0
        %1764 = vmatprep.subr.mxu0 0.0
        %1765 = vmatpush1.msra.mxu0 0.0
        %1766 = vmatprep.subr.mxu0 0.0
        %1767 = vmatpush1.msra.mxu0 0.0
        %1768 = vmatprep.subr.mxu0 0.0
        %1769 = vmatpush1.msra.mxu0 0.0
        %1770 = vmatprep.subr.mxu0 0.0
        %1771 = vmatpush1.msra.mxu0 0.0
        %1772 = vmatprep.subr.mxu0 0.0
        %1773 = vmatpush1.msra.mxu0 0.0
        %1774 = vmatprep.subr.mxu0 0.0
        %1775 = vmatpush1.msra.mxu0 0.0
        %1776 = vmatprep.subr.mxu0 0.0
        %1777 = vmatpush1.msra.mxu0 0.0
        %1778 = vmatprep.subr.mxu0 0.0
        %1779 = vmatpush1.msra.mxu0 0.0
        %1780 = vmatprep.subr.mxu0 0.0
        %1781 = vmatpush1.msra.mxu0 0.0
        %1782 = vmatprep.mubr.f32.mxu0 0.0
        %1783 = vmatmul.mubr.f32.gmra.mrb[0].mxu0 %v1697
        %v1784 = vpop.f32.mrb[0].mxu0
        %v1785 = vadd.f32 %v1717, %v1784
        %v1786 = vpop.f32.mrb[0].mxu0
        %1787 = vdwg.mxu0
        %v1788 = vxor.u32 %v1785, 2147483648
        %v1789 = vmul.f32 %v1788, 1.442695
        %v1790 = vpow.pop %v1789
        %v1791 = vadd.f32 %v1790, 1.0
        %v1792 = vrcp.pop %v1791
        %v1793 = vmul.f32 1.0, %v1792
        %1794 = vst [vmem:[%s198] sm:$0xff] %v1793
        %s1795 = sand.u32 %s102, 1
        %s1796 = scalar_lea.sflag [#allocation7], %s1795
        %s1797 = sand.u32 %s102, 1
        %s1798 = smul.addr %s1797, 8
        %s1799 = scalar_lea.vmem [#allocation10], %s1798
        // Predicated region
        $region41: #{tpu_custom_call.1} parent=31 // pred_check
          %p1800 = pneg %p112
        $region42: #{tpu_custom_call.1} parent=31 // pred_check_branch
          %1802 = sbr.rel (%p1800) target = $region44
        $region43: #{tpu_custom_call.1} parent=31 // pred_region
          %s1804 = ssub.s32 128, 128
          %1805 = vsyncadd %s1796, %s1804
          %s1806 = smul.addr %s26, 128
          %s1807 = scalar_lea.hbm %s4, %s1806
          %s1809 = sshll.u32 %s1799, 4
          %s1810 = int_to_ptr.vmem [resolvable:$true] %s1809
          %1812 = dma.vmem_to_hbm [thread:$0]  %s1810, 128, %s1807, %s1796
        $region44: #{tpu_custom_call.1} parent=31 // pred_fallthru
          _
      $region32: #{tpu_custom_call.1} parent=5 // pred_fallthru
        _
      %p1813 = scmp.le.s32.totalorder 2, %s21
      // Predicated region
      $region45: #{tpu_custom_call.1} parent=5 // pred_check
        %p1814 = pneg %p1813
      $region46: #{tpu_custom_call.1} parent=5 // pred_check_branch
        %1816 = sbr.rel (%p1814) target = $region48
      $region47: #{tpu_custom_call.1} parent=5 // pred_region
        %s1817 = ssub.s32 %s21, 2
        // Predicated region
        $region49: #{tpu_custom_call.1} parent=47 // pred_check
          %p1818 = pneg %p118
        $region50: #{tpu_custom_call.1} parent=47 // pred_check_branch
          %1820 = sbr.rel (%p1818) target = $region52
        $region51: #{tpu_custom_call.1} parent=47 // pred_region
          %s1821 = sand.u32 %s103, 1
          %s1822 = scalar_lea.sflag [#allocation7], %s1821
          %s1823 = sand.u32 %s103, 1
          %s1824 = smul.addr %s1823, 8
          %s1825 = scalar_lea.vmem [#allocation10], %s1824
          %1826 = dma.done %s1822, 128
        $region52: #{tpu_custom_call.1} parent=47 // pred_fallthru
          _
      $region48: #{tpu_custom_call.1} parent=5 // pred_fallthru
        _
    $region6: #{tpu_custom_call.1} parent=1 // loop_footer
      %s25 = sadd.s32 1, %s21
    $region7: #{tpu_custom_call.1} parent=1 // loop_footer_branch
      %20 = sbr.rel target = $region3
    $region8: #{tpu_custom_call.1} parent=1 // loop_exit
      _
    %1827 = vsyncpa [#allocation6], 1
    %s1828 = scalar_lea.sflag [#allocation6], 1
    %1829 = vsyncpa %s1828, 1
    %1830 = vsyncpa [#allocation9], 1
    %1831 = vsyncpa [#allocation7], 1
    %s1832 = scalar_lea.sflag [#allocation7], 1
    %1833 = vsyncpa %s1832, 1

</llo_original>
